<compile_context>
chip_gen: v7x
topology: tpu7x:2x2x1
jax: 0.10.0
libtpu: 0.0.40
codegen_flags: <defaults>
</compile_context>

<pallas_src>
import functools

import jax
import jax.numpy as jnp
from jax.experimental import pallas as pl
from jax.experimental.pallas import tpu as pltpu


# ----------------------------- helpers --------------------------------------

def _round_up(x, m):
    return (x + m - 1) // m * m


def _default_target_rows():
    # v5e/v6e (128 MiB VMEM) can afford larger resident blocks than v7x (64 MiB).
    try:
        cap = int(pltpu.get_tpu_info().vmem_capacity_bytes)
    except Exception:
        cap = 64 * 2**20
    return 2048 if cap >= 96 * 2**20 else 1024


# ----------------------------- Pallas kernels -------------------------------

def _conv_tap_kernel(x_ref, w_ref, o_ref, *, taps, m_out, negative_slope):
    """Implicit-GEMM 4x4/stride-2 conv on a quartered (space-to-depth) input.

    x_ref: (Bt, R_p, K4p)  quartered + row-flattened activation, whole images
    w_ref: (4, K4p, Cout)  per-tap weights (tap = 2x2 spatial offset)
    o_ref: (Bt, m_out, Cout)

    The im2col "patch" data is only ever materialized as 4 small tap slices in
    VMEM; HBM sees the ~1x quartered activation, not the 4x patch tensor.
    """
    bt = x_ref.shape[0]
    k4 = x_ref.shape[2]
    cout = o_ref.shape[2]

    acc = jnp.zeros((bt * m_out, cout), jnp.float32)
    for t, off in enumerate(taps):            # static 4-iteration tap loop
        xt = x_ref[:, off:off + m_out, :]     # static slice (VMEM-local)
        xt = xt.reshape(bt * m_out, k4)       # aligned collapse (m_out % 16 == 0)
        acc = acc + jnp.dot(xt, w_ref[t], preferred_element_type=jnp.float32)

    y = jnp.maximum(acc, negative_slope * acc)          # LeakyReLU, f32 epilogue
    o_ref[...] = y.reshape(bt, m_out, cout).astype(o_ref.dtype)


def _matmul_bias_kernel(x_ref, w_ref, b_ref, o_ref):
    # Fused fc(1) + classifier(num_classes) heads: y = x @ w + b.
    y = jnp.dot(x_ref[...], w_ref[...], preferred_element_type=jnp.float32)
    o_ref[...] = (y + b_ref[...]).astype(o_ref.dtype)


# ------------------------------ conv layer -----------------------------------

def conv4x4_s2_lrelu(h, w_q, *, out_dtype, negative_slope=0.2, target_rows=None):
    """Conv2d(k=4, s=2, p=1, bias=False) + LeakyReLU(0.2) on NHWC input.

    h:   (N, H, W, Cin) activation (any float dtype; cast to bf16 internally)
    w_q: (4, K4p, Cout) tap-major matmul-ready weights (built once at init)
    Returns (N, OH, OW, Cout).
    """
    if target_rows is None:
        target_rows = _default_target_rows()

    N, H, W, C = h.shape
    OH = (H + 2 - 4) // 2 + 1
    OW = (W + 2 - 4) // 2 + 1
    HP = 2 * OH + 4                     # even, >= H + 2
    WP = _round_up(W + 2, 2)            # even
    HQ, WQ = HP // 2, WP // 2           # quartered grid (HQ >= OH+1, WQ >= OW+1)
    K4 = 4 * C
    K4p, cout = int(w_q.shape[1]), int(w_q.shape[2])

    # Output rows per image = OH*WQ (includes WQ-OW junk columns per row, sliced
    # off afterwards), padded to a multiple of 16 for bf16 sublane packing.
    m_out = _round_up(OH * WQ, 16)
    r_p = _round_up(max(HQ * WQ, m_out + WQ + 2), 16)   # per-image input rows

    # --- cheap XLA-side layout prep (~1x activation volume, no patch tensor) ---
    hb = h.astype(jnp.bfloat16)
    hp = jnp.pad(hb, ((0, 0), (1, HP - H - 1), (1, WP - W - 1), (0, 0)))
    # space-to-depth: x_q[n, ph, pw, (r*2+c)*C + ci] = hp[n, 2*ph+r, 2*pw+c, ci]
    xq = hp.reshape(N, HQ, 2, WQ, 2, C).transpose(0, 1, 3, 2, 4, 5)
    xq = xq.reshape(N, HQ * WQ, K4)
    xq = jnp.pad(xq, ((0, 0), (0, r_p - HQ * WQ), (0, K4p - K4)))

    # --- batch tile: amortize per-step overhead, keep >= 2 steps when possible ---
    bt = max(1, min(N, max(1, target_rows // m_out)))
    if N >= 2:
        bt = min(bt, pl.cdiv(N, 2))     # >= 2 grid steps -> megacore can engage
    grid = (pl.cdiv(N, bt),)

    # --- right-sized VMEM budget (double-buffered blocks + scratch + margin) ---
    itemsize_out = jnp.dtype(out_dtype).itemsize
    in_bytes = bt * r_p * K4p * 2
    out_bytes = bt * m_out * cout * itemsize_out
    w_bytes = 4 * K4p * cout * 2
    tmp_bytes = bt * m_out * (K4p * 2 + cout * 4)   # tap slice + f32 accumulator
    vmem_limit = 2 * (in_bytes + out_bytes + w_bytes) + 3 * tmp_bytes + (8 << 20)
    vmem_limit = int(min(112 << 20, max(16 << 20, vmem_limit)))

    kernel = functools.partial(
        _conv_tap_kernel,
        taps=(0, 1, WQ, WQ + 1),        # row offsets of the 4 (a, b) taps
        m_out=m_out,
        negative_slope=negative_slope,
    )

    y = pl.pallas_call(
        kernel,
        out_shape=jax.ShapeDtypeStruct((N, m_out, cout), out_dtype),
        grid_spec=pltpu.PrefetchScalarGridSpec(
            num_scalar_prefetch=0,
            grid=grid,
            in_specs=[
                pl.BlockSpec((bt, r_p, K4p), lambda i: (i, 0, 0)),   # activation tile
                pl.BlockSpec((4, K4p, cout), lambda i: (0, 0, 0)),   # resident weight
            ],
            out_specs=pl.BlockSpec((bt, m_out, cout), lambda i: (i, 0, 0)),
        ),
        compiler_params=pltpu.CompilerParams(
            dimension_semantics=("parallel",) if grid[0] >= 2 else ("arbitrary",),
            vmem_limit_bytes=vmem_limit,
        ),
    )(xq, w_q)

    # drop the junk rows/columns: valid rows are m = oh*WQ + ow with ow < OW
    y = y[:, :OH * WQ, :].reshape(N, OH, WQ, cout)[:, :, :OW, :]
    return y


# ------------------------------ heads matmul ---------------------------------

def heads_matmul(x, w, b, *, tile_m=256):
    """x: (M, K) features, w: (K, Np) fused fc+classifier (lane-padded), b: (Np,)."""
    M, K = x.shape
    Np = w.shape[1]
    x = x.astype(jnp.bfloat16)

    if M <= tile_m:
        tm = M                              # full-dim block (no (8,128) constraint)
    else:
        tm = _round_up(tile_m, 16)
    grid = (pl.cdiv(M, tm),)

    vmem_limit = int(min(112 << 20, max(16 << 20,
                     2 * (tm * K * 2 + tm * Np * 4 + K * Np * 2) + (4 << 20))))

    out = pl.pallas_call(
        _matmul_bias_kernel,
        out_shape=jax.ShapeDtypeStruct((M, Np), jnp.float32),
        grid_spec=pltpu.PrefetchScalarGridSpec(
            num_scalar_prefetch=0,
            grid=grid,
            in_specs=[
                pl.BlockSpec((tm, K), lambda i: (i, 0)),
                pl.BlockSpec((K, Np), lambda i: (0, 0)),
                pl.BlockSpec((1, Np), lambda i: (0, 0)),
            ],
            out_specs=pl.BlockSpec((tm, Np), lambda i: (i, 0)),
        ),
        compiler_params=pltpu.CompilerParams(
            dimension_semantics=("parallel",) if grid[0] >= 2 else ("arbitrary",),
            vmem_limit_bytes=vmem_limit,
        ),
    )(x, w.astype(jnp.bfloat16), b.reshape(1, Np).astype(jnp.float32))
    return out


# ------------------------------ init / params --------------------------------

def spectral_normalize(w, n_iter=10):
    """Divide by the approximate largest singular value (power iteration), like
    torch.nn.utils.spectral_norm for frozen inference weights."""
    wm = w.reshape(w.shape[0], -1).astype(jnp.float32)
    u = jnp.ones((wm.shape[0],), jnp.float32) / jnp.sqrt(jnp.float32(wm.shape[0]))
    v = jnp.zeros((wm.shape[1],), jnp.float32)
    for _ in range(n_iter):
        v = wm.T @ u
        v = v / (jnp.linalg.norm(v) + 1e-12)
        u = wm @ v
        u = u / (jnp.linalg.norm(u) + 1e-12)
    sigma = u @ (wm @ v)
    return (w / sigma).astype(jnp.float32)


def conv_w_to_taps(w):
    """(Cout, Cin, 4, 4) OIHW -> (4 taps, round_up(4*Cin, 8), Cout), matching the
    space-to-depth channel-group order (r, c, ci) used for the activations."""
    cout, cin, kh, kw = w.shape
    wt = w.transpose(2, 3, 1, 0)                         # (di, dj, ci, co)
    wt = wt.reshape(2, 2, 2, 2, cin, cout)               # (a, r, b, c, ci, co)
    wt = wt.transpose(0, 2, 1, 3, 4, 5)                  # (a, b, r, c, ci, co)
    wq = wt.reshape(4, 4 * cin, cout)
    k4p = _round_up(4 * cin, 8)
    wq = jnp.pad(wq, ((0, 0), (0, k4p - 4 * cin), (0, 0)))
    return wq.astype(jnp.bfloat16)


def init_discriminator_params(key, nc=1, ndf=64, num_classes=24, input_size=28):
    s = input_size
    for _ in range(3):
        s = (s + 2 - 4) // 2 + 1
    flatten_size = ndf * 4 * s * s

    k1, k2, k3, k4, k5 = jax.random.split(key, 5)
    w1 = spectral_normalize(0.02 * jax.random.normal(k1, (ndf, nc, 4, 4), jnp.float32))
    w2 = spectral_normalize(0.02 * jax.random.normal(k2, (ndf * 2, ndf, 4, 4), jnp.float32))
    w3 = spectral_normalize(0.02 * jax.random.normal(k3, (ndf * 4, ndf * 2, 4, 4), jnp.float32))
    fc_w = spectral_normalize(0.02 * jax.random.normal(k4, (1, flatten_size), jnp.float32))
    cls_w = spectral_normalize(0.02 * jax.random.normal(k5, (num_classes, flatten_size), jnp.float32))
    fc_b = jnp.zeros((1,), jnp.float32)
    cls_b = jnp.zeros((num_classes,), jnp.float32)

    # Fused heads: rows in PyTorch NCHW flatten order, columns padded to 128 lanes.
    ncols = 1 + num_classes
    ncols_pad = _round_up(ncols, 128)
    heads_w = jnp.concatenate([fc_w, cls_w], axis=0).T            # (F, 1+num_classes)
    heads_w = jnp.pad(heads_w, ((0, 0), (0, ncols_pad - ncols))).astype(jnp.bfloat16)
    heads_b = jnp.pad(jnp.concatenate([fc_b, cls_b]), (0, ncols_pad - ncols)).astype(jnp.float32)

    params = {
        "w1q": conv_w_to_taps(w1),
        "w2q": conv_w_to_taps(w2),
        "w3q": conv_w_to_taps(w3),
        "head_w": heads_w,
        "head_b": heads_b,
    }
    return params, flatten_size


# ------------------------------ forward --------------------------------------

@functools.partial(jax.jit, static_argnames=("num_classes",))
def discriminator_forward(params, x, *, num_classes):
    """x: (N, nc, H, W) NCHW float32 -> (real_or_fake, class_output, features)."""
    xh = jnp.transpose(x, (0, 2, 3, 1))                           # NHWC once at boundary

    h = conv4x4_s2_lrelu(xh, params["w1q"], out_dtype=jnp.bfloat16)
    h = conv4x4_s2_lrelu(h, params["w2q"], out_dtype=jnp.bfloat16)
    h = conv4x4_s2_lrelu(h, params["w3q"], out_dtype=jnp.float32)

    # PyTorch features.view(N, -1) is NCHW flatten order; the final map is tiny.
    N = h.shape[0]
    features = jnp.transpose(h, (0, 3, 1, 2)).reshape(N, -1)

    heads = heads_matmul(features, params["head_w"], params["head_b"])
    real_or_fake = heads[:, :1]
    class_output = heads[:, 1:1 + num_classes]
    return real_or_fake, class_output, features


# --------------------------------- main ---------------------------------------

if __name__ == "__main__":
    batch, nc, ndf, num_classes, input_size = 2, 1, 64, 24, 28

    key = jax.random.PRNGKey(0)
    pkey, xkey = jax.random.split(key)
    params, flatten_size = init_discriminator_params(
        pkey, nc=nc, ndf=ndf, num_classes=num_classes, input_size=input_size)

    x = jax.random.normal(xkey, (batch, nc, input_size, input_size), jnp.float32)

    real_or_fake, class_output, features = discriminator_forward(
        params, x, num_classes=num_classes)
    jax.block_until_ready((real_or_fake, class_output, features))

    assert real_or_fake.shape == (batch, 1)
    assert class_output.shape == (batch, num_classes)
    assert features.shape == (batch, flatten_size)
    assert flatten_size == ndf * 4 * 3 * 3            # 28 -> 14 -> 7 -> 3
    assert bool(jnp.all(jnp.isfinite(real_or_fake)))
    assert bool(jnp.all(jnp.isfinite(class_output)))

    print("KERNEL_OK")
</pallas_src>

<mosaic_0001>
module attributes {stable_mosaic.version = 11 : i64} {
  func.func @_conv_tap_kernel(%arg0: i32, %arg1: memref<1x256x8xbf16, #tpu.memory_space<vmem>>, %arg2: memref<4x8x64xbf16, #tpu.memory_space<vmem>>, %arg3: memref<1x224x64xbf16, #tpu.memory_space<vmem>>) attributes {dimension_semantics = [#tpu.dimension_semantics<parallel>], iteration_bounds = array<i64: 2>, scalar_prefetch = 0 : i64, scratch_operands = 0 : i64, tpu.core_type = #tpu.core_type<tc>, window_params = [{transform_indices = @transform_0, window_bounds = array<i64: 1, 256, 8>}, {pipeline_mode = #tpu.pipeline_mode<synchronous>, transform_indices = @transform_1, window_bounds = array<i64: 4, 8, 64>}, {transform_indices = @transform_2, window_bounds = array<i64: 1, 224, 64>}]} {
    %cst = arith.constant 0.000000e+00 : f32
    %0 = vector.broadcast %cst : f32 to vector<224x64xf32>
    %c0 = arith.constant 0 : index
    %c0_0 = arith.constant 0 : index
    %c0_1 = arith.constant 0 : index
    %1 = vector.load %arg1[%c0, %c0_0, %c0_1] : memref<1x256x8xbf16, #tpu.memory_space<vmem>>, vector<1x224x8xbf16>
    %2 = vector.shape_cast %1 : vector<1x224x8xbf16> to vector<224x8xbf16>
    %c0_2 = arith.constant 0 : index
    %c0_3 = arith.constant 0 : index
    %c0_4 = arith.constant 0 : index
    %3 = vector.load %arg2[%c0_2, %c0_3, %c0_4] : memref<4x8x64xbf16, #tpu.memory_space<vmem>>, vector<1x8x64xbf16>
    %4 = vector.shape_cast %3 : vector<1x8x64xbf16> to vector<8x64xbf16>
    %cst_5 = arith.constant dense<0.000000e+00> : vector<224x64xf32>
    %5 = tpu.matmul %2, %4, %cst_5 {dimension_numbers = #tpu.dot_dimension_numbers<[1], [0], [0], [1], [0, 0, 1, 1], [], []>} : vector<224x8xbf16>, vector<8x64xbf16>, vector<224x64xf32> -> vector<224x64xf32>
    %6 = arith.addf %0, %5 : vector<224x64xf32>
    %c0_6 = arith.constant 0 : index
    %c1 = arith.constant 1 : index
    %c0_7 = arith.constant 0 : index
    %7 = vector.load %arg1[%c0_6, %c1, %c0_7] : memref<1x256x8xbf16, #tpu.memory_space<vmem>>, vector<1x224x8xbf16>
    %8 = vector.shape_cast %7 : vector<1x224x8xbf16> to vector<224x8xbf16>
    %c1_8 = arith.constant 1 : index
    %c0_9 = arith.constant 0 : index
    %c0_10 = arith.constant 0 : index
    %9 = vector.load %arg2[%c1_8, %c0_9, %c0_10] : memref<4x8x64xbf16, #tpu.memory_space<vmem>>, vector<1x8x64xbf16>
    %10 = vector.shape_cast %9 : vector<1x8x64xbf16> to vector<8x64xbf16>
    %cst_11 = arith.constant dense<0.000000e+00> : vector<224x64xf32>
    %11 = tpu.matmul %8, %10, %cst_11 {dimension_numbers = #tpu.dot_dimension_numbers<[1], [0], [0], [1], [0, 0, 1, 1], [], []>} : vector<224x8xbf16>, vector<8x64xbf16>, vector<224x64xf32> -> vector<224x64xf32>
    %12 = arith.addf %6, %11 : vector<224x64xf32>
    %c0_12 = arith.constant 0 : index
    %c15 = arith.constant 15 : index
    %c0_13 = arith.constant 0 : index
    %13 = vector.load %arg1[%c0_12, %c15, %c0_13] : memref<1x256x8xbf16, #tpu.memory_space<vmem>>, vector<1x224x8xbf16>
    %14 = vector.shape_cast %13 : vector<1x224x8xbf16> to vector<224x8xbf16>
    %c2 = arith.constant 2 : index
    %c0_14 = arith.constant 0 : index
    %c0_15 = arith.constant 0 : index
    %15 = vector.load %arg2[%c2, %c0_14, %c0_15] : memref<4x8x64xbf16, #tpu.memory_space<vmem>>, vector<1x8x64xbf16>
    %16 = vector.shape_cast %15 : vector<1x8x64xbf16> to vector<8x64xbf16>
    %cst_16 = arith.constant dense<0.000000e+00> : vector<224x64xf32>
    %17 = tpu.matmul %14, %16, %cst_16 {dimension_numbers = #tpu.dot_dimension_numbers<[1], [0], [0], [1], [0, 0, 1, 1], [], []>} : vector<224x8xbf16>, vector<8x64xbf16>, vector<224x64xf32> -> vector<224x64xf32>
    %18 = arith.addf %12, %17 : vector<224x64xf32>
    %c0_17 = arith.constant 0 : index
    %c16 = arith.constant 16 : index
    %c0_18 = arith.constant 0 : index
    %19 = vector.load %arg1[%c0_17, %c16, %c0_18] : memref<1x256x8xbf16, #tpu.memory_space<vmem>>, vector<1x224x8xbf16>
    %20 = vector.shape_cast %19 : vector<1x224x8xbf16> to vector<224x8xbf16>
    %c3 = arith.constant 3 : index
    %c0_19 = arith.constant 0 : index
    %c0_20 = arith.constant 0 : index
    %21 = vector.load %arg2[%c3, %c0_19, %c0_20] : memref<4x8x64xbf16, #tpu.memory_space<vmem>>, vector<1x8x64xbf16>
    %22 = vector.shape_cast %21 : vector<1x8x64xbf16> to vector<8x64xbf16>
    %cst_21 = arith.constant dense<0.000000e+00> : vector<224x64xf32>
    %23 = tpu.matmul %20, %22, %cst_21 {dimension_numbers = #tpu.dot_dimension_numbers<[1], [0], [0], [1], [0, 0, 1, 1], [], []>} : vector<224x8xbf16>, vector<8x64xbf16>, vector<224x64xf32> -> vector<224x64xf32>
    %24 = arith.addf %18, %23 : vector<224x64xf32>
    %cst_22 = arith.constant 2.000000e-01 : f32
    %25 = vector.broadcast %cst_22 : f32 to vector<224x64xf32>
    %26 = arith.mulf %25, %24 : vector<224x64xf32>
    %27 = arith.maximumf %24, %26 : vector<224x64xf32>
    %28 = vector.shape_cast %27 : vector<224x64xf32> to vector<1x224x64xf32>
    %29 = arith.truncf %28 : vector<1x224x64xf32> to vector<1x224x64xbf16>
    %c0_23 = arith.constant 0 : index
    %c0_24 = arith.constant 0 : index
    %c0_25 = arith.constant 0 : index
    %30 = vector.load %arg3[%c0_23, %c0_24, %c0_25] : memref<1x224x64xbf16, #tpu.memory_space<vmem>>, vector<1x224x64xbf16>
    tpu.vector_store %arg3[%c0_23, %c0_24, %c0_25], %29 {strides = array<i32>} : memref<1x224x64xbf16, #tpu.memory_space<vmem>>, vector<1x224x64xbf16>,
    return
  }
  func.func @transform_0(%arg0: i32) -> (i32, i32, i32) {
    %c0_i32 = arith.constant 0 : i32
    %c0_i32_0 = arith.constant 0 : i32
    %c0_i32_1 = arith.constant 0 : i32
    return %arg0, %c0_i32, %c0_i32_0 : i32, i32, i32
  }
  func.func @transform_1(%arg0: i32) -> (i32, i32, i32) {
    %c0_i32 = arith.constant 0 : i32
    %c0_i32_0 = arith.constant 0 : i32
    %c0_i32_1 = arith.constant 0 : i32
    %c0_i32_2 = arith.constant 0 : i32
    return %c0_i32, %c0_i32_0, %c0_i32_1 : i32, i32, i32
  }
  func.func @transform_2(%arg0: i32) -> (i32, i32, i32) {
    %c0_i32 = arith.constant 0 : i32
    %c0_i32_0 = arith.constant 0 : i32
    %c0_i32_1 = arith.constant 0 : i32
    return %arg0, %c0_i32, %c0_i32_0 : i32, i32, i32
  }
}

module attributes {stable_mosaic.version = 11 : i64} {
  func.func @_conv_tap_kernel(%arg0: i32, %arg1: memref<1x80x256xbf16, #tpu.memory_space<vmem>>, %arg2: memref<4x256x128xbf16, #tpu.memory_space<vmem>>, %arg3: memref<1x64x128xbf16, #tpu.memory_space<vmem>>) attributes {dimension_semantics = [#tpu.dimension_semantics<parallel>], iteration_bounds = array<i64: 2>, scalar_prefetch = 0 : i64, scratch_operands = 0 : i64, tpu.core_type = #tpu.core_type<tc>, window_params = [{transform_indices = @transform_0, window_bounds = array<i64: 1, 80, 256>}, {pipeline_mode = #tpu.pipeline_mode<synchronous>, transform_indices = @transform_1, window_bounds = array<i64: 4, 256, 128>}, {transform_indices = @transform_2, window_bounds = array<i64: 1, 64, 128>}]} {
    %cst = arith.constant 0.000000e+00 : f32
    %0 = vector.broadcast %cst : f32 to vector<64x128xf32>
    %c0 = arith.constant 0 : index
    %c0_0 = arith.constant 0 : index
    %c0_1 = arith.constant 0 : index
    %1 = vector.load %arg1[%c0, %c0_0, %c0_1] : memref<1x80x256xbf16, #tpu.memory_space<vmem>>, vector<1x64x256xbf16>
    %2 = vector.shape_cast %1 : vector<1x64x256xbf16> to vector<64x256xbf16>
    %c0_2 = arith.constant 0 : index
    %c0_3 = arith.constant 0 : index
    %c0_4 = arith.constant 0 : index
    %3 = vector.load %arg2[%c0_2, %c0_3, %c0_4] : memref<4x256x128xbf16, #tpu.memory_space<vmem>>, vector<1x256x128xbf16>
    %4 = vector.shape_cast %3 : vector<1x256x128xbf16> to vector<256x128xbf16>
    %cst_5 = arith.constant dense<0.000000e+00> : vector<64x128xf32>
    %5 = tpu.matmul %2, %4, %cst_5 {dimension_numbers = #tpu.dot_dimension_numbers<[1], [0], [0], [1], [0, 0, 1, 1], [], []>} : vector<64x256xbf16>, vector<256x128xbf16>, vector<64x128xf32> -> vector<64x128xf32>
    %6 = arith.addf %0, %5 : vector<64x128xf32>
    %c0_6 = arith.constant 0 : index
    %c1 = arith.constant 1 : index
    %c0_7 = arith.constant 0 : index
    %7 = vector.load %arg1[%c0_6, %c1, %c0_7] : memref<1x80x256xbf16, #tpu.memory_space<vmem>>, vector<1x64x256xbf16>
    %8 = vector.shape_cast %7 : vector<1x64x256xbf16> to vector<64x256xbf16>
    %c1_8 = arith.constant 1 : index
    %c0_9 = arith.constant 0 : index
    %c0_10 = arith.constant 0 : index
    %9 = vector.load %arg2[%c1_8, %c0_9, %c0_10] : memref<4x256x128xbf16, #tpu.memory_space<vmem>>, vector<1x256x128xbf16>
    %10 = vector.shape_cast %9 : vector<1x256x128xbf16> to vector<256x128xbf16>
    %cst_11 = arith.constant dense<0.000000e+00> : vector<64x128xf32>
    %11 = tpu.matmul %8, %10, %cst_11 {dimension_numbers = #tpu.dot_dimension_numbers<[1], [0], [0], [1], [0, 0, 1, 1], [], []>} : vector<64x256xbf16>, vector<256x128xbf16>, vector<64x128xf32> -> vector<64x128xf32>
    %12 = arith.addf %6, %11 : vector<64x128xf32>
    %c0_12 = arith.constant 0 : index
    %c8 = arith.constant 8 : index
    %c0_13 = arith.constant 0 : index
    %13 = vector.load %arg1[%c0_12, %c8, %c0_13] : memref<1x80x256xbf16, #tpu.memory_space<vmem>>, vector<1x64x256xbf16>
    %14 = vector.shape_cast %13 : vector<1x64x256xbf16> to vector<64x256xbf16>
    %c2 = arith.constant 2 : index
    %c0_14 = arith.constant 0 : index
    %c0_15 = arith.constant 0 : index
    %15 = vector.load %arg2[%c2, %c0_14, %c0_15] : memref<4x256x128xbf16, #tpu.memory_space<vmem>>, vector<1x256x128xbf16>
    %16 = vector.shape_cast %15 : vector<1x256x128xbf16> to vector<256x128xbf16>
    %cst_16 = arith.constant dense<0.000000e+00> : vector<64x128xf32>
    %17 = tpu.matmul %14, %16, %cst_16 {dimension_numbers = #tpu.dot_dimension_numbers<[1], [0], [0], [1], [0, 0, 1, 1], [], []>} : vector<64x256xbf16>, vector<256x128xbf16>, vector<64x128xf32> -> vector<64x128xf32>
    %18 = arith.addf %12, %17 : vector<64x128xf32>
    %c0_17 = arith.constant 0 : index
    %c9 = arith.constant 9 : index
    %c0_18 = arith.constant 0 : index
    %19 = vector.load %arg1[%c0_17, %c9, %c0_18] : memref<1x80x256xbf16, #tpu.memory_space<vmem>>, vector<1x64x256xbf16>
    %20 = vector.shape_cast %19 : vector<1x64x256xbf16> to vector<64x256xbf16>
    %c3 = arith.constant 3 : index
    %c0_19 = arith.constant 0 : index
    %c0_20 = arith.constant 0 : index
    %21 = vector.load %arg2[%c3, %c0_19, %c0_20] : memref<4x256x128xbf16, #tpu.memory_space<vmem>>, vector<1x256x128xbf16>
    %22 = vector.shape_cast %21 : vector<1x256x128xbf16> to vector<256x128xbf16>
    %cst_21 = arith.constant dense<0.000000e+00> : vector<64x128xf32>
    %23 = tpu.matmul %20, %22, %cst_21 {dimension_numbers = #tpu.dot_dimension_numbers<[1], [0], [0], [1], [0, 0, 1, 1], [], []>} : vector<64x256xbf16>, vector<256x128xbf16>, vector<64x128xf32> -> vector<64x128xf32>
    %24 = arith.addf %18, %23 : vector<64x128xf32>
    %cst_22 = arith.constant 2.000000e-01 : f32
    %25 = vector.broadcast %cst_22 : f32 to vector<64x128xf32>
    %26 = arith.mulf %25, %24 : vector<64x128xf32>
    %27 = arith.maximumf %24, %26 : vector<64x128xf32>
    %28 = vector.shape_cast %27 : vector<64x128xf32> to vector<1x64x128xf32>
    %29 = arith.truncf %28 : vector<1x64x128xf32> to vector<1x64x128xbf16>
    %c0_23 = arith.constant 0 : index
    %c0_24 = arith.constant 0 : index
    %c0_25 = arith.constant 0 : index
    %30 = vector.load %arg3[%c0_23, %c0_24, %c0_25] : memref<1x64x128xbf16, #tpu.memory_space<vmem>>, vector<1x64x128xbf16>
    tpu.vector_store %arg3[%c0_23, %c0_24, %c0_25], %29 {strides = array<i32>} : memref<1x64x128xbf16, #tpu.memory_space<vmem>>, vector<1x64x128xbf16>,
    return
  }
  func.func @transform_0(%arg0: i32) -> (i32, i32, i32) {
    %c0_i32 = arith.constant 0 : i32
    %c0_i32_0 = arith.constant 0 : i32
    %c0_i32_1 = arith.constant 0 : i32
    return %arg0, %c0_i32, %c0_i32_0 : i32, i32, i32
  }
  func.func @transform_1(%arg0: i32) -> (i32, i32, i32) {
    %c0_i32 = arith.constant 0 : i32
    %c0_i32_0 = arith.constant 0 : i32
    %c0_i32_1 = arith.constant 0 : i32
    %c0_i32_2 = arith.constant 0 : i32
    return %c0_i32, %c0_i32_0, %c0_i32_1 : i32, i32, i32
  }
  func.func @transform_2(%arg0: i32) -> (i32, i32, i32) {
    %c0_i32 = arith.constant 0 : i32
    %c0_i32_0 = arith.constant 0 : i32
    %c0_i32_1 = arith.constant 0 : i32
    return %arg0, %c0_i32, %c0_i32_0 : i32, i32, i32
  }
}

module attributes {stable_mosaic.version = 11 : i64} {
  func.func @_conv_tap_kernel(%arg0: i32, %arg1: memref<1x32x512xbf16, #tpu.memory_space<vmem>>, %arg2: memref<4x512x256xbf16, #tpu.memory_space<vmem>>, %arg3: memref<1x16x256xf32, #tpu.memory_space<vmem>>) attributes {dimension_semantics = [#tpu.dimension_semantics<parallel>], iteration_bounds = array<i64: 2>, scalar_prefetch = 0 : i64, scratch_operands = 0 : i64, tpu.core_type = #tpu.core_type<tc>, window_params = [{transform_indices = @transform_0, window_bounds = array<i64: 1, 32, 512>}, {pipeline_mode = #tpu.pipeline_mode<synchronous>, transform_indices = @transform_1, window_bounds = array<i64: 4, 512, 256>}, {transform_indices = @transform_2, window_bounds = array<i64: 1, 16, 256>}]} {
    %cst = arith.constant 0.000000e+00 : f32
    %0 = vector.broadcast %cst : f32 to vector<16x256xf32>
    %c0 = arith.constant 0 : index
    %c0_0 = arith.constant 0 : index
    %c0_1 = arith.constant 0 : index
    %1 = vector.load %arg1[%c0, %c0_0, %c0_1] : memref<1x32x512xbf16, #tpu.memory_space<vmem>>, vector<1x16x512xbf16>
    %2 = vector.shape_cast %1 : vector<1x16x512xbf16> to vector<16x512xbf16>
    %c0_2 = arith.constant 0 : index
    %c0_3 = arith.constant 0 : index
    %c0_4 = arith.constant 0 : index
    %3 = vector.load %arg2[%c0_2, %c0_3, %c0_4] : memref<4x512x256xbf16, #tpu.memory_space<vmem>>, vector<1x512x256xbf16>
    %4 = vector.shape_cast %3 : vector<1x512x256xbf16> to vector<512x256xbf16>
    %cst_5 = arith.constant dense<0.000000e+00> : vector<16x256xf32>
    %5 = tpu.matmul %2, %4, %cst_5 {dimension_numbers = #tpu.dot_dimension_numbers<[1], [0], [0], [1], [0, 0, 1, 1], [], []>} : vector<16x512xbf16>, vector<512x256xbf16>, vector<16x256xf32> -> vector<16x256xf32>
    %6 = arith.addf %0, %5 : vector<16x256xf32>
    %c0_6 = arith.constant 0 : index
    %c1 = arith.constant 1 : index
    %c0_7 = arith.constant 0 : index
    %7 = vector.load %arg1[%c0_6, %c1, %c0_7] : memref<1x32x512xbf16, #tpu.memory_space<vmem>>, vector<1x16x512xbf16>
    %8 = vector.shape_cast %7 : vector<1x16x512xbf16> to vector<16x512xbf16>
    %c1_8 = arith.constant 1 : index
    %c0_9 = arith.constant 0 : index
    %c0_10 = arith.constant 0 : index
    %9 = vector.load %arg2[%c1_8, %c0_9, %c0_10] : memref<4x512x256xbf16, #tpu.memory_space<vmem>>, vector<1x512x256xbf16>
    %10 = vector.shape_cast %9 : vector<1x512x256xbf16> to vector<512x256xbf16>
    %cst_11 = arith.constant dense<0.000000e+00> : vector<16x256xf32>
    %11 = tpu.matmul %8, %10, %cst_11 {dimension_numbers = #tpu.dot_dimension_numbers<[1], [0], [0], [1], [0, 0, 1, 1], [], []>} : vector<16x512xbf16>, vector<512x256xbf16>, vector<16x256xf32> -> vector<16x256xf32>
    %12 = arith.addf %6, %11 : vector<16x256xf32>
    %c0_12 = arith.constant 0 : index
    %c5 = arith.constant 5 : index
    %c0_13 = arith.constant 0 : index
    %13 = vector.load %arg1[%c0_12, %c5, %c0_13] : memref<1x32x512xbf16, #tpu.memory_space<vmem>>, vector<1x16x512xbf16>
    %14 = vector.shape_cast %13 : vector<1x16x512xbf16> to vector<16x512xbf16>
    %c2 = arith.constant 2 : index
    %c0_14 = arith.constant 0 : index
    %c0_15 = arith.constant 0 : index
    %15 = vector.load %arg2[%c2, %c0_14, %c0_15] : memref<4x512x256xbf16, #tpu.memory_space<vmem>>, vector<1x512x256xbf16>
    %16 = vector.shape_cast %15 : vector<1x512x256xbf16> to vector<512x256xbf16>
    %cst_16 = arith.constant dense<0.000000e+00> : vector<16x256xf32>
    %17 = tpu.matmul %14, %16, %cst_16 {dimension_numbers = #tpu.dot_dimension_numbers<[1], [0], [0], [1], [0, 0, 1, 1], [], []>} : vector<16x512xbf16>, vector<512x256xbf16>, vector<16x256xf32> -> vector<16x256xf32>
    %18 = arith.addf %12, %17 : vector<16x256xf32>
    %c0_17 = arith.constant 0 : index
    %c6 = arith.constant 6 : index
    %c0_18 = arith.constant 0 : index
    %19 = vector.load %arg1[%c0_17, %c6, %c0_18] : memref<1x32x512xbf16, #tpu.memory_space<vmem>>, vector<1x16x512xbf16>
    %20 = vector.shape_cast %19 : vector<1x16x512xbf16> to vector<16x512xbf16>
    %c3 = arith.constant 3 : index
    %c0_19 = arith.constant 0 : index
    %c0_20 = arith.constant 0 : index
    %21 = vector.load %arg2[%c3, %c0_19, %c0_20] : memref<4x512x256xbf16, #tpu.memory_space<vmem>>, vector<1x512x256xbf16>
    %22 = vector.shape_cast %21 : vector<1x512x256xbf16> to vector<512x256xbf16>
    %cst_21 = arith.constant dense<0.000000e+00> : vector<16x256xf32>
    %23 = tpu.matmul %20, %22, %cst_21 {dimension_numbers = #tpu.dot_dimension_numbers<[1], [0], [0], [1], [0, 0, 1, 1], [], []>} : vector<16x512xbf16>, vector<512x256xbf16>, vector<16x256xf32> -> vector<16x256xf32>
    %24 = arith.addf %18, %23 : vector<16x256xf32>
    %cst_22 = arith.constant 2.000000e-01 : f32
    %25 = vector.broadcast %cst_22 : f32 to vector<16x256xf32>
    %26 = arith.mulf %25, %24 : vector<16x256xf32>
    %27 = arith.maximumf %24, %26 : vector<16x256xf32>
    %28 = vector.shape_cast %27 : vector<16x256xf32> to vector<1x16x256xf32>
    %c0_23 = arith.constant 0 : index
    %c0_24 = arith.constant 0 : index
    %c0_25 = arith.constant 0 : index
    %29 = vector.load %arg3[%c0_23, %c0_24, %c0_25] : memref<1x16x256xf32, #tpu.memory_space<vmem>>, vector<1x16x256xf32>
    tpu.vector_store %arg3[%c0_23, %c0_24, %c0_25], %28 {strides = array<i32>} : memref<1x16x256xf32, #tpu.memory_space<vmem>>, vector<1x16x256xf32>,
    return
  }
  func.func @transform_0(%arg0: i32) -> (i32, i32, i32) {
    %c0_i32 = arith.constant 0 : i32
    %c0_i32_0 = arith.constant 0 : i32
    %c0_i32_1 = arith.constant 0 : i32
    return %arg0, %c0_i32, %c0_i32_0 : i32, i32, i32
  }
  func.func @transform_1(%arg0: i32) -> (i32, i32, i32) {
    %c0_i32 = arith.constant 0 : i32
    %c0_i32_0 = arith.constant 0 : i32
    %c0_i32_1 = arith.constant 0 : i32
    %c0_i32_2 = arith.constant 0 : i32
    return %c0_i32, %c0_i32_0, %c0_i32_1 : i32, i32, i32
  }
  func.func @transform_2(%arg0: i32) -> (i32, i32, i32) {
    %c0_i32 = arith.constant 0 : i32
    %c0_i32_0 = arith.constant 0 : i32
    %c0_i32_1 = arith.constant 0 : i32
    return %arg0, %c0_i32, %c0_i32_0 : i32, i32, i32
  }
}

module attributes {stable_mosaic.version = 11 : i64} {
  func.func @_matmul_bias_kernel(%arg0: i32, %arg1: memref<2x2304xbf16, #tpu.memory_space<vmem>>, %arg2: memref<2304x128xbf16, #tpu.memory_space<vmem>>, %arg3: memref<1x128xf32, #tpu.memory_space<vmem>>, %arg4: memref<2x128xf32, #tpu.memory_space<vmem>>) attributes {dimension_semantics = [#tpu.dimension_semantics<arbitrary>], iteration_bounds = array<i64: 1>, scalar_prefetch = 0 : i64, scratch_operands = 0 : i64, tpu.core_type = #tpu.core_type<tc>, window_params = [{transform_indices = @transform_0, window_bounds = array<i64: 2, 2304>}, {pipeline_mode = #tpu.pipeline_mode<synchronous>, transform_indices = @transform_1, window_bounds = array<i64: 2304, 128>}, {pipeline_mode = #tpu.pipeline_mode<synchronous>, transform_indices = @transform_2, window_bounds = array<i64: 1, 128>}, {transform_indices = @transform_3, window_bounds = array<i64: 2, 128>}]} {
    %c0 = arith.constant 0 : index
    %c0_0 = arith.constant 0 : index
    %0 = vector.load %arg1[%c0, %c0_0] : memref<2x2304xbf16, #tpu.memory_space<vmem>>, vector<2x2304xbf16>
    %c0_1 = arith.constant 0 : index
    %c0_2 = arith.constant 0 : index
    %1 = vector.load %arg2[%c0_1, %c0_2] : memref<2304x128xbf16, #tpu.memory_space<vmem>>, vector<2304x128xbf16>
    %cst = arith.constant dense<0.000000e+00> : vector<2x128xf32>
    %2 = tpu.matmul %0, %1, %cst {dimension_numbers = #tpu.dot_dimension_numbers<[1], [0], [0], [1], [0, 0, 1, 1], [], []>} : vector<2x2304xbf16>, vector<2304x128xbf16>, vector<2x128xf32> -> vector<2x128xf32>
    %c0_3 = arith.constant 0 : index
    %c0_4 = arith.constant 0 : index
    %3 = vector.load %arg3[%c0_3, %c0_4] : memref<1x128xf32, #tpu.memory_space<vmem>>, vector<1x128xf32>
    %4 = vector.broadcast %3 : vector<1x128xf32> to vector<2x128xf32>
    %5 = arith.addf %2, %4 : vector<2x128xf32>
    %c0_5 = arith.constant 0 : index
    %c0_6 = arith.constant 0 : index
    %6 = vector.load %arg4[%c0_5, %c0_6] : memref<2x128xf32, #tpu.memory_space<vmem>>, vector<2x128xf32>
    tpu.vector_store %arg4[%c0_5, %c0_6], %5 {strides = array<i32>} : memref<2x128xf32, #tpu.memory_space<vmem>>, vector<2x128xf32>,
    return
  }
  func.func @transform_0(%arg0: i32) -> (i32, i32) {
    %c0_i32 = arith.constant 0 : i32
    %c0_i32_0 = arith.constant 0 : i32
    return %arg0, %c0_i32 : i32, i32
  }
  func.func @transform_1(%arg0: i32) -> (i32, i32) {
    %c0_i32 = arith.constant 0 : i32
    %c0_i32_0 = arith.constant 0 : i32
    %c0_i32_1 = arith.constant 0 : i32
    return %c0_i32, %c0_i32_0 : i32, i32
  }
  func.func @transform_2(%arg0: i32) -> (i32, i32) {
    %c0_i32 = arith.constant 0 : i32
    %c0_i32_0 = arith.constant 0 : i32
    %c0_i32_1 = arith.constant 0 : i32
    return %c0_i32, %c0_i32_0 : i32, i32
  }
  func.func @transform_3(%arg0: i32) -> (i32, i32) {
    %c0_i32 = arith.constant 0 : i32
    %c0_i32_0 = arith.constant 0 : i32
    return %arg0, %c0_i32 : i32, i32
  }
}

</mosaic_0001>

<llo_original>
// kernel: discriminator_forward.4
$region0: #{discriminator_forward.4}
  #allocation0 [shape = 'u32[]', space=smem, size = 0x4, offset = 0x4, fixed_abs, tag = 'smem constant byte address 0x4 - core index']
  #allocation1 [shape = 'u32[144,128]{1,0:T(1,128)}', space=vmem, size = 0x12000, scoped, tag = 'internal scratch']
  %s0 = inlined_call_operand.vmem [shape: bf16[2,256,8], index: 0, kind: input, shape index: {}]
  %s1 = inlined_call_operand.vmem [shape: bf16[4,8,64], index: 1, kind: input, shape index: {}]
  %s2 = inlined_call_operand.vmem [shape: bf16[2,224,64], index: 2, kind: output, shape index: {}]
  %s3 = sld [smem:[#allocation0]]
  $region41: #{discriminator_forward.4} parent=0
    _
  %s5 = ssub.s32 1, %s3
  %s6 = scalar_select 0, %s5, %s3
  loop: start=0, step=1, limit=4
  $region2: #{discriminator_forward.4} parent=0 // loop_pre_header
    _
  $region3: #{discriminator_forward.4} parent=0 // loop_header
    %s8 = sphi 0, %s12
    %p9 = scmp.ge.s32.totalorder %s8, 4
    %s18 = sphi 0, %s20
    %s21 = sphi 0, %s18
    %s22 = sphi 0, %s21
    %s38 = sphi 0, %s22
    %s42 = sphi 0, %s42
    %s44 = sphi 0, %s42
    %s45 = sphi 0, %s44
    %s59 = sphi 0, %s45
    %s65 = sphi 0, %s67
    %s68 = sphi 0, %s65
    %s69 = sphi 0, %s68
    %s85 = sphi 0, %s69
  $region4: #{discriminator_forward.4} parent=0 // loop_header_branch
    %11 = sbr.rel (%p9) target = $region8
  $region5: #{discriminator_forward.4} parent=0 // loop_body
    %s13 = ssub.s32 %s8, 1
    %s14 = ssub.s32 %s8, 2
    %s15 = sadd.s32 %s8, 1
    %s16 = ssub.s32 %s8, %s15
    %p17 = scmp.eq.s32.totalorder %s16, 0
    %s19 = sadd.s32 %s18, 1
    %s20 = scalar_select %p17, %s18, %s19
    %p23 = pneg %p17
    %p24 = scmp.eq.s32.totalorder %s8, 1
    %p25 = por %p23, %p24
    %p26 = scmp.ne.s32.totalorder %s18, %s21
    %p27 = scmp.eq.s32.totalorder %s8, 0
    %p28 = por %p26, %p27
    %p29 = scmp.ne.s32.totalorder %s18, %s21
    %p30 = scmp.eq.s32.totalorder %s13, 1
    %p31 = por %p29, %p30
    %p32 = scmp.ne.s32.totalorder %s21, %s22
    %p33 = scmp.eq.s32.totalorder %s13, 0
    %p34 = por %p32, %p33
    %p35 = scmp.ne.s32.totalorder %s21, %s22
    %p36 = scmp.eq.s32.totalorder %s14, 1
    %p37 = por %p35, %p36
    %p39 = scmp.ne.s32.totalorder %s22, %s38
    %p40 = scmp.eq.s32.totalorder %s14, 0
    %p41 = por %p39, %p40
    %s43 = sadd.s32 %s42, 1
    %p46 = scmp.eq.s32.totalorder %s8, 1
    %p47 = scmp.ne.s32.totalorder %s42, %s44
    %p48 = scmp.eq.s32.totalorder %s8, 0
    %p49 = por %p47, %p48
    %p50 = scmp.ne.s32.totalorder %s42, %s44
    %p51 = scmp.eq.s32.totalorder %s13, 1
    %p52 = por %p50, %p51
    %p53 = scmp.ne.s32.totalorder %s44, %s45
    %p54 = scmp.eq.s32.totalorder %s13, 0
    %p55 = por %p53, %p54
    %p56 = scmp.ne.s32.totalorder %s44, %s45
    %p57 = scmp.eq.s32.totalorder %s14, 1
    %p58 = por %p56, %p57
    %p60 = scmp.ne.s32.totalorder %s45, %s59
    %p61 = scmp.eq.s32.totalorder %s14, 0
    %p62 = por %p60, %p61
    %s63 = ssub.s32 %s8, %s15
    %p64 = scmp.eq.s32.totalorder %s63, 0
    %s66 = sadd.s32 %s65, 1
    %s67 = scalar_select %p64, %s65, %s66
    %p70 = pneg %p64
    %p71 = scmp.eq.s32.totalorder %s8, 1
    %p72 = por %p70, %p71
    %p73 = scmp.ne.s32.totalorder %s65, %s68
    %p74 = scmp.eq.s32.totalorder %s8, 0
    %p75 = por %p73, %p74
    %p76 = scmp.ne.s32.totalorder %s65, %s68
    %p77 = scmp.eq.s32.totalorder %s13, 1
    %p78 = por %p76, %p77
    %p79 = scmp.ne.s32.totalorder %s68, %s69
    %p80 = scmp.eq.s32.totalorder %s13, 0
    %p81 = por %p79, %p80
    %p82 = scmp.ne.s32.totalorder %s68, %s69
    %p83 = scmp.eq.s32.totalorder %s14, 1
    %p84 = por %p82, %p83
    %p86 = scmp.ne.s32.totalorder %s69, %s85
    %p87 = scmp.eq.s32.totalorder %s14, 0
    %p88 = por %p86, %p87
    %p89 = scmp.le.s32.totalorder 1, %s8
    %p90 = scmp.lt.s32.totalorder %s8, 3
    %p91 = pnand %p89, %p90
    %p92 = pneg %p91
    // Predicated region
    $region9: #{discriminator_forward.4} parent=5 // pred_check
      _
    $region10: #{discriminator_forward.4} parent=5 // pred_check_branch
      %94 = sbr.rel (%p91) target = $region12
    $region11: #{discriminator_forward.4} parent=5 // pred_region
      %s95 = ssub.s32 %s8, 1
      // Predicated region
      $region13: #{discriminator_forward.4} parent=11 // pred_check
        %p96 = pneg %p55
      $region14: #{discriminator_forward.4} parent=11 // pred_check_branch
        %98 = sbr.rel (%p96) target = $region16
      $region15: #{discriminator_forward.4} parent=11 // pred_region
        _
      $region16: #{discriminator_forward.4} parent=11 // pred_fallthru
        _
    $region12: #{discriminator_forward.4} parent=5 // pred_fallthru
      _
    %p99 = scmp.lt.s32.totalorder %s8, 2
    // Predicated region
    $region17: #{discriminator_forward.4} parent=5 // pred_check
      %p100 = pneg %p99
    $region18: #{discriminator_forward.4} parent=5 // pred_check_branch
      %102 = sbr.rel (%p100) target = $region20
    $region19: #{discriminator_forward.4} parent=5 // pred_region
      // Predicated region
      $region21: #{discriminator_forward.4} parent=19 // pred_check
        %p103 = pneg %p28
      $region22: #{discriminator_forward.4} parent=19 // pred_check_branch
        %105 = sbr.rel (%p103) target = $region24
      $region23: #{discriminator_forward.4} parent=19 // pred_region
        %p106 = scmp.lt.s32.totalorder %s8, 1
        %s107 = scalar_select %p106, %s8, 1
        %s108 = smul.addr %s107, 32
        %s109 = smul.addr %s108, 4
        %s110 = scalar_lea.vmem %s0, %s109
      $region24: #{discriminator_forward.4} parent=19 // pred_fallthru
        _
    $region20: #{discriminator_forward.4} parent=5 // pred_fallthru
      _
    %p111 = scmp.le.s32.totalorder 1, %s8
    %p112 = scmp.lt.s32.totalorder %s8, 3
    %p113 = pnand %p111, %p112
    %p114 = pneg %p113
    // Predicated region
    $region25: #{discriminator_forward.4} parent=5 // pred_check
      _
    $region26: #{discriminator_forward.4} parent=5 // pred_check_branch
      %116 = sbr.rel (%p113) target = $region28
    $region27: #{discriminator_forward.4} parent=5 // pred_region
      %s117 = ssub.s32 %s8, 1
      %p118 = scmp.lt.s32.totalorder %s13, 1
      %s119 = scalar_select %p118, %s13, 1
      %s120 = smul.addr %s119, 32
      %s121 = smul.addr %s120, 4
      %s122 = scalar_lea.vmem %s0, %s121
      %p123 = pneg %p34
      %p124 = pneg %p31
      %p125 = pneg %p55
      %p126 = pneg %p52
      %p127 = pneg %p81
      %p128 = pneg %p78
      %p129 = scmp.lt.s32.totalorder %s13, 1
      %s130 = scalar_select %p129, %s13, 1
      %s131 = smul.addr %s130, 28
      %s132 = smul.addr %s131, 4
      %s133 = scalar_lea.vmem %s2, %s132
      %p134 = scmp.lt.s32.totalorder %s13, 1
      %s135 = scalar_select %p134, %s13, 1
      %s136 = smul.addr %s135, 32
      %s137 = smul.addr %s136, 4
      %s138 = scalar_lea.vmem %s0, %s137
      %p139 = scmp.lt.s32.totalorder %s13, 1
      %s140 = scalar_select %p139, %s13, 1
      %s141 = smul.addr %s140, 28
      %s142 = smul.addr %s141, 4
      %s143 = scalar_lea.vmem %s2, %s142
      %v145 = vld [vmem:[%s138] sm:$0xf]
      %v146 = vld [vmem:[%s138 + $0x4] sm:$0xf]
      %v147 = vld [vmem:[%s138 + $0x8] sm:$0xf]
      %v148 = vld [vmem:[%s138 + $0xc] sm:$0xf]
      %v149 = vld [vmem:[%s138 + $0x10] sm:$0xf]
      %v150 = vld [vmem:[%s138 + $0x14] sm:$0xf]
      %v151 = vld [vmem:[%s138 + $0x18] sm:$0xf]
      %v152 = vld [vmem:[%s138 + $0x1c] sm:$0xf]
      %v153 = vld [vmem:[%s138 + $0x20] sm:$0xf]
      %v154 = vld [vmem:[%s138 + $0x24] sm:$0xf]
      %v155 = vld [vmem:[%s138 + $0x28] sm:$0xf]
      %v156 = vld [vmem:[%s138 + $0x2c] sm:$0xf]
      %v157 = vld [vmem:[%s138 + $0x30] sm:$0xf]
      %v158 = vld [vmem:[%s138 + $0x34] sm:$0xf]
      %v159 = vld [vmem:[%s138 + $0x38] sm:$0xf]
      %v160 = vld [vmem:[%s138 + $0x3c] sm:$0xf]
      %v161 = vld [vmem:[%s138 + $0x40] sm:$0xf]
      %v162 = vld [vmem:[%s138 + $0x44] sm:$0xf]
      %v163 = vld [vmem:[%s138 + $0x48] sm:$0xf]
      %v164 = vld [vmem:[%s138 + $0x4c] sm:$0xf]
      %v165 = vld [vmem:[%s138 + $0x50] sm:$0xf]
      %v166 = vld [vmem:[%s138 + $0x54] sm:$0xf]
      %v167 = vld [vmem:[%s138 + $0x58] sm:$0xf]
      %v168 = vld [vmem:[%s138 + $0x5c] sm:$0xf]
      %v169 = vld [vmem:[%s138 + $0x60] sm:$0xf]
      %v170 = vld [vmem:[%s138 + $0x64] sm:$0xf]
      %v171 = vld [vmem:[%s138 + $0x68] sm:$0xf]
      %v172 = vld [vmem:[%s138 + $0x6c] sm:$0xf]
      %v173 = vld [vmem:[%s1] sm:$0xf]
      %v174 = vld [vmem:[%s138 + $0x70] sm:$0x1]
      %s175 = scalar_lea.vmem %s1, 4
      %v176 = vld [vmem:[%s175] sm:$0xf]
      %v206 = vunpack.c.l.b16 %v145
      %v207 = vunpack.c.l.b16 %v146
      %v208 = vunpack.c.l.b16 %v147
      %v209 = vunpack.c.l.b16 %v148
      %v210 = vunpack.c.l.b16 %v149
      %v211 = vunpack.c.l.b16 %v150
      %v212 = vunpack.c.l.b16 %v151
      %v213 = vunpack.c.l.b16 %v152
      %v214 = vunpack.c.l.b16 %v153
      %v215 = vunpack.c.l.b16 %v154
      %v216 = vunpack.c.l.b16 %v155
      %v217 = vunpack.c.l.b16 %v156
      %v218 = vunpack.c.l.b16 %v157
      %v219 = vunpack.c.l.b16 %v158
      %v220 = vunpack.c.l.b16 %v159
      %v221 = vunpack.c.l.b16 %v160
      %v222 = vunpack.c.l.b16 %v161
      %v223 = vunpack.c.l.b16 %v162
      %v224 = vunpack.c.l.b16 %v163
      %v225 = vunpack.c.l.b16 %v164
      %v226 = vunpack.c.l.b16 %v165
      %v227 = vunpack.c.l.b16 %v166
      %v228 = vunpack.c.l.b16 %v167
      %v229 = vunpack.c.l.b16 %v168
      %v230 = vunpack.c.l.b16 %v169
      %v231 = vunpack.c.l.b16 %v170
      %v232 = vunpack.c.l.b16 %v171
      %v233 = vunpack.c.l.b16 %v172
      %v234 = vunpack.c.l.b16 %v174
      %v235 = vpack.c.b16 %v207, %v206
      %v236 = vpack.c.b16 %v209, %v208
      %v237 = vpack.c.b16 %v211, %v210
      %v238 = vpack.c.b16 %v213, %v212
      %v239 = vpack.c.b16 %v215, %v214
      %v240 = vpack.c.b16 %v217, %v216
      %v241 = vpack.c.b16 %v219, %v218
      %v242 = vpack.c.b16 %v221, %v220
      %v243 = vpack.c.b16 %v223, %v222
      %v244 = vpack.c.b16 %v225, %v224
      %v245 = vpack.c.b16 %v227, %v226
      %v246 = vpack.c.b16 %v229, %v228
      %v247 = vpack.c.b16 %v231, %v230
      %v248 = vpack.c.b16 %v233, %v232
      %v249 = vpack.c.b16 %v234, %v234
      %vm250 = vsmask.f32 7424
      %v252 = vshrl.u32 %v235, 16
      %v254 = vshll.u32 %v235, 16
      %v256 = vrot.slane %v254, 1
      %v257 = vor.u32 %v252, %v256
      %v259 = vshll.u32 %v236, 16
      %v261 = vrot.slane %v259, 1
      %v262 = vsel %vm250, %v257, %v261
      %v263 = vshrl.u32 %v236, 16
      %v265 = vor.u32 %v263, %v261
      %v267 = vshll.u32 %v237, 16
      %v269 = vrot.slane %v267, 1
      %v270 = vsel %vm250, %v265, %v269
      %v271 = vshrl.u32 %v237, 16
      %v273 = vor.u32 %v271, %v269
      %v275 = vshll.u32 %v238, 16
      %v277 = vrot.slane %v275, 1
      %v278 = vsel %vm250, %v273, %v277
      %v279 = vshrl.u32 %v238, 16
      %v281 = vor.u32 %v279, %v277
      %v283 = vshll.u32 %v239, 16
      %v285 = vrot.slane %v283, 1
      %v286 = vsel %vm250, %v281, %v285
      %v287 = vshrl.u32 %v239, 16
      %v289 = vor.u32 %v287, %v285
      %v291 = vshll.u32 %v240, 16
      %v293 = vrot.slane %v291, 1
      %v294 = vsel %vm250, %v289, %v293
      %v295 = vshrl.u32 %v240, 16
      %v297 = vor.u32 %v295, %v293
      %v299 = vshll.u32 %v241, 16
      %v301 = vrot.slane %v299, 1
      %v302 = vsel %vm250, %v297, %v301
      %v303 = vshrl.u32 %v241, 16
      %v305 = vor.u32 %v303, %v301
      %v307 = vshll.u32 %v242, 16
      %v309 = vrot.slane %v307, 1
      %v310 = vsel %vm250, %v305, %v309
      %v311 = vshrl.u32 %v242, 16
      %v313 = vor.u32 %v311, %v309
      %v315 = vshll.u32 %v243, 16
      %v317 = vrot.slane %v315, 1
      %v318 = vsel %vm250, %v313, %v317
      %v319 = vshrl.u32 %v243, 16
      %v321 = vor.u32 %v319, %v317
      %v323 = vshll.u32 %v244, 16
      %v325 = vrot.slane %v323, 1
      %v326 = vsel %vm250, %v321, %v325
      %v327 = vshrl.u32 %v244, 16
      %v329 = vor.u32 %v327, %v325
      %v331 = vshll.u32 %v245, 16
      %v333 = vrot.slane %v331, 1
      %v334 = vsel %vm250, %v329, %v333
      %v335 = vshrl.u32 %v245, 16
      %v337 = vor.u32 %v335, %v333
      %v339 = vshll.u32 %v246, 16
      %v341 = vrot.slane %v339, 1
      %v342 = vsel %vm250, %v337, %v341
      %v343 = vshrl.u32 %v246, 16
      %v345 = vor.u32 %v343, %v341
      %v347 = vshll.u32 %v247, 16
      %v349 = vrot.slane %v347, 1
      %v350 = vsel %vm250, %v345, %v349
      %v351 = vshrl.u32 %v247, 16
      %v353 = vor.u32 %v351, %v349
      %v355 = vshll.u32 %v248, 16
      %v357 = vrot.slane %v355, 1
      %v358 = vsel %vm250, %v353, %v357
      %v359 = vshrl.u32 %v248, 16
      %v361 = vor.u32 %v359, %v357
      %v363 = vshll.u32 %v249, 16
      %v365 = vrot.slane %v363, 1
      %v366 = vsel %vm250, %v361, %v365
      %vm367 = vcmask 64512
      %v369 = vsel %vm367, %v262, 0
      %v372 = vsel %vm367, %v270, 0
      %v375 = vsel %vm367, %v278, 0
      %v378 = vsel %vm367, %v286, 0
      %v381 = vsel %vm367, %v294, 0
      %v384 = vsel %vm367, %v302, 0
      %v387 = vsel %vm367, %v310, 0
      %v390 = vsel %vm367, %v318, 0
      %v393 = vsel %vm367, %v326, 0
      %v396 = vsel %vm367, %v334, 0
      %v399 = vsel %vm367, %v342, 0
      %v402 = vsel %vm367, %v350, 0
      %v405 = vsel %vm367, %v358, 0
      %v408 = vsel %vm367, %v366, 0
      %vm410 = vcmask 1043456
      %v412 = vsel %vm410, %v176, 0
      %414 = vmatprep.subr.bf16.mxu0 0
      %415 = vmatpush1.bf16.msra.mxu0 %v412
      %416 = vmatprep.subr.bf16.mxu0 0
      %417 = vmatpush1.bf16.msra.mxu0 0
      %418 = vmatprep.subr.bf16.mxu0 0
      %419 = vmatpush1.bf16.msra.mxu0 0
      %420 = vmatprep.subr.bf16.mxu0 0
      %421 = vmatpush1.bf16.msra.mxu0 0
      %422 = vmatprep.subr.bf16.mxu0 0
      %423 = vmatpush1.bf16.msra.mxu0 0
      %424 = vmatprep.subr.bf16.mxu0 0
      %425 = vmatpush1.bf16.msra.mxu0 0
      %426 = vmatprep.subr.bf16.mxu0 0
      %427 = vmatpush1.bf16.msra.mxu0 0
      %428 = vmatprep.subr.bf16.mxu0 0
      %429 = vmatpush1.bf16.msra.mxu0 0
      %430 = vmatprep.subr.bf16.mxu0 0
      %431 = vmatpush1.bf16.msra.mxu0 0
      %432 = vmatprep.subr.bf16.mxu0 0
      %433 = vmatpush1.bf16.msra.mxu0 0
      %434 = vmatprep.subr.bf16.mxu0 0
      %435 = vmatpush1.bf16.msra.mxu0 0
      %436 = vmatprep.subr.bf16.mxu0 0
      %437 = vmatpush1.bf16.msra.mxu0 0
      %438 = vmatprep.subr.bf16.mxu0 0
      %439 = vmatpush1.bf16.msra.mxu0 0
      %440 = vmatprep.subr.bf16.mxu0 0
      %441 = vmatpush1.bf16.msra.mxu0 0
      %442 = vmatprep.subr.bf16.mxu0 0
      %443 = vmatpush1.bf16.msra.mxu0 0
      %444 = vmatprep.subr.bf16.mxu0 0
      %445 = vmatpush1.bf16.msra.mxu0 0
      %446 = vmatprep.mubr.bf16.mxu0 0
      %447 = vmatmul.mubr.bf16.gmra.mrb[0].mxu0 %v369
      %v448 = vpop.f32.mrb[0].mxu0
      %v449 = vadd.f32 0.0, %v448
      %v450 = vpop.f32.mrb[0].mxu0
      %v451 = vpop.f32.mrb[0].mxu0
      %v452 = vadd.f32 0.0, %v451
      %v453 = vpop.f32.mrb[0].mxu0
      %454 = vmatprep.mubr.bf16.mxu0 0
      %455 = vmatmul.mubr.bf16.gmra.mrb[0].mxu0 %v372
      %v456 = vpop.f32.mrb[0].mxu0
      %v457 = vadd.f32 0.0, %v456
      %v458 = vpop.f32.mrb[0].mxu0
      %v459 = vpop.f32.mrb[0].mxu0
      %v460 = vadd.f32 0.0, %v459
      %v461 = vpop.f32.mrb[0].mxu0
      %462 = vmatprep.mubr.bf16.mxu0 0
      %463 = vmatmul.mubr.bf16.gmra.mrb[0].mxu0 %v375
      %v464 = vpop.f32.mrb[0].mxu0
      %v465 = vadd.f32 0.0, %v464
      %v466 = vpop.f32.mrb[0].mxu0
      %v467 = vpop.f32.mrb[0].mxu0
      %v468 = vadd.f32 0.0, %v467
      %v469 = vpop.f32.mrb[0].mxu0
      %470 = vmatprep.mubr.bf16.mxu0 0
      %471 = vmatmul.mubr.bf16.gmra.mrb[0].mxu0 %v378
      %v472 = vpop.f32.mrb[0].mxu0
      %v473 = vadd.f32 0.0, %v472
      %v474 = vpop.f32.mrb[0].mxu0
      %v475 = vpop.f32.mrb[0].mxu0
      %v476 = vadd.f32 0.0, %v475
      %v477 = vpop.f32.mrb[0].mxu0
      %478 = vmatprep.mubr.bf16.mxu0 0
      %479 = vmatmul.mubr.bf16.gmra.mrb[0].mxu0 %v381
      %v480 = vpop.f32.mrb[0].mxu0
      %v481 = vadd.f32 0.0, %v480
      %v482 = vpop.f32.mrb[0].mxu0
      %v483 = vpop.f32.mrb[0].mxu0
      %v484 = vadd.f32 0.0, %v483
      %v485 = vpop.f32.mrb[0].mxu0
      %486 = vmatprep.mubr.bf16.mxu0 0
      %487 = vmatmul.mubr.bf16.gmra.mrb[0].mxu0 %v384
      %v488 = vpop.f32.mrb[0].mxu0
      %v489 = vadd.f32 0.0, %v488
      %v490 = vpop.f32.mrb[0].mxu0
      %v491 = vpop.f32.mrb[0].mxu0
      %v492 = vadd.f32 0.0, %v491
      %v493 = vpop.f32.mrb[0].mxu0
      %494 = vmatprep.mubr.bf16.mxu0 0
      %495 = vmatmul.mubr.bf16.gmra.mrb[0].mxu0 %v387
      %v496 = vpop.f32.mrb[0].mxu0
      %v497 = vadd.f32 0.0, %v496
      %v498 = vpop.f32.mrb[0].mxu0
      %v499 = vpop.f32.mrb[0].mxu0
      %v500 = vadd.f32 0.0, %v499
      %v501 = vpop.f32.mrb[0].mxu0
      %502 = vmatprep.mubr.bf16.mxu0 0
      %503 = vmatmul.mubr.bf16.gmra.mrb[0].mxu0 %v390
      %v504 = vpop.f32.mrb[0].mxu0
      %v505 = vadd.f32 0.0, %v504
      %v506 = vpop.f32.mrb[0].mxu0
      %v507 = vpop.f32.mrb[0].mxu0
      %v508 = vadd.f32 0.0, %v507
      %v509 = vpop.f32.mrb[0].mxu0
      %510 = vmatprep.mubr.bf16.mxu0 0
      %511 = vmatmul.mubr.bf16.gmra.mrb[0].mxu0 %v393
      %v512 = vpop.f32.mrb[0].mxu0
      %v513 = vadd.f32 0.0, %v512
      %v514 = vpop.f32.mrb[0].mxu0
      %v515 = vpop.f32.mrb[0].mxu0
      %v516 = vadd.f32 0.0, %v515
      %v517 = vpop.f32.mrb[0].mxu0
      %518 = vmatprep.mubr.bf16.mxu0 0
      %519 = vmatmul.mubr.bf16.gmra.mrb[0].mxu0 %v396
      %v520 = vpop.f32.mrb[0].mxu0
      %v521 = vadd.f32 0.0, %v520
      %v522 = vpop.f32.mrb[0].mxu0
      %v523 = vpop.f32.mrb[0].mxu0
      %v524 = vadd.f32 0.0, %v523
      %v525 = vpop.f32.mrb[0].mxu0
      %526 = vmatprep.mubr.bf16.mxu0 0
      %527 = vmatmul.mubr.bf16.gmra.mrb[0].mxu0 %v399
      %v528 = vpop.f32.mrb[0].mxu0
      %v529 = vadd.f32 0.0, %v528
      %v530 = vpop.f32.mrb[0].mxu0
      %v531 = vpop.f32.mrb[0].mxu0
      %v532 = vadd.f32 0.0, %v531
      %v533 = vpop.f32.mrb[0].mxu0
      %534 = vmatprep.mubr.bf16.mxu0 0
      %535 = vmatmul.mubr.bf16.gmra.mrb[0].mxu0 %v402
      %v536 = vpop.f32.mrb[0].mxu0
      %v537 = vadd.f32 0.0, %v536
      %v538 = vpop.f32.mrb[0].mxu0
      %v539 = vpop.f32.mrb[0].mxu0
      %v540 = vadd.f32 0.0, %v539
      %v541 = vpop.f32.mrb[0].mxu0
      %542 = vmatprep.mubr.bf16.mxu0 0
      %543 = vmatmul.mubr.bf16.gmra.mrb[0].mxu0 %v405
      %v544 = vpop.f32.mrb[0].mxu0
      %v545 = vadd.f32 0.0, %v544
      %v546 = vpop.f32.mrb[0].mxu0
      %v547 = vpop.f32.mrb[0].mxu0
      %v548 = vadd.f32 0.0, %v547
      %v549 = vpop.f32.mrb[0].mxu0
      %550 = vmatprep.mubr.bf16.mxu0 0
      %551 = vmatmul.mubr.bf16.gmra.mrb[0].mxu0 %v408
      %v552 = vpop.f32.mrb[0].mxu0
      %v553 = vadd.f32 0.0, %v552
      %v554 = vpop.f32.mrb[0].mxu0
      %v555 = vpop.f32.mrb[0].mxu0
      %v556 = vadd.f32 0.0, %v555
      %v557 = vpop.f32.mrb[0].mxu0
      %558 = vdwg.mxu0
      %v559 = vsel %vm367, %v235, 0
      %v561 = vsel %vm367, %v236, 0
      %v563 = vsel %vm367, %v237, 0
      %v565 = vsel %vm367, %v238, 0
      %v567 = vsel %vm367, %v239, 0
      %v569 = vsel %vm367, %v240, 0
      %v571 = vsel %vm367, %v241, 0
      %v573 = vsel %vm367, %v242, 0
      %v575 = vsel %vm367, %v243, 0
      %v577 = vsel %vm367, %v244, 0
      %v579 = vsel %vm367, %v245, 0
      %v581 = vsel %vm367, %v246, 0
      %v583 = vsel %vm367, %v247, 0
      %v585 = vsel %vm367, %v248, 0
      %v588 = vsel %vm410, %v173, 0
      %590 = vmatprep.subr.bf16.mxu0 0
      %591 = vmatpush1.bf16.msra.mxu0 %v588
      %592 = vmatprep.subr.bf16.mxu0 0
      %593 = vmatpush1.bf16.msra.mxu0 0
      %594 = vmatprep.subr.bf16.mxu0 0
      %595 = vmatpush1.bf16.msra.mxu0 0
      %596 = vmatprep.subr.bf16.mxu0 0
      %597 = vmatpush1.bf16.msra.mxu0 0
      %598 = vmatprep.subr.bf16.mxu0 0
      %599 = vmatpush1.bf16.msra.mxu0 0
      %600 = vmatprep.subr.bf16.mxu0 0
      %601 = vmatpush1.bf16.msra.mxu0 0
      %602 = vmatprep.subr.bf16.mxu0 0
      %603 = vmatpush1.bf16.msra.mxu0 0
      %604 = vmatprep.subr.bf16.mxu0 0
      %605 = vmatpush1.bf16.msra.mxu0 0
      %606 = vmatprep.subr.bf16.mxu0 0
      %607 = vmatpush1.bf16.msra.mxu0 0
      %608 = vmatprep.subr.bf16.mxu0 0
      %609 = vmatpush1.bf16.msra.mxu0 0
      %610 = vmatprep.subr.bf16.mxu0 0
      %611 = vmatpush1.bf16.msra.mxu0 0
      %612 = vmatprep.subr.bf16.mxu0 0
      %613 = vmatpush1.bf16.msra.mxu0 0
      %614 = vmatprep.subr.bf16.mxu0 0
      %615 = vmatpush1.bf16.msra.mxu0 0
      %616 = vmatprep.subr.bf16.mxu0 0
      %617 = vmatpush1.bf16.msra.mxu0 0
      %618 = vmatprep.subr.bf16.mxu0 0
      %619 = vmatpush1.bf16.msra.mxu0 0
      %620 = vmatprep.subr.bf16.mxu0 0
      %621 = vmatpush1.bf16.msra.mxu0 0
      %622 = vmatprep.mubr.bf16.mxu0 0
      %623 = vmatmul.mubr.bf16.gmra.mrb[0].mxu0 %v559
      %v624 = vpop.f32.mrb[0].mxu0
      %v625 = vadd.f32 %v449, %v624
      %v626 = vpop.f32.mrb[0].mxu0
      %v627 = vpop.f32.mrb[0].mxu0
      %v628 = vadd.f32 %v452, %v627
      %v629 = vpop.f32.mrb[0].mxu0
      %630 = vmatprep.mubr.bf16.mxu0 0
      %631 = vmatmul.mubr.bf16.gmra.mrb[0].mxu0 %v561
      %v632 = vpop.f32.mrb[0].mxu0
      %v633 = vadd.f32 %v457, %v632
      %v634 = vpop.f32.mrb[0].mxu0
      %v635 = vpop.f32.mrb[0].mxu0
      %v636 = vadd.f32 %v460, %v635
      %v637 = vpop.f32.mrb[0].mxu0
      %638 = vmatprep.mubr.bf16.mxu0 0
      %639 = vmatmul.mubr.bf16.gmra.mrb[0].mxu0 %v563
      %v640 = vpop.f32.mrb[0].mxu0
      %v641 = vadd.f32 %v465, %v640
      %v642 = vpop.f32.mrb[0].mxu0
      %v643 = vpop.f32.mrb[0].mxu0
      %v644 = vadd.f32 %v468, %v643
      %v645 = vpop.f32.mrb[0].mxu0
      %646 = vmatprep.mubr.bf16.mxu0 0
      %647 = vmatmul.mubr.bf16.gmra.mrb[0].mxu0 %v565
      %v648 = vpop.f32.mrb[0].mxu0
      %v649 = vadd.f32 %v473, %v648
      %v650 = vpop.f32.mrb[0].mxu0
      %v651 = vpop.f32.mrb[0].mxu0
      %v652 = vadd.f32 %v476, %v651
      %v653 = vpop.f32.mrb[0].mxu0
      %654 = vmatprep.mubr.bf16.mxu0 0
      %655 = vmatmul.mubr.bf16.gmra.mrb[0].mxu0 %v567
      %v656 = vpop.f32.mrb[0].mxu0
      %v657 = vadd.f32 %v481, %v656
      %v658 = vpop.f32.mrb[0].mxu0
      %v659 = vpop.f32.mrb[0].mxu0
      %v660 = vadd.f32 %v484, %v659
      %v661 = vpop.f32.mrb[0].mxu0
      %662 = vmatprep.mubr.bf16.mxu0 0
      %663 = vmatmul.mubr.bf16.gmra.mrb[0].mxu0 %v569
      %v664 = vpop.f32.mrb[0].mxu0
      %v665 = vadd.f32 %v489, %v664
      %v666 = vpop.f32.mrb[0].mxu0
      %v667 = vpop.f32.mrb[0].mxu0
      %v668 = vadd.f32 %v492, %v667
      %v669 = vpop.f32.mrb[0].mxu0
      %670 = vmatprep.mubr.bf16.mxu0 0
      %671 = vmatmul.mubr.bf16.gmra.mrb[0].mxu0 %v571
      %v672 = vpop.f32.mrb[0].mxu0
      %v673 = vadd.f32 %v497, %v672
      %v674 = vpop.f32.mrb[0].mxu0
      %v675 = vpop.f32.mrb[0].mxu0
      %v676 = vadd.f32 %v500, %v675
      %v677 = vpop.f32.mrb[0].mxu0
      %678 = vmatprep.mubr.bf16.mxu0 0
      %679 = vmatmul.mubr.bf16.gmra.mrb[0].mxu0 %v573
      %v680 = vpop.f32.mrb[0].mxu0
      %v681 = vadd.f32 %v505, %v680
      %v682 = vpop.f32.mrb[0].mxu0
      %v683 = vpop.f32.mrb[0].mxu0
      %v684 = vadd.f32 %v508, %v683
      %v685 = vpop.f32.mrb[0].mxu0
      %686 = vmatprep.mubr.bf16.mxu0 0
      %687 = vmatmul.mubr.bf16.gmra.mrb[0].mxu0 %v575
      %v688 = vpop.f32.mrb[0].mxu0
      %v689 = vadd.f32 %v513, %v688
      %v690 = vpop.f32.mrb[0].mxu0
      %v691 = vpop.f32.mrb[0].mxu0
      %v692 = vadd.f32 %v516, %v691
      %v693 = vpop.f32.mrb[0].mxu0
      %694 = vmatprep.mubr.bf16.mxu0 0
      %695 = vmatmul.mubr.bf16.gmra.mrb[0].mxu0 %v577
      %v696 = vpop.f32.mrb[0].mxu0
      %v697 = vadd.f32 %v521, %v696
      %v698 = vpop.f32.mrb[0].mxu0
      %v699 = vpop.f32.mrb[0].mxu0
      %v700 = vadd.f32 %v524, %v699
      %v701 = vpop.f32.mrb[0].mxu0
      %702 = vmatprep.mubr.bf16.mxu0 0
      %703 = vmatmul.mubr.bf16.gmra.mrb[0].mxu0 %v579
      %v704 = vpop.f32.mrb[0].mxu0
      %v705 = vadd.f32 %v529, %v704
      %v706 = vpop.f32.mrb[0].mxu0
      %v707 = vpop.f32.mrb[0].mxu0
      %v708 = vadd.f32 %v532, %v707
      %v709 = vpop.f32.mrb[0].mxu0
      %710 = vmatprep.mubr.bf16.mxu0 0
      %711 = vmatmul.mubr.bf16.gmra.mrb[0].mxu0 %v581
      %v712 = vpop.f32.mrb[0].mxu0
      %v713 = vadd.f32 %v537, %v712
      %v714 = vpop.f32.mrb[0].mxu0
      %v715 = vpop.f32.mrb[0].mxu0
      %v716 = vadd.f32 %v540, %v715
      %v717 = vpop.f32.mrb[0].mxu0
      %718 = vmatprep.mubr.bf16.mxu0 0
      %719 = vmatmul.mubr.bf16.gmra.mrb[0].mxu0 %v583
      %v720 = vpop.f32.mrb[0].mxu0
      %v721 = vadd.f32 %v545, %v720
      %v722 = vpop.f32.mrb[0].mxu0
      %v723 = vpop.f32.mrb[0].mxu0
      %v724 = vadd.f32 %v548, %v723
      %v725 = vpop.f32.mrb[0].mxu0
      %726 = vmatprep.mubr.bf16.mxu0 0
      %727 = vmatmul.mubr.bf16.gmra.mrb[0].mxu0 %v585
      %v728 = vpop.f32.mrb[0].mxu0
      %v729 = vadd.f32 %v553, %v728
      %v730 = vpop.f32.mrb[0].mxu0
      %v731 = vpop.f32.mrb[0].mxu0
      %v732 = vadd.f32 %v556, %v731
      %v733 = vpop.f32.mrb[0].mxu0
      %734 = vdwg.mxu0
      %v735 = vld [vmem:[%s138 + $0x4] sm:$0x8]
      %v736 = vld [vmem:[%s138 + $0x8] sm:$0xf]
      %v737 = vld [vmem:[%s138 + $0xc] sm:$0xf]
      %v738 = vld [vmem:[%s138 + $0x10] sm:$0xf]
      %v739 = vld [vmem:[%s138 + $0x14] sm:$0xf]
      %v740 = vld [vmem:[%s138 + $0x18] sm:$0xf]
      %v741 = vld [vmem:[%s138 + $0x1c] sm:$0xf]
      %v742 = vld [vmem:[%s138 + $0x20] sm:$0xf]
      %v743 = vld [vmem:[%s138 + $0x24] sm:$0xf]
      %v744 = vld [vmem:[%s138 + $0x28] sm:$0xf]
      %v745 = vld [vmem:[%s138 + $0x2c] sm:$0xf]
      %v746 = vld [vmem:[%s138 + $0x30] sm:$0xf]
      %v747 = vld [vmem:[%s138 + $0x34] sm:$0xf]
      %v748 = vld [vmem:[%s138 + $0x38] sm:$0xf]
      %v749 = vld [vmem:[%s138 + $0x3c] sm:$0xf]
      %v750 = vld [vmem:[%s138 + $0x40] sm:$0xf]
      %v751 = vld [vmem:[%s138 + $0x44] sm:$0xf]
      %v752 = vld [vmem:[%s138 + $0x48] sm:$0xf]
      %v753 = vld [vmem:[%s138 + $0x4c] sm:$0xf]
      %v754 = vld [vmem:[%s138 + $0x50] sm:$0xf]
      %v755 = vld [vmem:[%s138 + $0x54] sm:$0xf]
      %v756 = vld [vmem:[%s138 + $0x58] sm:$0xf]
      %v757 = vld [vmem:[%s138 + $0x5c] sm:$0xf]
      %v758 = vld [vmem:[%s138 + $0x60] sm:$0xf]
      %v759 = vld [vmem:[%s138 + $0x64] sm:$0xf]
      %v760 = vld [vmem:[%s138 + $0x68] sm:$0xf]
      %v761 = vld [vmem:[%s138 + $0x6c] sm:$0xf]
      %v762 = vld [vmem:[%s138 + $0x70] sm:$0xf]
      %v763 = vld [vmem:[%s138 + $0x74] sm:$0xf]
      %s764 = scalar_lea.vmem %s1, 8
      %v765 = vld [vmem:[%s764] sm:$0xf]
      %v795 = vunpack.c.l.b16 %v735
      %v796 = vunpack.c.l.b16 %v736
      %v797 = vunpack.c.l.b16 %v737
      %v798 = vunpack.c.l.b16 %v738
      %v799 = vunpack.c.l.b16 %v739
      %v800 = vunpack.c.l.b16 %v740
      %v801 = vunpack.c.l.b16 %v741
      %v802 = vunpack.c.l.b16 %v742
      %v803 = vunpack.c.l.b16 %v743
      %v804 = vunpack.c.l.b16 %v744
      %v805 = vunpack.c.l.b16 %v745
      %v806 = vunpack.c.l.b16 %v746
      %v807 = vunpack.c.l.b16 %v747
      %v808 = vunpack.c.l.b16 %v748
      %v809 = vunpack.c.l.b16 %v749
      %v810 = vunpack.c.l.b16 %v750
      %v811 = vunpack.c.l.b16 %v751
      %v812 = vunpack.c.l.b16 %v752
      %v813 = vunpack.c.l.b16 %v753
      %v814 = vunpack.c.l.b16 %v754
      %v815 = vunpack.c.l.b16 %v755
      %v816 = vunpack.c.l.b16 %v756
      %v817 = vunpack.c.l.b16 %v757
      %v818 = vunpack.c.l.b16 %v758
      %v819 = vunpack.c.l.b16 %v759
      %v820 = vunpack.c.l.b16 %v760
      %v821 = vunpack.c.l.b16 %v761
      %v822 = vunpack.c.l.b16 %v762
      %v823 = vunpack.c.l.b16 %v763
      %v824 = vpack.c.b16 %v796, %v795
      %v825 = vpack.c.b16 %v798, %v797
      %v826 = vpack.c.b16 %v800, %v799
      %v827 = vpack.c.b16 %v802, %v801
      %v828 = vpack.c.b16 %v804, %v803
      %v829 = vpack.c.b16 %v806, %v805
      %v830 = vpack.c.b16 %v808, %v807
      %v831 = vpack.c.b16 %v810, %v809
      %v832 = vpack.c.b16 %v812, %v811
      %v833 = vpack.c.b16 %v814, %v813
      %v834 = vpack.c.b16 %v816, %v815
      %v835 = vpack.c.b16 %v818, %v817
      %v836 = vpack.c.b16 %v820, %v819
      %v837 = vpack.c.b16 %v822, %v821
      %v838 = vpack.c.b16 %v823, %v823
      %vm839 = vsmask.f32 4352
      %v841 = vshrl.u32 %v824, 16
      %v843 = vrot.slane %v841, 3
      %v844 = vshll.u32 %v824, 16
      %v846 = vrot.slane %v844, 4
      %v847 = vor.u32 %v843, %v846
      %v849 = vshrl.u32 %v825, 16
      %v851 = vrot.slane %v849, 3
      %v852 = vshll.u32 %v825, 16
      %v854 = vrot.slane %v852, 4
      %v855 = vor.u32 %v851, %v854
      %v856 = vsel %vm839, %v847, %v855
      %v858 = vshrl.u32 %v826, 16
      %v860 = vrot.slane %v858, 3
      %v861 = vshll.u32 %v826, 16
      %v863 = vrot.slane %v861, 4
      %v864 = vor.u32 %v860, %v863
      %v865 = vsel %vm839, %v855, %v864
      %v867 = vshrl.u32 %v827, 16
      %v869 = vrot.slane %v867, 3
      %v870 = vshll.u32 %v827, 16
      %v872 = vrot.slane %v870, 4
      %v873 = vor.u32 %v869, %v872
      %v874 = vsel %vm839, %v864, %v873
      %v876 = vshrl.u32 %v828, 16
      %v878 = vrot.slane %v876, 3
      %v879 = vshll.u32 %v828, 16
      %v881 = vrot.slane %v879, 4
      %v882 = vor.u32 %v878, %v881
      %v883 = vsel %vm839, %v873, %v882
      %v885 = vshrl.u32 %v829, 16
      %v887 = vrot.slane %v885, 3
      %v888 = vshll.u32 %v829, 16
      %v890 = vrot.slane %v888, 4
      %v891 = vor.u32 %v887, %v890
      %v892 = vsel %vm839, %v882, %v891
      %v894 = vshrl.u32 %v830, 16
      %v896 = vrot.slane %v894, 3
      %v897 = vshll.u32 %v830, 16
      %v899 = vrot.slane %v897, 4
      %v900 = vor.u32 %v896, %v899
      %v901 = vsel %vm839, %v891, %v900
      %v903 = vshrl.u32 %v831, 16
      %v905 = vrot.slane %v903, 3
      %v906 = vshll.u32 %v831, 16
      %v908 = vrot.slane %v906, 4
      %v909 = vor.u32 %v905, %v908
      %v910 = vsel %vm839, %v900, %v909
      %v912 = vshrl.u32 %v832, 16
      %v914 = vrot.slane %v912, 3
      %v915 = vshll.u32 %v832, 16
      %v917 = vrot.slane %v915, 4
      %v918 = vor.u32 %v914, %v917
      %v919 = vsel %vm839, %v909, %v918
      %v921 = vshrl.u32 %v833, 16
      %v923 = vrot.slane %v921, 3
      %v924 = vshll.u32 %v833, 16
      %v926 = vrot.slane %v924, 4
      %v927 = vor.u32 %v923, %v926
      %v928 = vsel %vm839, %v918, %v927
      %v930 = vshrl.u32 %v834, 16
      %v932 = vrot.slane %v930, 3
      %v933 = vshll.u32 %v834, 16
      %v935 = vrot.slane %v933, 4
      %v936 = vor.u32 %v932, %v935
      %v937 = vsel %vm839, %v927, %v936
      %v939 = vshrl.u32 %v835, 16
      %v941 = vrot.slane %v939, 3
      %v942 = vshll.u32 %v835, 16
      %v944 = vrot.slane %v942, 4
      %v945 = vor.u32 %v941, %v944
      %v946 = vsel %vm839, %v936, %v945
      %v948 = vshrl.u32 %v836, 16
      %v950 = vrot.slane %v948, 3
      %v951 = vshll.u32 %v836, 16
      %v953 = vrot.slane %v951, 4
      %v954 = vor.u32 %v950, %v953
      %v955 = vsel %vm839, %v945, %v954
      %v957 = vshrl.u32 %v837, 16
      %v959 = vrot.slane %v957, 3
      %v960 = vshll.u32 %v837, 16
      %v962 = vrot.slane %v960, 4
      %v963 = vor.u32 %v959, %v962
      %v964 = vsel %vm839, %v954, %v963
      %v966 = vshrl.u32 %v838, 16
      %v968 = vrot.slane %v966, 3
      %v969 = vshll.u32 %v838, 16
      %v971 = vrot.slane %v969, 4
      %v972 = vor.u32 %v968, %v971
      %v973 = vsel %vm839, %v963, %v972
      %v975 = vsel %vm367, %v856, 0
      %v978 = vsel %vm367, %v865, 0
      %v981 = vsel %vm367, %v874, 0
      %v984 = vsel %vm367, %v883, 0
      %v987 = vsel %vm367, %v892, 0
      %v990 = vsel %vm367, %v901, 0
      %v993 = vsel %vm367, %v910, 0
      %v996 = vsel %vm367, %v919, 0
      %v999 = vsel %vm367, %v928, 0
      %v1002 = vsel %vm367, %v937, 0
      %v1005 = vsel %vm367, %v946, 0
      %v1008 = vsel %vm367, %v955, 0
      %v1011 = vsel %vm367, %v964, 0
      %v1014 = vsel %vm367, %v973, 0
      %v1017 = vsel %vm410, %v765, 0
      %1019 = vmatprep.subr.bf16.mxu0 0
      %1020 = vmatpush1.bf16.msra.mxu0 %v1017
      %1021 = vmatprep.subr.bf16.mxu0 0
      %1022 = vmatpush1.bf16.msra.mxu0 0
      %1023 = vmatprep.subr.bf16.mxu0 0
      %1024 = vmatpush1.bf16.msra.mxu0 0
      %1025 = vmatprep.subr.bf16.mxu0 0
      %1026 = vmatpush1.bf16.msra.mxu0 0
      %1027 = vmatprep.subr.bf16.mxu0 0
      %1028 = vmatpush1.bf16.msra.mxu0 0
      %1029 = vmatprep.subr.bf16.mxu0 0
      %1030 = vmatpush1.bf16.msra.mxu0 0
      %1031 = vmatprep.subr.bf16.mxu0 0
      %1032 = vmatpush1.bf16.msra.mxu0 0
      %1033 = vmatprep.subr.bf16.mxu0 0
      %1034 = vmatpush1.bf16.msra.mxu0 0
      %1035 = vmatprep.subr.bf16.mxu0 0
      %1036 = vmatpush1.bf16.msra.mxu0 0
      %1037 = vmatprep.subr.bf16.mxu0 0
      %1038 = vmatpush1.bf16.msra.mxu0 0
      %1039 = vmatprep.subr.bf16.mxu0 0
      %1040 = vmatpush1.bf16.msra.mxu0 0
      %1041 = vmatprep.subr.bf16.mxu0 0
      %1042 = vmatpush1.bf16.msra.mxu0 0
      %1043 = vmatprep.subr.bf16.mxu0 0
      %1044 = vmatpush1.bf16.msra.mxu0 0
      %1045 = vmatprep.subr.bf16.mxu0 0
      %1046 = vmatpush1.bf16.msra.mxu0 0
      %1047 = vmatprep.subr.bf16.mxu0 0
      %1048 = vmatpush1.bf16.msra.mxu0 0
      %1049 = vmatprep.subr.bf16.mxu0 0
      %1050 = vmatpush1.bf16.msra.mxu0 0
      %1051 = vmatprep.mubr.bf16.mxu0 0
      %1052 = vmatmul.mubr.bf16.gmra.mrb[0].mxu0 %v975
      %v1053 = vpop.f32.mrb[0].mxu0
      %v1054 = vadd.f32 0.0, %v1053
      %v1055 = vpop.f32.mrb[0].mxu0
      %v1056 = vpop.f32.mrb[0].mxu0
      %v1057 = vadd.f32 0.0, %v1056
      %v1058 = vpop.f32.mrb[0].mxu0
      %1059 = vmatprep.mubr.bf16.mxu0 0
      %1060 = vmatmul.mubr.bf16.gmra.mrb[0].mxu0 %v978
      %v1061 = vpop.f32.mrb[0].mxu0
      %v1062 = vadd.f32 0.0, %v1061
      %v1063 = vpop.f32.mrb[0].mxu0
      %v1064 = vpop.f32.mrb[0].mxu0
      %v1065 = vadd.f32 0.0, %v1064
      %v1066 = vpop.f32.mrb[0].mxu0
      %1067 = vmatprep.mubr.bf16.mxu0 0
      %1068 = vmatmul.mubr.bf16.gmra.mrb[0].mxu0 %v981
      %v1069 = vpop.f32.mrb[0].mxu0
      %v1070 = vadd.f32 0.0, %v1069
      %v1071 = vpop.f32.mrb[0].mxu0
      %v1072 = vpop.f32.mrb[0].mxu0
      %v1073 = vadd.f32 0.0, %v1072
      %v1074 = vpop.f32.mrb[0].mxu0
      %1075 = vmatprep.mubr.bf16.mxu0 0
      %1076 = vmatmul.mubr.bf16.gmra.mrb[0].mxu0 %v984
      %v1077 = vpop.f32.mrb[0].mxu0
      %v1078 = vadd.f32 0.0, %v1077
      %v1079 = vpop.f32.mrb[0].mxu0
      %v1080 = vpop.f32.mrb[0].mxu0
      %v1081 = vadd.f32 0.0, %v1080
      %v1082 = vpop.f32.mrb[0].mxu0
      %1083 = vmatprep.mubr.bf16.mxu0 0
      %1084 = vmatmul.mubr.bf16.gmra.mrb[0].mxu0 %v987
      %v1085 = vpop.f32.mrb[0].mxu0
      %v1086 = vadd.f32 0.0, %v1085
      %v1087 = vpop.f32.mrb[0].mxu0
      %v1088 = vpop.f32.mrb[0].mxu0
      %v1089 = vadd.f32 0.0, %v1088
      %v1090 = vpop.f32.mrb[0].mxu0
      %1091 = vmatprep.mubr.bf16.mxu0 0
      %1092 = vmatmul.mubr.bf16.gmra.mrb[0].mxu0 %v990
      %v1093 = vpop.f32.mrb[0].mxu0
      %v1094 = vadd.f32 0.0, %v1093
      %v1095 = vpop.f32.mrb[0].mxu0
      %v1096 = vpop.f32.mrb[0].mxu0
      %v1097 = vadd.f32 0.0, %v1096
      %v1098 = vpop.f32.mrb[0].mxu0
      %1099 = vmatprep.mubr.bf16.mxu0 0
      %1100 = vmatmul.mubr.bf16.gmra.mrb[0].mxu0 %v993
      %v1101 = vpop.f32.mrb[0].mxu0
      %v1102 = vadd.f32 0.0, %v1101
      %v1103 = vpop.f32.mrb[0].mxu0
      %v1104 = vpop.f32.mrb[0].mxu0
      %v1105 = vadd.f32 0.0, %v1104
      %v1106 = vpop.f32.mrb[0].mxu0
      %1107 = vmatprep.mubr.bf16.mxu0 0
      %1108 = vmatmul.mubr.bf16.gmra.mrb[0].mxu0 %v996
      %v1109 = vpop.f32.mrb[0].mxu0
      %v1110 = vadd.f32 0.0, %v1109
      %v1111 = vpop.f32.mrb[0].mxu0
      %v1112 = vpop.f32.mrb[0].mxu0
      %v1113 = vadd.f32 0.0, %v1112
      %v1114 = vpop.f32.mrb[0].mxu0
      %1115 = vmatprep.mubr.bf16.mxu0 0
      %1116 = vmatmul.mubr.bf16.gmra.mrb[0].mxu0 %v999
      %v1117 = vpop.f32.mrb[0].mxu0
      %v1118 = vadd.f32 0.0, %v1117
      %v1119 = vpop.f32.mrb[0].mxu0
      %v1120 = vpop.f32.mrb[0].mxu0
      %v1121 = vadd.f32 0.0, %v1120
      %v1122 = vpop.f32.mrb[0].mxu0
      %1123 = vmatprep.mubr.bf16.mxu0 0
      %1124 = vmatmul.mubr.bf16.gmra.mrb[0].mxu0 %v1002
      %v1125 = vpop.f32.mrb[0].mxu0
      %v1126 = vadd.f32 0.0, %v1125
      %v1127 = vpop.f32.mrb[0].mxu0
      %v1128 = vpop.f32.mrb[0].mxu0
      %v1129 = vadd.f32 0.0, %v1128
      %v1130 = vpop.f32.mrb[0].mxu0
      %1131 = vmatprep.mubr.bf16.mxu0 0
      %1132 = vmatmul.mubr.bf16.gmra.mrb[0].mxu0 %v1005
      %v1133 = vpop.f32.mrb[0].mxu0
      %v1134 = vadd.f32 0.0, %v1133
      %v1135 = vpop.f32.mrb[0].mxu0
      %v1136 = vpop.f32.mrb[0].mxu0
      %v1137 = vadd.f32 0.0, %v1136
      %v1138 = vpop.f32.mrb[0].mxu0
      %1139 = vmatprep.mubr.bf16.mxu0 0
      %1140 = vmatmul.mubr.bf16.gmra.mrb[0].mxu0 %v1008
      %v1141 = vpop.f32.mrb[0].mxu0
      %v1142 = vadd.f32 0.0, %v1141
      %v1143 = vpop.f32.mrb[0].mxu0
      %v1144 = vpop.f32.mrb[0].mxu0
      %v1145 = vadd.f32 0.0, %v1144
      %v1146 = vpop.f32.mrb[0].mxu0
      %1147 = vmatprep.mubr.bf16.mxu0 0
      %1148 = vmatmul.mubr.bf16.gmra.mrb[0].mxu0 %v1011
      %v1149 = vpop.f32.mrb[0].mxu0
      %v1150 = vadd.f32 0.0, %v1149
      %v1151 = vpop.f32.mrb[0].mxu0
      %v1152 = vpop.f32.mrb[0].mxu0
      %v1153 = vadd.f32 0.0, %v1152
      %v1154 = vpop.f32.mrb[0].mxu0
      %1155 = vmatprep.mubr.bf16.mxu0 0
      %1156 = vmatmul.mubr.bf16.gmra.mrb[0].mxu0 %v1014
      %v1157 = vpop.f32.mrb[0].mxu0
      %v1158 = vadd.f32 0.0, %v1157
      %v1159 = vpop.f32.mrb[0].mxu0
      %v1160 = vpop.f32.mrb[0].mxu0
      %v1161 = vadd.f32 0.0, %v1160
      %v1162 = vpop.f32.mrb[0].mxu0
      %1163 = vdwg.mxu0
      %v1164 = vadd.f32 %v625, %v1054
      %v1165 = vadd.f32 %v628, %v1057
      %v1166 = vadd.f32 %v633, %v1062
      %v1167 = vadd.f32 %v636, %v1065
      %v1168 = vadd.f32 %v641, %v1070
      %v1169 = vadd.f32 %v644, %v1073
      %v1170 = vadd.f32 %v649, %v1078
      %v1171 = vadd.f32 %v652, %v1081
      %v1172 = vadd.f32 %v657, %v1086
      %v1173 = vadd.f32 %v660, %v1089
      %v1174 = vadd.f32 %v665, %v1094
      %v1175 = vadd.f32 %v668, %v1097
      %v1176 = vadd.f32 %v673, %v1102
      %v1177 = vadd.f32 %v676, %v1105
      %v1178 = vadd.f32 %v681, %v1110
      %v1179 = vadd.f32 %v684, %v1113
      %v1180 = vadd.f32 %v689, %v1118
      %v1181 = vadd.f32 %v692, %v1121
      %v1182 = vadd.f32 %v697, %v1126
      %v1183 = vadd.f32 %v700, %v1129
      %v1184 = vadd.f32 %v705, %v1134
      %v1185 = vadd.f32 %v708, %v1137
      %v1186 = vadd.f32 %v713, %v1142
      %v1187 = vadd.f32 %v716, %v1145
      %v1188 = vadd.f32 %v721, %v1150
      %v1189 = vadd.f32 %v724, %v1153
      %v1190 = vadd.f32 %v729, %v1158
      %v1191 = vadd.f32 %v732, %v1161
      %s1192 = scalar_lea.vmem %s1, 12
      %v1193 = vld [vmem:[%s1192] sm:$0xf]
      %v1194 = vpack.c.b16 %v797, %v796
      %v1195 = vpack.c.b16 %v799, %v798
      %v1196 = vpack.c.b16 %v801, %v800
      %v1197 = vpack.c.b16 %v803, %v802
      %v1198 = vpack.c.b16 %v805, %v804
      %v1199 = vpack.c.b16 %v807, %v806
      %v1200 = vpack.c.b16 %v809, %v808
      %v1201 = vpack.c.b16 %v811, %v810
      %v1202 = vpack.c.b16 %v813, %v812
      %v1203 = vpack.c.b16 %v815, %v814
      %v1204 = vpack.c.b16 %v817, %v816
      %v1205 = vpack.c.b16 %v819, %v818
      %v1206 = vpack.c.b16 %v821, %v820
      %v1207 = vpack.c.b16 %v823, %v822
      %v1209 = vsel %vm367, %v1194, 0
      %v1212 = vsel %vm367, %v1195, 0
      %v1215 = vsel %vm367, %v1196, 0
      %v1218 = vsel %vm367, %v1197, 0
      %v1221 = vsel %vm367, %v1198, 0
      %v1224 = vsel %vm367, %v1199, 0
      %v1227 = vsel %vm367, %v1200, 0
      %v1230 = vsel %vm367, %v1201, 0
      %v1233 = vsel %vm367, %v1202, 0
      %v1236 = vsel %vm367, %v1203, 0
      %v1239 = vsel %vm367, %v1204, 0
      %v1242 = vsel %vm367, %v1205, 0
      %v1245 = vsel %vm367, %v1206, 0
      %v1248 = vsel %vm367, %v1207, 0
      %v1251 = vsel %vm410, %v1193, 0
      %1253 = vmatprep.subr.bf16.mxu0 0
      %1254 = vmatpush1.bf16.msra.mxu0 %v1251
      %1255 = vmatprep.subr.bf16.mxu0 0
      %1256 = vmatpush1.bf16.msra.mxu0 0
      %1257 = vmatprep.subr.bf16.mxu0 0
      %1258 = vmatpush1.bf16.msra.mxu0 0
      %1259 = vmatprep.subr.bf16.mxu0 0
      %1260 = vmatpush1.bf16.msra.mxu0 0
      %1261 = vmatprep.subr.bf16.mxu0 0
      %1262 = vmatpush1.bf16.msra.mxu0 0
      %1263 = vmatprep.subr.bf16.mxu0 0
      %1264 = vmatpush1.bf16.msra.mxu0 0
      %1265 = vmatprep.subr.bf16.mxu0 0
      %1266 = vmatpush1.bf16.msra.mxu0 0
      %1267 = vmatprep.subr.bf16.mxu0 0
      %1268 = vmatpush1.bf16.msra.mxu0 0
      %1269 = vmatprep.subr.bf16.mxu0 0
      %1270 = vmatpush1.bf16.msra.mxu0 0
      %1271 = vmatprep.subr.bf16.mxu0 0
      %1272 = vmatpush1.bf16.msra.mxu0 0
      %1273 = vmatprep.subr.bf16.mxu0 0
      %1274 = vmatpush1.bf16.msra.mxu0 0
      %1275 = vmatprep.subr.bf16.mxu0 0
      %1276 = vmatpush1.bf16.msra.mxu0 0
      %1277 = vmatprep.subr.bf16.mxu0 0
      %1278 = vmatpush1.bf16.msra.mxu0 0
      %1279 = vmatprep.subr.bf16.mxu0 0
      %1280 = vmatpush1.bf16.msra.mxu0 0
      %1281 = vmatprep.subr.bf16.mxu0 0
      %1282 = vmatpush1.bf16.msra.mxu0 0
      %1283 = vmatprep.subr.bf16.mxu0 0
      %1284 = vmatpush1.bf16.msra.mxu0 0
      %1285 = vmatprep.mubr.bf16.mxu0 0
      %1286 = vmatmul.mubr.bf16.gmra.mrb[0].mxu0 %v1209
      %v1287 = vpop.f32.mrb[0].mxu0
      %v1288 = vadd.f32 0.0, %v1287
      %v1289 = vpop.f32.mrb[0].mxu0
      %v1290 = vpop.f32.mrb[0].mxu0
      %v1291 = vadd.f32 0.0, %v1290
      %v1292 = vpop.f32.mrb[0].mxu0
      %1293 = vmatprep.mubr.bf16.mxu0 0
      %1294 = vmatmul.mubr.bf16.gmra.mrb[0].mxu0 %v1212
      %v1295 = vpop.f32.mrb[0].mxu0
      %v1296 = vadd.f32 0.0, %v1295
      %v1297 = vpop.f32.mrb[0].mxu0
      %v1298 = vpop.f32.mrb[0].mxu0
      %v1299 = vadd.f32 0.0, %v1298
      %v1300 = vpop.f32.mrb[0].mxu0
      %1301 = vmatprep.mubr.bf16.mxu0 0
      %1302 = vmatmul.mubr.bf16.gmra.mrb[0].mxu0 %v1215
      %v1303 = vpop.f32.mrb[0].mxu0
      %v1304 = vadd.f32 0.0, %v1303
      %v1305 = vpop.f32.mrb[0].mxu0
      %v1306 = vpop.f32.mrb[0].mxu0
      %v1307 = vadd.f32 0.0, %v1306
      %v1308 = vpop.f32.mrb[0].mxu0
      %1309 = vmatprep.mubr.bf16.mxu0 0
      %1310 = vmatmul.mubr.bf16.gmra.mrb[0].mxu0 %v1218
      %v1311 = vpop.f32.mrb[0].mxu0
      %v1312 = vadd.f32 0.0, %v1311
      %v1313 = vpop.f32.mrb[0].mxu0
      %v1314 = vpop.f32.mrb[0].mxu0
      %v1315 = vadd.f32 0.0, %v1314
      %v1316 = vpop.f32.mrb[0].mxu0
      %1317 = vmatprep.mubr.bf16.mxu0 0
      %1318 = vmatmul.mubr.bf16.gmra.mrb[0].mxu0 %v1221
      %v1319 = vpop.f32.mrb[0].mxu0
      %v1320 = vadd.f32 0.0, %v1319
      %v1321 = vpop.f32.mrb[0].mxu0
      %v1322 = vpop.f32.mrb[0].mxu0
      %v1323 = vadd.f32 0.0, %v1322
      %v1324 = vpop.f32.mrb[0].mxu0
      %1325 = vmatprep.mubr.bf16.mxu0 0
      %1326 = vmatmul.mubr.bf16.gmra.mrb[0].mxu0 %v1224
      %v1327 = vpop.f32.mrb[0].mxu0
      %v1328 = vadd.f32 0.0, %v1327
      %v1329 = vpop.f32.mrb[0].mxu0
      %v1330 = vpop.f32.mrb[0].mxu0
      %v1331 = vadd.f32 0.0, %v1330
      %v1332 = vpop.f32.mrb[0].mxu0
      %1333 = vmatprep.mubr.bf16.mxu0 0
      %1334 = vmatmul.mubr.bf16.gmra.mrb[0].mxu0 %v1227
      %v1335 = vpop.f32.mrb[0].mxu0
      %v1336 = vadd.f32 0.0, %v1335
      %v1337 = vpop.f32.mrb[0].mxu0
      %v1338 = vpop.f32.mrb[0].mxu0
      %v1339 = vadd.f32 0.0, %v1338
      %v1340 = vpop.f32.mrb[0].mxu0
      %1341 = vmatprep.mubr.bf16.mxu0 0
      %1342 = vmatmul.mubr.bf16.gmra.mrb[0].mxu0 %v1230
      %v1343 = vpop.f32.mrb[0].mxu0
      %v1344 = vadd.f32 0.0, %v1343
      %v1345 = vpop.f32.mrb[0].mxu0
      %v1346 = vpop.f32.mrb[0].mxu0
      %v1347 = vadd.f32 0.0, %v1346
      %v1348 = vpop.f32.mrb[0].mxu0
      %1349 = vmatprep.mubr.bf16.mxu0 0
      %1350 = vmatmul.mubr.bf16.gmra.mrb[0].mxu0 %v1233
      %v1351 = vpop.f32.mrb[0].mxu0
      %v1352 = vadd.f32 0.0, %v1351
      %v1353 = vpop.f32.mrb[0].mxu0
      %v1354 = vpop.f32.mrb[0].mxu0
      %v1355 = vadd.f32 0.0, %v1354
      %v1356 = vpop.f32.mrb[0].mxu0
      %1357 = vmatprep.mubr.bf16.mxu0 0
      %1358 = vmatmul.mubr.bf16.gmra.mrb[0].mxu0 %v1236
      %v1359 = vpop.f32.mrb[0].mxu0
      %v1360 = vadd.f32 0.0, %v1359
      %v1361 = vpop.f32.mrb[0].mxu0
      %v1362 = vpop.f32.mrb[0].mxu0
      %v1363 = vadd.f32 0.0, %v1362
      %v1364 = vpop.f32.mrb[0].mxu0
      %1365 = vmatprep.mubr.bf16.mxu0 0
      %1366 = vmatmul.mubr.bf16.gmra.mrb[0].mxu0 %v1239
      %v1367 = vpop.f32.mrb[0].mxu0
      %v1368 = vadd.f32 0.0, %v1367
      %v1369 = vpop.f32.mrb[0].mxu0
      %v1370 = vpop.f32.mrb[0].mxu0
      %v1371 = vadd.f32 0.0, %v1370
      %v1372 = vpop.f32.mrb[0].mxu0
      %1373 = vmatprep.mubr.bf16.mxu0 0
      %1374 = vmatmul.mubr.bf16.gmra.mrb[0].mxu0 %v1242
      %v1375 = vpop.f32.mrb[0].mxu0
      %v1376 = vadd.f32 0.0, %v1375
      %v1377 = vpop.f32.mrb[0].mxu0
      %v1378 = vpop.f32.mrb[0].mxu0
      %v1379 = vadd.f32 0.0, %v1378
      %v1380 = vpop.f32.mrb[0].mxu0
      %1381 = vmatprep.mubr.bf16.mxu0 0
      %1382 = vmatmul.mubr.bf16.gmra.mrb[0].mxu0 %v1245
      %v1383 = vpop.f32.mrb[0].mxu0
      %v1384 = vadd.f32 0.0, %v1383
      %v1385 = vpop.f32.mrb[0].mxu0
      %v1386 = vpop.f32.mrb[0].mxu0
      %v1387 = vadd.f32 0.0, %v1386
      %v1388 = vpop.f32.mrb[0].mxu0
      %1389 = vmatprep.mubr.bf16.mxu0 0
      %1390 = vmatmul.mubr.bf16.gmra.mrb[0].mxu0 %v1248
      %v1391 = vpop.f32.mrb[0].mxu0
      %v1392 = vadd.f32 0.0, %v1391
      %v1393 = vpop.f32.mrb[0].mxu0
      %v1394 = vpop.f32.mrb[0].mxu0
      %v1395 = vadd.f32 0.0, %v1394
      %v1396 = vpop.f32.mrb[0].mxu0
      %1397 = vdwg.mxu0
      %v1398 = vadd.f32 %v1164, %v1288
      %v1399 = vadd.f32 %v1165, %v1291
      %v1400 = vadd.f32 %v1166, %v1296
      %v1401 = vadd.f32 %v1167, %v1299
      %v1402 = vadd.f32 %v1168, %v1304
      %v1403 = vadd.f32 %v1169, %v1307
      %v1404 = vadd.f32 %v1170, %v1312
      %v1405 = vadd.f32 %v1171, %v1315
      %v1406 = vadd.f32 %v1172, %v1320
      %v1407 = vadd.f32 %v1173, %v1323
      %v1408 = vadd.f32 %v1174, %v1328
      %v1409 = vadd.f32 %v1175, %v1331
      %v1410 = vadd.f32 %v1176, %v1336
      %v1411 = vadd.f32 %v1177, %v1339
      %v1412 = vadd.f32 %v1178, %v1344
      %v1413 = vadd.f32 %v1179, %v1347
      %v1414 = vadd.f32 %v1180, %v1352
      %v1415 = vadd.f32 %v1181, %v1355
      %v1416 = vadd.f32 %v1182, %v1360
      %v1417 = vadd.f32 %v1183, %v1363
      %v1418 = vadd.f32 %v1184, %v1368
      %v1419 = vadd.f32 %v1185, %v1371
      %v1420 = vadd.f32 %v1186, %v1376
      %v1421 = vadd.f32 %v1187, %v1379
      %v1422 = vadd.f32 %v1188, %v1384
      %v1423 = vadd.f32 %v1189, %v1387
      %v1424 = vadd.f32 %v1190, %v1392
      %v1425 = vadd.f32 %v1191, %v1395
      %v1426 = vmul.f32 %v1398, 0.2
      %v1427 = vmul.f32 %v1399, 0.2
      %v1428 = vmul.f32 %v1400, 0.2
      %v1429 = vmul.f32 %v1401, 0.2
      %v1430 = vmul.f32 %v1402, 0.2
      %v1431 = vmul.f32 %v1403, 0.2
      %v1432 = vmul.f32 %v1404, 0.2
      %v1433 = vmul.f32 %v1405, 0.2
      %v1434 = vmul.f32 %v1406, 0.2
      %v1435 = vmul.f32 %v1407, 0.2
      %v1436 = vmul.f32 %v1408, 0.2
      %v1437 = vmul.f32 %v1409, 0.2
      %v1438 = vmul.f32 %v1410, 0.2
      %v1439 = vmul.f32 %v1411, 0.2
      %v1440 = vmul.f32 %v1412, 0.2
      %v1441 = vmul.f32 %v1413, 0.2
      %v1442 = vmul.f32 %v1414, 0.2
      %v1443 = vmul.f32 %v1415, 0.2
      %v1444 = vmul.f32 %v1416, 0.2
      %v1445 = vmul.f32 %v1417, 0.2
      %v1446 = vmul.f32 %v1418, 0.2
      %v1447 = vmul.f32 %v1419, 0.2
      %v1448 = vmul.f32 %v1420, 0.2
      %v1449 = vmul.f32 %v1421, 0.2
      %v1450 = vmul.f32 %v1422, 0.2
      %v1451 = vmul.f32 %v1423, 0.2
      %v1452 = vmul.f32 %v1424, 0.2
      %v1453 = vmul.f32 %v1425, 0.2
      %v1454 = vmax.f32 %v1398, %v1426
      %v1455 = vmax.f32 %v1399, %v1427
      %v1456 = vmax.f32 %v1400, %v1428
      %v1457 = vmax.f32 %v1401, %v1429
      %v1458 = vmax.f32 %v1402, %v1430
      %v1459 = vmax.f32 %v1403, %v1431
      %v1460 = vmax.f32 %v1404, %v1432
      %v1461 = vmax.f32 %v1405, %v1433
      %v1462 = vmax.f32 %v1406, %v1434
      %v1463 = vmax.f32 %v1407, %v1435
      %v1464 = vmax.f32 %v1408, %v1436
      %v1465 = vmax.f32 %v1409, %v1437
      %v1466 = vmax.f32 %v1410, %v1438
      %v1467 = vmax.f32 %v1411, %v1439
      %v1468 = vmax.f32 %v1412, %v1440
      %v1469 = vmax.f32 %v1413, %v1441
      %v1470 = vmax.f32 %v1414, %v1442
      %v1471 = vmax.f32 %v1415, %v1443
      %v1472 = vmax.f32 %v1416, %v1444
      %v1473 = vmax.f32 %v1417, %v1445
      %v1474 = vmax.f32 %v1418, %v1446
      %v1475 = vmax.f32 %v1419, %v1447
      %v1476 = vmax.f32 %v1420, %v1448
      %v1477 = vmax.f32 %v1421, %v1449
      %v1478 = vmax.f32 %v1422, %v1450
      %v1479 = vmax.f32 %v1423, %v1451
      %v1480 = vmax.f32 %v1424, %v1452
      %v1481 = vmax.f32 %v1425, %v1453
      %v1482 = vpack.c.bf16 %v1455, %v1454
      %v1483 = vpack.c.bf16 %v1457, %v1456
      %v1484 = vpack.c.bf16 %v1459, %v1458
      %v1485 = vpack.c.bf16 %v1461, %v1460
      %v1486 = vpack.c.bf16 %v1463, %v1462
      %v1487 = vpack.c.bf16 %v1465, %v1464
      %v1488 = vpack.c.bf16 %v1467, %v1466
      %v1489 = vpack.c.bf16 %v1469, %v1468
      %v1490 = vpack.c.bf16 %v1471, %v1470
      %v1491 = vpack.c.bf16 %v1473, %v1472
      %v1492 = vpack.c.bf16 %v1475, %v1474
      %v1493 = vpack.c.bf16 %v1477, %v1476
      %v1494 = vpack.c.bf16 %v1479, %v1478
      %v1495 = vpack.c.bf16 %v1481, %v1480
      %v1510 = vunpack.c.l.b16 %v1482
      %v1511 = vunpack.c.h.b16 %v1482
      %v1512 = vunpack.c.l.b16 %v1483
      %v1513 = vunpack.c.h.b16 %v1483
      %v1514 = vunpack.c.l.b16 %v1484
      %v1515 = vunpack.c.h.b16 %v1484
      %v1516 = vunpack.c.l.b16 %v1485
      %v1517 = vunpack.c.h.b16 %v1485
      %v1518 = vunpack.c.l.b16 %v1486
      %v1519 = vunpack.c.h.b16 %v1486
      %v1520 = vunpack.c.l.b16 %v1487
      %v1521 = vunpack.c.h.b16 %v1487
      %v1522 = vunpack.c.l.b16 %v1488
      %v1523 = vunpack.c.h.b16 %v1488
      %v1524 = vunpack.c.l.b16 %v1489
      %v1525 = vunpack.c.h.b16 %v1489
      %v1526 = vunpack.c.l.b16 %v1490
      %v1527 = vunpack.c.h.b16 %v1490
      %v1528 = vunpack.c.l.b16 %v1491
      %v1529 = vunpack.c.h.b16 %v1491
      %v1530 = vunpack.c.l.b16 %v1492
      %v1531 = vunpack.c.h.b16 %v1492
      %v1532 = vunpack.c.l.b16 %v1493
      %v1533 = vunpack.c.h.b16 %v1493
      %v1534 = vunpack.c.l.b16 %v1494
      %v1535 = vunpack.c.h.b16 %v1494
      %v1536 = vunpack.c.l.b16 %v1495
      %v1537 = vunpack.c.h.b16 %v1495
      %v1538 = vpack.c.b16 %v1510, %v1510
      %v1539 = vpack.c.b16 %v1511, %v1511
      %v1540 = vpack.c.b16 %v1512, %v1512
      %v1541 = vpack.c.b16 %v1513, %v1513
      %v1542 = vpack.c.b16 %v1514, %v1514
      %v1543 = vpack.c.b16 %v1515, %v1515
      %v1544 = vpack.c.b16 %v1516, %v1516
      %v1545 = vpack.c.b16 %v1517, %v1517
      %v1546 = vpack.c.b16 %v1518, %v1518
      %v1547 = vpack.c.b16 %v1519, %v1519
      %v1548 = vpack.c.b16 %v1520, %v1520
      %v1549 = vpack.c.b16 %v1521, %v1521
      %v1550 = vpack.c.b16 %v1522, %v1522
      %v1551 = vpack.c.b16 %v1523, %v1523
      %v1552 = vpack.c.b16 %v1524, %v1524
      %v1553 = vpack.c.b16 %v1525, %v1525
      %v1554 = vpack.c.b16 %v1526, %v1526
      %v1555 = vpack.c.b16 %v1527, %v1527
      %v1556 = vpack.c.b16 %v1528, %v1528
      %v1557 = vpack.c.b16 %v1529, %v1529
      %v1558 = vpack.c.b16 %v1530, %v1530
      %v1559 = vpack.c.b16 %v1531, %v1531
      %v1560 = vpack.c.b16 %v1532, %v1532
      %v1561 = vpack.c.b16 %v1533, %v1533
      %v1562 = vpack.c.b16 %v1534, %v1534
      %v1563 = vpack.c.b16 %v1535, %v1535
      %v1564 = vpack.c.b16 %v1536, %v1536
      %v1565 = vpack.c.b16 %v1537, %v1537
      %vm1594 = vcmask 519168
      %1595 = vst.msk [vmem:[%s143] sm:$0xf] %vm1594, %v1538
      %1596 = vst.msk [vmem:[%s143 + $0x4] sm:$0xf] %vm1594, %v1539
      %1597 = vst.msk [vmem:[%s143 + $0x8] sm:$0xf] %vm1594, %v1540
      %1598 = vst.msk [vmem:[%s143 + $0xc] sm:$0xf] %vm1594, %v1541
      %1599 = vst.msk [vmem:[%s143 + $0x10] sm:$0xf] %vm1594, %v1542
      %1600 = vst.msk [vmem:[%s143 + $0x14] sm:$0xf] %vm1594, %v1543
      %1601 = vst.msk [vmem:[%s143 + $0x18] sm:$0xf] %vm1594, %v1544
      %1602 = vst.msk [vmem:[%s143 + $0x1c] sm:$0xf] %vm1594, %v1545
      %1603 = vst.msk [vmem:[%s143 + $0x20] sm:$0xf] %vm1594, %v1546
      %1604 = vst.msk [vmem:[%s143 + $0x24] sm:$0xf] %vm1594, %v1547
      %1605 = vst.msk [vmem:[%s143 + $0x28] sm:$0xf] %vm1594, %v1548
      %1606 = vst.msk [vmem:[%s143 + $0x2c] sm:$0xf] %vm1594, %v1549
      %1607 = vst.msk [vmem:[%s143 + $0x30] sm:$0xf] %vm1594, %v1550
      %1608 = vst.msk [vmem:[%s143 + $0x34] sm:$0xf] %vm1594, %v1551
      %1609 = vst.msk [vmem:[%s143 + $0x38] sm:$0xf] %vm1594, %v1552
      %1610 = vst.msk [vmem:[%s143 + $0x3c] sm:$0xf] %vm1594, %v1553
      %1611 = vst.msk [vmem:[%s143 + $0x40] sm:$0xf] %vm1594, %v1554
      %1612 = vst.msk [vmem:[%s143 + $0x44] sm:$0xf] %vm1594, %v1555
      %1613 = vst.msk [vmem:[%s143 + $0x48] sm:$0xf] %vm1594, %v1556
      %1614 = vst.msk [vmem:[%s143 + $0x4c] sm:$0xf] %vm1594, %v1557
      %1615 = vst.msk [vmem:[%s143 + $0x50] sm:$0xf] %vm1594, %v1558
      %1616 = vst.msk [vmem:[%s143 + $0x54] sm:$0xf] %vm1594, %v1559
      %1617 = vst.msk [vmem:[%s143 + $0x58] sm:$0xf] %vm1594, %v1560
      %1618 = vst.msk [vmem:[%s143 + $0x5c] sm:$0xf] %vm1594, %v1561
      %1619 = vst.msk [vmem:[%s143 + $0x60] sm:$0xf] %vm1594, %v1562
      %1620 = vst.msk [vmem:[%s143 + $0x64] sm:$0xf] %vm1594, %v1563
      %1621 = vst.msk [vmem:[%s143 + $0x68] sm:$0xf] %vm1594, %v1564
      %1622 = vst.msk [vmem:[%s143 + $0x6c] sm:$0xf] %vm1594, %v1565
      %p1623 = scmp.lt.s32.totalorder %s13, 1
      %s1624 = scalar_select %p1623, %s13, 1
      %s1625 = smul.addr %s1624, 28
      %s1626 = smul.addr %s1625, 4
      %s1627 = scalar_lea.vmem %s2, %s1626
      // Predicated region
      $region29: #{discriminator_forward.4} parent=27 // pred_check
        %p1628 = pneg %p78
      $region30: #{discriminator_forward.4} parent=27 // pred_check_branch
        %1630 = sbr.rel (%p1628) target = $region32
      $region31: #{discriminator_forward.4} parent=27 // pred_region
        _
      $region32: #{discriminator_forward.4} parent=27 // pred_fallthru
        _
    $region28: #{discriminator_forward.4} parent=5 // pred_fallthru
      _
    %p1631 = scmp.le.s32.totalorder 2, %s8
    // Predicated region
    $region33: #{discriminator_forward.4} parent=5 // pred_check
      %p1632 = pneg %p1631
    $region34: #{discriminator_forward.4} parent=5 // pred_check_branch
      %1634 = sbr.rel (%p1632) target = $region36
    $region35: #{discriminator_forward.4} parent=5 // pred_region
      %s1635 = ssub.s32 %s8, 2
      // Predicated region
      $region37: #{discriminator_forward.4} parent=35 // pred_check
        %p1636 = pneg %p84
      $region38: #{discriminator_forward.4} parent=35 // pred_check_branch
        %1638 = sbr.rel (%p1636) target = $region40
      $region39: #{discriminator_forward.4} parent=35 // pred_region
        %p1639 = scmp.lt.s32.totalorder %s14, 1
        %s1640 = scalar_select %p1639, %s14, 1
        %s1641 = smul.addr %s1640, 28
        %s1642 = smul.addr %s1641, 4
        %s1643 = scalar_lea.vmem %s2, %s1642
      $region40: #{discriminator_forward.4} parent=35 // pred_fallthru
        _
    $region36: #{discriminator_forward.4} parent=5 // pred_fallthru
      _
  $region6: #{discriminator_forward.4} parent=0 // loop_footer
    %s12 = sadd.s32 1, %s8
  $region7: #{discriminator_forward.4} parent=0 // loop_footer_branch
    %7 = sbr.rel target = $region3
  $region8: #{discriminator_forward.4} parent=0 // loop_exit
    _

// kernel: discriminator_forward.5
$region0: #{discriminator_forward.5}
  #allocation0 [shape = 'u32[]', space=smem, size = 0x4, offset = 0x4, fixed_abs, tag = 'smem constant byte address 0x4 - core index']
  #allocation1 [shape = 'u32[144,128]{1,0:T(1,128)}', space=vmem, size = 0x12000, scoped, tag = 'internal scratch']
  %s0 = inlined_call_operand.vmem [shape: bf16[2,80,256], index: 0, kind: input, shape index: {}]
  %s1 = inlined_call_operand.vmem [shape: bf16[4,256,128], index: 1, kind: input, shape index: {}]
  %s2 = inlined_call_operand.vmem [shape: bf16[2,64,128], index: 2, kind: output, shape index: {}]
  %s3 = sld [smem:[#allocation0]]
  $region41: #{discriminator_forward.5} parent=0
    _
  %s5 = ssub.s32 1, %s3
  %s6 = scalar_select 0, %s5, %s3
  loop: start=0, step=1, limit=4
  $region2: #{discriminator_forward.5} parent=0 // loop_pre_header
    _
  $region3: #{discriminator_forward.5} parent=0 // loop_header
    %s8 = sphi 0, %s12
    %p9 = scmp.ge.s32.totalorder %s8, 4
    %s18 = sphi 0, %s20
    %s21 = sphi 0, %s18
    %s22 = sphi 0, %s21
    %s38 = sphi 0, %s22
    %s42 = sphi 0, %s42
    %s44 = sphi 0, %s42
    %s45 = sphi 0, %s44
    %s59 = sphi 0, %s45
    %s65 = sphi 0, %s67
    %s68 = sphi 0, %s65
    %s69 = sphi 0, %s68
    %s85 = sphi 0, %s69
  $region4: #{discriminator_forward.5} parent=0 // loop_header_branch
    %11 = sbr.rel (%p9) target = $region8
  $region5: #{discriminator_forward.5} parent=0 // loop_body
    %s13 = ssub.s32 %s8, 1
    %s14 = ssub.s32 %s8, 2
    %s15 = sadd.s32 %s8, 1
    %s16 = ssub.s32 %s8, %s15
    %p17 = scmp.eq.s32.totalorder %s16, 0
    %s19 = sadd.s32 %s18, 1
    %s20 = scalar_select %p17, %s18, %s19
    %p23 = pneg %p17
    %p24 = scmp.eq.s32.totalorder %s8, 1
    %p25 = por %p23, %p24
    %p26 = scmp.ne.s32.totalorder %s18, %s21
    %p27 = scmp.eq.s32.totalorder %s8, 0
    %p28 = por %p26, %p27
    %p29 = scmp.ne.s32.totalorder %s18, %s21
    %p30 = scmp.eq.s32.totalorder %s13, 1
    %p31 = por %p29, %p30
    %p32 = scmp.ne.s32.totalorder %s21, %s22
    %p33 = scmp.eq.s32.totalorder %s13, 0
    %p34 = por %p32, %p33
    %p35 = scmp.ne.s32.totalorder %s21, %s22
    %p36 = scmp.eq.s32.totalorder %s14, 1
    %p37 = por %p35, %p36
    %p39 = scmp.ne.s32.totalorder %s22, %s38
    %p40 = scmp.eq.s32.totalorder %s14, 0
    %p41 = por %p39, %p40
    %s43 = sadd.s32 %s42, 1
    %p46 = scmp.eq.s32.totalorder %s8, 1
    %p47 = scmp.ne.s32.totalorder %s42, %s44
    %p48 = scmp.eq.s32.totalorder %s8, 0
    %p49 = por %p47, %p48
    %p50 = scmp.ne.s32.totalorder %s42, %s44
    %p51 = scmp.eq.s32.totalorder %s13, 1
    %p52 = por %p50, %p51
    %p53 = scmp.ne.s32.totalorder %s44, %s45
    %p54 = scmp.eq.s32.totalorder %s13, 0
    %p55 = por %p53, %p54
    %p56 = scmp.ne.s32.totalorder %s44, %s45
    %p57 = scmp.eq.s32.totalorder %s14, 1
    %p58 = por %p56, %p57
    %p60 = scmp.ne.s32.totalorder %s45, %s59
    %p61 = scmp.eq.s32.totalorder %s14, 0
    %p62 = por %p60, %p61
    %s63 = ssub.s32 %s8, %s15
    %p64 = scmp.eq.s32.totalorder %s63, 0
    %s66 = sadd.s32 %s65, 1
    %s67 = scalar_select %p64, %s65, %s66
    %p70 = pneg %p64
    %p71 = scmp.eq.s32.totalorder %s8, 1
    %p72 = por %p70, %p71
    %p73 = scmp.ne.s32.totalorder %s65, %s68
    %p74 = scmp.eq.s32.totalorder %s8, 0
    %p75 = por %p73, %p74
    %p76 = scmp.ne.s32.totalorder %s65, %s68
    %p77 = scmp.eq.s32.totalorder %s13, 1
    %p78 = por %p76, %p77
    %p79 = scmp.ne.s32.totalorder %s68, %s69
    %p80 = scmp.eq.s32.totalorder %s13, 0
    %p81 = por %p79, %p80
    %p82 = scmp.ne.s32.totalorder %s68, %s69
    %p83 = scmp.eq.s32.totalorder %s14, 1
    %p84 = por %p82, %p83
    %p86 = scmp.ne.s32.totalorder %s69, %s85
    %p87 = scmp.eq.s32.totalorder %s14, 0
    %p88 = por %p86, %p87
    %p89 = scmp.le.s32.totalorder 1, %s8
    %p90 = scmp.lt.s32.totalorder %s8, 3
    %p91 = pnand %p89, %p90
    %p92 = pneg %p91
    // Predicated region
    $region9: #{discriminator_forward.5} parent=5 // pred_check
      _
    $region10: #{discriminator_forward.5} parent=5 // pred_check_branch
      %94 = sbr.rel (%p91) target = $region12
    $region11: #{discriminator_forward.5} parent=5 // pred_region
      %s95 = ssub.s32 %s8, 1
      // Predicated region
      $region13: #{discriminator_forward.5} parent=11 // pred_check
        %p96 = pneg %p55
      $region14: #{discriminator_forward.5} parent=11 // pred_check_branch
        %98 = sbr.rel (%p96) target = $region16
      $region15: #{discriminator_forward.5} parent=11 // pred_region
        _
      $region16: #{discriminator_forward.5} parent=11 // pred_fallthru
        _
    $region12: #{discriminator_forward.5} parent=5 // pred_fallthru
      _
    %p99 = scmp.lt.s32.totalorder %s8, 2
    // Predicated region
    $region17: #{discriminator_forward.5} parent=5 // pred_check
      %p100 = pneg %p99
    $region18: #{discriminator_forward.5} parent=5 // pred_check_branch
      %102 = sbr.rel (%p100) target = $region20
    $region19: #{discriminator_forward.5} parent=5 // pred_region
      // Predicated region
      $region21: #{discriminator_forward.5} parent=19 // pred_check
        %p103 = pneg %p28
      $region22: #{discriminator_forward.5} parent=19 // pred_check_branch
        %105 = sbr.rel (%p103) target = $region24
      $region23: #{discriminator_forward.5} parent=19 // pred_region
        %p106 = scmp.lt.s32.totalorder %s8, 1
        %s107 = scalar_select %p106, %s8, 1
        %s108 = smul.addr %s107, 20
        %s109 = smul.addr %s108, 4
        %s110 = scalar_lea.vmem %s0, %s109
      $region24: #{discriminator_forward.5} parent=19 // pred_fallthru
        _
    $region20: #{discriminator_forward.5} parent=5 // pred_fallthru
      _
    %p111 = scmp.le.s32.totalorder 1, %s8
    %p112 = scmp.lt.s32.totalorder %s8, 3
    %p113 = pnand %p111, %p112
    %p114 = pneg %p113
    // Predicated region
    $region25: #{discriminator_forward.5} parent=5 // pred_check
      _
    $region26: #{discriminator_forward.5} parent=5 // pred_check_branch
      %116 = sbr.rel (%p113) target = $region28
    $region27: #{discriminator_forward.5} parent=5 // pred_region
      %s117 = ssub.s32 %s8, 1
      %p118 = scmp.lt.s32.totalorder %s13, 1
      %s119 = scalar_select %p118, %s13, 1
      %s120 = smul.addr %s119, 20
      %s121 = smul.addr %s120, 4
      %s122 = scalar_lea.vmem %s0, %s121
      %p123 = pneg %p34
      %p124 = pneg %p31
      %p125 = pneg %p55
      %p126 = pneg %p52
      %p127 = pneg %p81
      %p128 = pneg %p78
      %p129 = scmp.lt.s32.totalorder %s13, 1
      %s130 = scalar_select %p129, %s13, 1
      %s131 = smul.addr %s130, 8
      %s132 = smul.addr %s131, 4
      %s133 = scalar_lea.vmem %s2, %s132
      %p134 = scmp.lt.s32.totalorder %s13, 1
      %s135 = scalar_select %p134, %s13, 1
      %s136 = smul.addr %s135, 20
      %s137 = smul.addr %s136, 4
      %s138 = scalar_lea.vmem %s0, %s137
      %p139 = scmp.lt.s32.totalorder %s13, 1
      %s140 = scalar_select %p139, %s13, 1
      %s141 = smul.addr %s140, 8
      %s142 = smul.addr %s141, 4
      %s143 = scalar_lea.vmem %s2, %s142
      %v145 = vld [vmem:[%s138] sm:$0xff]
      %v146 = vld [vmem:[%s138 + $0x8] sm:$0xff]
      %v147 = vld [vmem:[%s138 + $0x10] sm:$0xff]
      %v148 = vld [vmem:[%s138 + $0x18] sm:$0xff]
      %v149 = vld [vmem:[%s138 + $0x20] sm:$0xff]
      %v150 = vld [vmem:[%s138 + $0x28] sm:$0xff]
      %v151 = vld [vmem:[%s138 + $0x30] sm:$0xff]
      %v152 = vld [vmem:[%s138 + $0x38] sm:$0xff]
      %v153 = vld [vmem:[%s1] sm:$0xf]
      %v154 = vld [vmem:[%s1 + $0x4] sm:$0xf]
      %v155 = vld [vmem:[%s1 + $0x8] sm:$0xf]
      %v156 = vld [vmem:[%s1 + $0xc] sm:$0xf]
      %v157 = vld [vmem:[%s1 + $0x10] sm:$0xf]
      %v158 = vld [vmem:[%s1 + $0x14] sm:$0xf]
      %v159 = vld [vmem:[%s1 + $0x18] sm:$0xf]
      %v160 = vld [vmem:[%s1 + $0x1c] sm:$0xf]
      %v161 = vld [vmem:[%s1 + $0x20] sm:$0xf]
      %v162 = vld [vmem:[%s1 + $0x24] sm:$0xf]
      %v163 = vld [vmem:[%s1 + $0x28] sm:$0xf]
      %v164 = vld [vmem:[%s1 + $0x2c] sm:$0xf]
      %v165 = vld [vmem:[%s1 + $0x30] sm:$0xf]
      %v166 = vld [vmem:[%s1 + $0x34] sm:$0xf]
      %v167 = vld [vmem:[%s1 + $0x38] sm:$0xf]
      %v168 = vld [vmem:[%s1 + $0x3c] sm:$0xf]
      %v169 = vld [vmem:[%s1 + $0x40] sm:$0xf]
      %v170 = vld [vmem:[%s1 + $0x44] sm:$0xf]
      %v171 = vld [vmem:[%s1 + $0x48] sm:$0xf]
      %v172 = vld [vmem:[%s1 + $0x4c] sm:$0xf]
      %v173 = vld [vmem:[%s1 + $0x50] sm:$0xf]
      %v174 = vld [vmem:[%s1 + $0x54] sm:$0xf]
      %v175 = vld [vmem:[%s1 + $0x58] sm:$0xf]
      %v176 = vld [vmem:[%s1 + $0x5c] sm:$0xf]
      %v177 = vld [vmem:[%s1 + $0x60] sm:$0xf]
      %v178 = vld [vmem:[%s1 + $0x64] sm:$0xf]
      %v179 = vld [vmem:[%s1 + $0x68] sm:$0xf]
      %v180 = vld [vmem:[%s1 + $0x6c] sm:$0xf]
      %v181 = vld [vmem:[%s1 + $0x70] sm:$0xf]
      %v182 = vld [vmem:[%s1 + $0x74] sm:$0xf]
      %v183 = vld [vmem:[%s1 + $0x78] sm:$0xf]
      %v184 = vld [vmem:[%s1 + $0x7c] sm:$0xf]
      %v185 = vld [vmem:[%s138 + $0x40] sm:$0x11]
      %s186 = scalar_lea.vmem %s1, 128
      %v187 = vld [vmem:[%s186] sm:$0xf]
      %v188 = vld [vmem:[%s186 + $0x4] sm:$0xf]
      %v189 = vld [vmem:[%s186 + $0x8] sm:$0xf]
      %v190 = vld [vmem:[%s186 + $0xc] sm:$0xf]
      %v191 = vld [vmem:[%s186 + $0x10] sm:$0xf]
      %v192 = vld [vmem:[%s186 + $0x14] sm:$0xf]
      %v193 = vld [vmem:[%s186 + $0x18] sm:$0xf]
      %v194 = vld [vmem:[%s186 + $0x1c] sm:$0xf]
      %v195 = vld [vmem:[%s186 + $0x20] sm:$0xf]
      %v196 = vld [vmem:[%s186 + $0x24] sm:$0xf]
      %v197 = vld [vmem:[%s186 + $0x28] sm:$0xf]
      %v198 = vld [vmem:[%s186 + $0x2c] sm:$0xf]
      %v199 = vld [vmem:[%s186 + $0x30] sm:$0xf]
      %v200 = vld [vmem:[%s186 + $0x34] sm:$0xf]
      %v201 = vld [vmem:[%s186 + $0x38] sm:$0xf]
      %v202 = vld [vmem:[%s186 + $0x3c] sm:$0xf]
      %v203 = vld [vmem:[%s186 + $0x40] sm:$0xf]
      %v204 = vld [vmem:[%s186 + $0x44] sm:$0xf]
      %v205 = vld [vmem:[%s186 + $0x48] sm:$0xf]
      %v206 = vld [vmem:[%s186 + $0x4c] sm:$0xf]
      %v207 = vld [vmem:[%s186 + $0x50] sm:$0xf]
      %v208 = vld [vmem:[%s186 + $0x54] sm:$0xf]
      %v209 = vld [vmem:[%s186 + $0x58] sm:$0xf]
      %v210 = vld [vmem:[%s186 + $0x5c] sm:$0xf]
      %v211 = vld [vmem:[%s186 + $0x60] sm:$0xf]
      %v212 = vld [vmem:[%s186 + $0x64] sm:$0xf]
      %v213 = vld [vmem:[%s186 + $0x68] sm:$0xf]
      %v214 = vld [vmem:[%s186 + $0x6c] sm:$0xf]
      %v215 = vld [vmem:[%s186 + $0x70] sm:$0xf]
      %v216 = vld [vmem:[%s186 + $0x74] sm:$0xf]
      %v217 = vld [vmem:[%s186 + $0x78] sm:$0xf]
      %v218 = vld [vmem:[%s186 + $0x7c] sm:$0xf]
      %v228 = vunpack.c.l.b16 %v145
      %v229 = vunpack.c.h.b16 %v145
      %v230 = vunpack.c.l.b16 %v146
      %v231 = vunpack.c.h.b16 %v146
      %v232 = vunpack.c.l.b16 %v147
      %v233 = vunpack.c.h.b16 %v147
      %v234 = vunpack.c.l.b16 %v148
      %v235 = vunpack.c.h.b16 %v148
      %v236 = vunpack.c.l.b16 %v149
      %v237 = vunpack.c.h.b16 %v149
      %v238 = vunpack.c.l.b16 %v150
      %v239 = vunpack.c.h.b16 %v150
      %v240 = vunpack.c.l.b16 %v151
      %v241 = vunpack.c.h.b16 %v151
      %v242 = vunpack.c.l.b16 %v152
      %v243 = vunpack.c.h.b16 %v152
      %v244 = vunpack.c.l.b16 %v185
      %v245 = vunpack.c.h.b16 %v185
      %v246 = vpack.c.b16 %v230, %v228
      %v247 = vpack.c.b16 %v231, %v229
      %v248 = vpack.c.b16 %v234, %v232
      %v249 = vpack.c.b16 %v235, %v233
      %v250 = vpack.c.b16 %v238, %v236
      %v251 = vpack.c.b16 %v239, %v237
      %v252 = vpack.c.b16 %v242, %v240
      %v253 = vpack.c.b16 %v243, %v241
      %v254 = vpack.c.b16 %v244, %v244
      %v255 = vpack.c.b16 %v245, %v245
      %vm256 = vsmask.f32 7424
      %v258 = vshrl.u32 %v246, 16
      %v260 = vshll.u32 %v246, 16
      %v262 = vrot.slane %v260, 1
      %v263 = vor.u32 %v258, %v262
      %v265 = vshll.u32 %v248, 16
      %v267 = vrot.slane %v265, 1
      %v268 = vsel %vm256, %v263, %v267
      %v270 = vshrl.u32 %v247, 16
      %v272 = vshll.u32 %v247, 16
      %v274 = vrot.slane %v272, 1
      %v275 = vor.u32 %v270, %v274
      %v277 = vshll.u32 %v249, 16
      %v279 = vrot.slane %v277, 1
      %v280 = vsel %vm256, %v275, %v279
      %v281 = vshrl.u32 %v248, 16
      %v283 = vor.u32 %v281, %v267
      %v285 = vshll.u32 %v250, 16
      %v287 = vrot.slane %v285, 1
      %v288 = vsel %vm256, %v283, %v287
      %v289 = vshrl.u32 %v249, 16
      %v291 = vor.u32 %v289, %v279
      %v293 = vshll.u32 %v251, 16
      %v295 = vrot.slane %v293, 1
      %v296 = vsel %vm256, %v291, %v295
      %v297 = vshrl.u32 %v250, 16
      %v299 = vor.u32 %v297, %v287
      %v301 = vshll.u32 %v252, 16
      %v303 = vrot.slane %v301, 1
      %v304 = vsel %vm256, %v299, %v303
      %v305 = vshrl.u32 %v251, 16
      %v307 = vor.u32 %v305, %v295
      %v309 = vshll.u32 %v253, 16
      %v311 = vrot.slane %v309, 1
      %v312 = vsel %vm256, %v307, %v311
      %v313 = vshrl.u32 %v252, 16
      %v315 = vor.u32 %v313, %v303
      %v317 = vshll.u32 %v254, 16
      %v319 = vrot.slane %v317, 1
      %v320 = vsel %vm256, %v315, %v319
      %v321 = vshrl.u32 %v253, 16
      %v323 = vor.u32 %v321, %v311
      %v325 = vshll.u32 %v255, 16
      %v327 = vrot.slane %v325, 1
      %v328 = vsel %vm256, %v323, %v327
      %v369 = vunpack.c.l.b16 %v187
      %v370 = vunpack.c.l.b16 %v188
      %v371 = vunpack.c.l.b16 %v189
      %v372 = vunpack.c.l.b16 %v190
      %v373 = vunpack.c.l.b16 %v191
      %v374 = vunpack.c.l.b16 %v192
      %v375 = vunpack.c.l.b16 %v193
      %v376 = vunpack.c.l.b16 %v194
      %v377 = vunpack.c.l.b16 %v195
      %v378 = vunpack.c.l.b16 %v196
      %v379 = vunpack.c.l.b16 %v197
      %v380 = vunpack.c.l.b16 %v198
      %v381 = vunpack.c.l.b16 %v199
      %v382 = vunpack.c.l.b16 %v200
      %v383 = vunpack.c.l.b16 %v201
      %v384 = vunpack.c.l.b16 %v202
      %v385 = vunpack.c.l.b16 %v203
      %v386 = vunpack.c.l.b16 %v204
      %v387 = vunpack.c.l.b16 %v205
      %v388 = vunpack.c.l.b16 %v206
      %v389 = vunpack.c.l.b16 %v207
      %v390 = vunpack.c.l.b16 %v208
      %v391 = vunpack.c.l.b16 %v209
      %v392 = vunpack.c.l.b16 %v210
      %v393 = vunpack.c.l.b16 %v211
      %v394 = vunpack.c.l.b16 %v212
      %v395 = vunpack.c.l.b16 %v213
      %v396 = vunpack.c.l.b16 %v214
      %v397 = vunpack.c.l.b16 %v215
      %v398 = vunpack.c.l.b16 %v216
      %v399 = vunpack.c.l.b16 %v217
      %v400 = vunpack.c.l.b16 %v218
      %v401 = vpack.c.b16 %v370, %v369
      %v402 = vpack.c.b16 %v372, %v371
      %v403 = vpack.c.b16 %v374, %v373
      %v404 = vpack.c.b16 %v376, %v375
      %v405 = vpack.c.b16 %v378, %v377
      %v406 = vpack.c.b16 %v380, %v379
      %v407 = vpack.c.b16 %v382, %v381
      %v408 = vpack.c.b16 %v384, %v383
      %v409 = vpack.c.b16 %v386, %v385
      %v410 = vpack.c.b16 %v388, %v387
      %v411 = vpack.c.b16 %v390, %v389
      %v412 = vpack.c.b16 %v392, %v391
      %v413 = vpack.c.b16 %v394, %v393
      %v414 = vpack.c.b16 %v396, %v395
      %v415 = vpack.c.b16 %v398, %v397
      %v416 = vpack.c.b16 %v400, %v399
      %433 = vmatprep.subr.bf16.mxu0 0
      %434 = vmatpush1.bf16.msra.mxu0 %v401
      %435 = vmatprep.subr.bf16.mxu0 0
      %436 = vmatpush1.bf16.msra.mxu0 %v402
      %437 = vmatprep.subr.bf16.mxu0 0
      %438 = vmatpush1.bf16.msra.mxu0 %v403
      %439 = vmatprep.subr.bf16.mxu0 0
      %440 = vmatpush1.bf16.msra.mxu0 %v404
      %441 = vmatprep.subr.bf16.mxu0 0
      %442 = vmatpush1.bf16.msra.mxu0 %v405
      %443 = vmatprep.subr.bf16.mxu0 0
      %444 = vmatpush1.bf16.msra.mxu0 %v406
      %445 = vmatprep.subr.bf16.mxu0 0
      %446 = vmatpush1.bf16.msra.mxu0 %v407
      %447 = vmatprep.subr.bf16.mxu0 0
      %448 = vmatpush1.bf16.msra.mxu0 %v408
      %449 = vmatprep.subr.bf16.mxu0 0
      %450 = vmatpush1.bf16.msra.mxu0 %v409
      %451 = vmatprep.subr.bf16.mxu0 0
      %452 = vmatpush1.bf16.msra.mxu0 %v410
      %453 = vmatprep.subr.bf16.mxu0 0
      %454 = vmatpush1.bf16.msra.mxu0 %v411
      %455 = vmatprep.subr.bf16.mxu0 0
      %456 = vmatpush1.bf16.msra.mxu0 %v412
      %457 = vmatprep.subr.bf16.mxu0 0
      %458 = vmatpush1.bf16.msra.mxu0 %v413
      %459 = vmatprep.subr.bf16.mxu0 0
      %460 = vmatpush1.bf16.msra.mxu0 %v414
      %461 = vmatprep.subr.bf16.mxu0 0
      %462 = vmatpush1.bf16.msra.mxu0 %v415
      %463 = vmatprep.subr.bf16.mxu0 0
      %464 = vmatpush1.bf16.msra.mxu0 %v416
      %465 = vmatprep.mubr.bf16.mxu0 %v280
      %466 = vmatmul.mubr.bf16.gmra.mrb[0].mxu0 %v268
      %v467 = vpop.f32.mrb[0].mxu0
      %v468 = vadd.f32 0.0, %v467
      %v469 = vpop.f32.mrb[0].mxu0
      %v470 = vpop.f32.mrb[0].mxu0
      %v471 = vadd.f32 0.0, %v470
      %v472 = vpop.f32.mrb[0].mxu0
      %473 = vmatprep.mubr.bf16.mxu0 %v296
      %474 = vmatmul.mubr.bf16.gmra.mrb[0].mxu0 %v288
      %v475 = vpop.f32.mrb[0].mxu0
      %v476 = vadd.f32 0.0, %v475
      %v477 = vpop.f32.mrb[0].mxu0
      %v478 = vpop.f32.mrb[0].mxu0
      %v479 = vadd.f32 0.0, %v478
      %v480 = vpop.f32.mrb[0].mxu0
      %481 = vmatprep.mubr.bf16.mxu0 %v312
      %482 = vmatmul.mubr.bf16.gmra.mrb[0].mxu0 %v304
      %v483 = vpop.f32.mrb[0].mxu0
      %v484 = vadd.f32 0.0, %v483
      %v485 = vpop.f32.mrb[0].mxu0
      %v486 = vpop.f32.mrb[0].mxu0
      %v487 = vadd.f32 0.0, %v486
      %v488 = vpop.f32.mrb[0].mxu0
      %489 = vmatprep.mubr.bf16.mxu0 %v328
      %490 = vmatmul.mubr.bf16.gmra.mrb[0].mxu0 %v320
      %v491 = vpop.f32.mrb[0].mxu0
      %v492 = vadd.f32 0.0, %v491
      %v493 = vpop.f32.mrb[0].mxu0
      %v494 = vpop.f32.mrb[0].mxu0
      %v495 = vadd.f32 0.0, %v494
      %v496 = vpop.f32.mrb[0].mxu0
      %497 = vdwg.mxu0
      %v538 = vunpack.c.l.b16 %v153
      %v539 = vunpack.c.l.b16 %v154
      %v540 = vunpack.c.l.b16 %v155
      %v541 = vunpack.c.l.b16 %v156
      %v542 = vunpack.c.l.b16 %v157
      %v543 = vunpack.c.l.b16 %v158
      %v544 = vunpack.c.l.b16 %v159
      %v545 = vunpack.c.l.b16 %v160
      %v546 = vunpack.c.l.b16 %v161
      %v547 = vunpack.c.l.b16 %v162
      %v548 = vunpack.c.l.b16 %v163
      %v549 = vunpack.c.l.b16 %v164
      %v550 = vunpack.c.l.b16 %v165
      %v551 = vunpack.c.l.b16 %v166
      %v552 = vunpack.c.l.b16 %v167
      %v553 = vunpack.c.l.b16 %v168
      %v554 = vunpack.c.l.b16 %v169
      %v555 = vunpack.c.l.b16 %v170
      %v556 = vunpack.c.l.b16 %v171
      %v557 = vunpack.c.l.b16 %v172
      %v558 = vunpack.c.l.b16 %v173
      %v559 = vunpack.c.l.b16 %v174
      %v560 = vunpack.c.l.b16 %v175
      %v561 = vunpack.c.l.b16 %v176
      %v562 = vunpack.c.l.b16 %v177
      %v563 = vunpack.c.l.b16 %v178
      %v564 = vunpack.c.l.b16 %v179
      %v565 = vunpack.c.l.b16 %v180
      %v566 = vunpack.c.l.b16 %v181
      %v567 = vunpack.c.l.b16 %v182
      %v568 = vunpack.c.l.b16 %v183
      %v569 = vunpack.c.l.b16 %v184
      %v570 = vpack.c.b16 %v539, %v538
      %v571 = vpack.c.b16 %v541, %v540
      %v572 = vpack.c.b16 %v543, %v542
      %v573 = vpack.c.b16 %v545, %v544
      %v574 = vpack.c.b16 %v547, %v546
      %v575 = vpack.c.b16 %v549, %v548
      %v576 = vpack.c.b16 %v551, %v550
      %v577 = vpack.c.b16 %v553, %v552
      %v578 = vpack.c.b16 %v555, %v554
      %v579 = vpack.c.b16 %v557, %v556
      %v580 = vpack.c.b16 %v559, %v558
      %v581 = vpack.c.b16 %v561, %v560
      %v582 = vpack.c.b16 %v563, %v562
      %v583 = vpack.c.b16 %v565, %v564
      %v584 = vpack.c.b16 %v567, %v566
      %v585 = vpack.c.b16 %v569, %v568
      %602 = vmatprep.subr.bf16.mxu0 0
      %603 = vmatpush1.bf16.msra.mxu0 %v570
      %604 = vmatprep.subr.bf16.mxu0 0
      %605 = vmatpush1.bf16.msra.mxu0 %v571
      %606 = vmatprep.subr.bf16.mxu0 0
      %607 = vmatpush1.bf16.msra.mxu0 %v572
      %608 = vmatprep.subr.bf16.mxu0 0
      %609 = vmatpush1.bf16.msra.mxu0 %v573
      %610 = vmatprep.subr.bf16.mxu0 0
      %611 = vmatpush1.bf16.msra.mxu0 %v574
      %612 = vmatprep.subr.bf16.mxu0 0
      %613 = vmatpush1.bf16.msra.mxu0 %v575
      %614 = vmatprep.subr.bf16.mxu0 0
      %615 = vmatpush1.bf16.msra.mxu0 %v576
      %616 = vmatprep.subr.bf16.mxu0 0
      %617 = vmatpush1.bf16.msra.mxu0 %v577
      %618 = vmatprep.subr.bf16.mxu0 0
      %619 = vmatpush1.bf16.msra.mxu0 %v578
      %620 = vmatprep.subr.bf16.mxu0 0
      %621 = vmatpush1.bf16.msra.mxu0 %v579
      %622 = vmatprep.subr.bf16.mxu0 0
      %623 = vmatpush1.bf16.msra.mxu0 %v580
      %624 = vmatprep.subr.bf16.mxu0 0
      %625 = vmatpush1.bf16.msra.mxu0 %v581
      %626 = vmatprep.subr.bf16.mxu0 0
      %627 = vmatpush1.bf16.msra.mxu0 %v582
      %628 = vmatprep.subr.bf16.mxu0 0
      %629 = vmatpush1.bf16.msra.mxu0 %v583
      %630 = vmatprep.subr.bf16.mxu0 0
      %631 = vmatpush1.bf16.msra.mxu0 %v584
      %632 = vmatprep.subr.bf16.mxu0 0
      %633 = vmatpush1.bf16.msra.mxu0 %v585
      %634 = vmatprep.mubr.bf16.mxu0 %v247
      %635 = vmatmul.mubr.bf16.gmra.mrb[0].mxu0 %v246
      %v636 = vpop.f32.mrb[0].mxu0
      %v637 = vadd.f32 %v468, %v636
      %v638 = vpop.f32.mrb[0].mxu0
      %v639 = vpop.f32.mrb[0].mxu0
      %v640 = vadd.f32 %v471, %v639
      %v641 = vpop.f32.mrb[0].mxu0
      %642 = vmatprep.mubr.bf16.mxu0 %v249
      %643 = vmatmul.mubr.bf16.gmra.mrb[0].mxu0 %v248
      %v644 = vpop.f32.mrb[0].mxu0
      %v645 = vadd.f32 %v476, %v644
      %v646 = vpop.f32.mrb[0].mxu0
      %v647 = vpop.f32.mrb[0].mxu0
      %v648 = vadd.f32 %v479, %v647
      %v649 = vpop.f32.mrb[0].mxu0
      %650 = vmatprep.mubr.bf16.mxu0 %v251
      %651 = vmatmul.mubr.bf16.gmra.mrb[0].mxu0 %v250
      %v652 = vpop.f32.mrb[0].mxu0
      %v653 = vadd.f32 %v484, %v652
      %v654 = vpop.f32.mrb[0].mxu0
      %v655 = vpop.f32.mrb[0].mxu0
      %v656 = vadd.f32 %v487, %v655
      %v657 = vpop.f32.mrb[0].mxu0
      %658 = vmatprep.mubr.bf16.mxu0 %v253
      %659 = vmatmul.mubr.bf16.gmra.mrb[0].mxu0 %v252
      %v660 = vpop.f32.mrb[0].mxu0
      %v661 = vadd.f32 %v492, %v660
      %v662 = vpop.f32.mrb[0].mxu0
      %v663 = vpop.f32.mrb[0].mxu0
      %v664 = vadd.f32 %v495, %v663
      %v665 = vpop.f32.mrb[0].mxu0
      %666 = vdwg.mxu0
      %v667 = vld [vmem:[%s138 + $0x40] sm:$0xff]
      %s668 = scalar_lea.vmem %s1, 256
      %v669 = vld [vmem:[%s668] sm:$0xf]
      %v670 = vld [vmem:[%s668 + $0x4] sm:$0xf]
      %v671 = vld [vmem:[%s668 + $0x8] sm:$0xf]
      %v672 = vld [vmem:[%s668 + $0xc] sm:$0xf]
      %v673 = vld [vmem:[%s668 + $0x10] sm:$0xf]
      %v674 = vld [vmem:[%s668 + $0x14] sm:$0xf]
      %v675 = vld [vmem:[%s668 + $0x18] sm:$0xf]
      %v676 = vld [vmem:[%s668 + $0x1c] sm:$0xf]
      %v677 = vld [vmem:[%s668 + $0x20] sm:$0xf]
      %v678 = vld [vmem:[%s668 + $0x24] sm:$0xf]
      %v679 = vld [vmem:[%s668 + $0x28] sm:$0xf]
      %v680 = vld [vmem:[%s668 + $0x2c] sm:$0xf]
      %v681 = vld [vmem:[%s668 + $0x30] sm:$0xf]
      %v682 = vld [vmem:[%s668 + $0x34] sm:$0xf]
      %v683 = vld [vmem:[%s668 + $0x38] sm:$0xf]
      %v684 = vld [vmem:[%s668 + $0x3c] sm:$0xf]
      %v685 = vld [vmem:[%s668 + $0x40] sm:$0xf]
      %v686 = vld [vmem:[%s668 + $0x44] sm:$0xf]
      %v687 = vld [vmem:[%s668 + $0x48] sm:$0xf]
      %v688 = vld [vmem:[%s668 + $0x4c] sm:$0xf]
      %v689 = vld [vmem:[%s668 + $0x50] sm:$0xf]
      %v690 = vld [vmem:[%s668 + $0x54] sm:$0xf]
      %v691 = vld [vmem:[%s668 + $0x58] sm:$0xf]
      %v692 = vld [vmem:[%s668 + $0x5c] sm:$0xf]
      %v693 = vld [vmem:[%s668 + $0x60] sm:$0xf]
      %v694 = vld [vmem:[%s668 + $0x64] sm:$0xf]
      %v695 = vld [vmem:[%s668 + $0x68] sm:$0xf]
      %v696 = vld [vmem:[%s668 + $0x6c] sm:$0xf]
      %v697 = vld [vmem:[%s668 + $0x70] sm:$0xf]
      %v698 = vld [vmem:[%s668 + $0x74] sm:$0xf]
      %v699 = vld [vmem:[%s668 + $0x78] sm:$0xf]
      %v700 = vld [vmem:[%s668 + $0x7c] sm:$0xf]
      %v702 = vunpack.c.l.b16 %v667
      %v703 = vunpack.c.h.b16 %v667
      %v704 = vpack.c.b16 %v232, %v230
      %v705 = vpack.c.b16 %v233, %v231
      %v706 = vpack.c.b16 %v236, %v234
      %v707 = vpack.c.b16 %v237, %v235
      %v708 = vpack.c.b16 %v240, %v238
      %v709 = vpack.c.b16 %v241, %v239
      %v710 = vpack.c.b16 %v702, %v242
      %v711 = vpack.c.b16 %v703, %v243
      %v752 = vunpack.c.l.b16 %v669
      %v753 = vunpack.c.l.b16 %v670
      %v754 = vunpack.c.l.b16 %v671
      %v755 = vunpack.c.l.b16 %v672
      %v756 = vunpack.c.l.b16 %v673
      %v757 = vunpack.c.l.b16 %v674
      %v758 = vunpack.c.l.b16 %v675
      %v759 = vunpack.c.l.b16 %v676
      %v760 = vunpack.c.l.b16 %v677
      %v761 = vunpack.c.l.b16 %v678
      %v762 = vunpack.c.l.b16 %v679
      %v763 = vunpack.c.l.b16 %v680
      %v764 = vunpack.c.l.b16 %v681
      %v765 = vunpack.c.l.b16 %v682
      %v766 = vunpack.c.l.b16 %v683
      %v767 = vunpack.c.l.b16 %v684
      %v768 = vunpack.c.l.b16 %v685
      %v769 = vunpack.c.l.b16 %v686
      %v770 = vunpack.c.l.b16 %v687
      %v771 = vunpack.c.l.b16 %v688
      %v772 = vunpack.c.l.b16 %v689
      %v773 = vunpack.c.l.b16 %v690
      %v774 = vunpack.c.l.b16 %v691
      %v775 = vunpack.c.l.b16 %v692
      %v776 = vunpack.c.l.b16 %v693
      %v777 = vunpack.c.l.b16 %v694
      %v778 = vunpack.c.l.b16 %v695
      %v779 = vunpack.c.l.b16 %v696
      %v780 = vunpack.c.l.b16 %v697
      %v781 = vunpack.c.l.b16 %v698
      %v782 = vunpack.c.l.b16 %v699
      %v783 = vunpack.c.l.b16 %v700
      %v784 = vpack.c.b16 %v753, %v752
      %v785 = vpack.c.b16 %v755, %v754
      %v786 = vpack.c.b16 %v757, %v756
      %v787 = vpack.c.b16 %v759, %v758
      %v788 = vpack.c.b16 %v761, %v760
      %v789 = vpack.c.b16 %v763, %v762
      %v790 = vpack.c.b16 %v765, %v764
      %v791 = vpack.c.b16 %v767, %v766
      %v792 = vpack.c.b16 %v769, %v768
      %v793 = vpack.c.b16 %v771, %v770
      %v794 = vpack.c.b16 %v773, %v772
      %v795 = vpack.c.b16 %v775, %v774
      %v796 = vpack.c.b16 %v777, %v776
      %v797 = vpack.c.b16 %v779, %v778
      %v798 = vpack.c.b16 %v781, %v780
      %v799 = vpack.c.b16 %v783, %v782
      %816 = vmatprep.subr.bf16.mxu0 0
      %817 = vmatpush1.bf16.msra.mxu0 %v784
      %818 = vmatprep.subr.bf16.mxu0 0
      %819 = vmatpush1.bf16.msra.mxu0 %v785
      %820 = vmatprep.subr.bf16.mxu0 0
      %821 = vmatpush1.bf16.msra.mxu0 %v786
      %822 = vmatprep.subr.bf16.mxu0 0
      %823 = vmatpush1.bf16.msra.mxu0 %v787
      %824 = vmatprep.subr.bf16.mxu0 0
      %825 = vmatpush1.bf16.msra.mxu0 %v788
      %826 = vmatprep.subr.bf16.mxu0 0
      %827 = vmatpush1.bf16.msra.mxu0 %v789
      %828 = vmatprep.subr.bf16.mxu0 0
      %829 = vmatpush1.bf16.msra.mxu0 %v790
      %830 = vmatprep.subr.bf16.mxu0 0
      %831 = vmatpush1.bf16.msra.mxu0 %v791
      %832 = vmatprep.subr.bf16.mxu0 0
      %833 = vmatpush1.bf16.msra.mxu0 %v792
      %834 = vmatprep.subr.bf16.mxu0 0
      %835 = vmatpush1.bf16.msra.mxu0 %v793
      %836 = vmatprep.subr.bf16.mxu0 0
      %837 = vmatpush1.bf16.msra.mxu0 %v794
      %838 = vmatprep.subr.bf16.mxu0 0
      %839 = vmatpush1.bf16.msra.mxu0 %v795
      %840 = vmatprep.subr.bf16.mxu0 0
      %841 = vmatpush1.bf16.msra.mxu0 %v796
      %842 = vmatprep.subr.bf16.mxu0 0
      %843 = vmatpush1.bf16.msra.mxu0 %v797
      %844 = vmatprep.subr.bf16.mxu0 0
      %845 = vmatpush1.bf16.msra.mxu0 %v798
      %846 = vmatprep.subr.bf16.mxu0 0
      %847 = vmatpush1.bf16.msra.mxu0 %v799
      %848 = vmatprep.mubr.bf16.mxu0 %v705
      %849 = vmatmul.mubr.bf16.gmra.mrb[0].mxu0 %v704
      %v850 = vpop.f32.mrb[0].mxu0
      %v851 = vadd.f32 0.0, %v850
      %v852 = vpop.f32.mrb[0].mxu0
      %v853 = vpop.f32.mrb[0].mxu0
      %v854 = vadd.f32 0.0, %v853
      %v855 = vpop.f32.mrb[0].mxu0
      %856 = vmatprep.mubr.bf16.mxu0 %v707
      %857 = vmatmul.mubr.bf16.gmra.mrb[0].mxu0 %v706
      %v858 = vpop.f32.mrb[0].mxu0
      %v859 = vadd.f32 0.0, %v858
      %v860 = vpop.f32.mrb[0].mxu0
      %v861 = vpop.f32.mrb[0].mxu0
      %v862 = vadd.f32 0.0, %v861
      %v863 = vpop.f32.mrb[0].mxu0
      %864 = vmatprep.mubr.bf16.mxu0 %v709
      %865 = vmatmul.mubr.bf16.gmra.mrb[0].mxu0 %v708
      %v866 = vpop.f32.mrb[0].mxu0
      %v867 = vadd.f32 0.0, %v866
      %v868 = vpop.f32.mrb[0].mxu0
      %v869 = vpop.f32.mrb[0].mxu0
      %v870 = vadd.f32 0.0, %v869
      %v871 = vpop.f32.mrb[0].mxu0
      %872 = vmatprep.mubr.bf16.mxu0 %v711
      %873 = vmatmul.mubr.bf16.gmra.mrb[0].mxu0 %v710
      %v874 = vpop.f32.mrb[0].mxu0
      %v875 = vadd.f32 0.0, %v874
      %v876 = vpop.f32.mrb[0].mxu0
      %v877 = vpop.f32.mrb[0].mxu0
      %v878 = vadd.f32 0.0, %v877
      %v879 = vpop.f32.mrb[0].mxu0
      %880 = vdwg.mxu0
      %v881 = vadd.f32 %v637, %v851
      %v882 = vadd.f32 %v640, %v854
      %v883 = vadd.f32 %v645, %v859
      %v884 = vadd.f32 %v648, %v862
      %v885 = vadd.f32 %v653, %v867
      %v886 = vadd.f32 %v656, %v870
      %v887 = vadd.f32 %v661, %v875
      %v888 = vadd.f32 %v664, %v878
      %v889 = vld [vmem:[%s138 + $0x8] sm:$0xff]
      %v890 = vld [vmem:[%s138 + $0x10] sm:$0xff]
      %v891 = vld [vmem:[%s138 + $0x18] sm:$0xff]
      %v892 = vld [vmem:[%s138 + $0x20] sm:$0xff]
      %v893 = vld [vmem:[%s138 + $0x28] sm:$0xff]
      %v894 = vld [vmem:[%s138 + $0x30] sm:$0xff]
      %v895 = vld [vmem:[%s138 + $0x38] sm:$0xff]
      %v896 = vld [vmem:[%s138 + $0x40] sm:$0xff]
      %v897 = vld [vmem:[%s138 + $0x48] sm:$0x11]
      %s898 = scalar_lea.vmem %s1, 384
      %v899 = vld [vmem:[%s898] sm:$0xf]
      %v900 = vld [vmem:[%s898 + $0x4] sm:$0xf]
      %v901 = vld [vmem:[%s898 + $0x8] sm:$0xf]
      %v902 = vld [vmem:[%s898 + $0xc] sm:$0xf]
      %v903 = vld [vmem:[%s898 + $0x10] sm:$0xf]
      %v904 = vld [vmem:[%s898 + $0x14] sm:$0xf]
      %v905 = vld [vmem:[%s898 + $0x18] sm:$0xf]
      %v906 = vld [vmem:[%s898 + $0x1c] sm:$0xf]
      %v907 = vld [vmem:[%s898 + $0x20] sm:$0xf]
      %v908 = vld [vmem:[%s898 + $0x24] sm:$0xf]
      %v909 = vld [vmem:[%s898 + $0x28] sm:$0xf]
      %v910 = vld [vmem:[%s898 + $0x2c] sm:$0xf]
      %v911 = vld [vmem:[%s898 + $0x30] sm:$0xf]
      %v912 = vld [vmem:[%s898 + $0x34] sm:$0xf]
      %v913 = vld [vmem:[%s898 + $0x38] sm:$0xf]
      %v914 = vld [vmem:[%s898 + $0x3c] sm:$0xf]
      %v915 = vld [vmem:[%s898 + $0x40] sm:$0xf]
      %v916 = vld [vmem:[%s898 + $0x44] sm:$0xf]
      %v917 = vld [vmem:[%s898 + $0x48] sm:$0xf]
      %v918 = vld [vmem:[%s898 + $0x4c] sm:$0xf]
      %v919 = vld [vmem:[%s898 + $0x50] sm:$0xf]
      %v920 = vld [vmem:[%s898 + $0x54] sm:$0xf]
      %v921 = vld [vmem:[%s898 + $0x58] sm:$0xf]
      %v922 = vld [vmem:[%s898 + $0x5c] sm:$0xf]
      %v923 = vld [vmem:[%s898 + $0x60] sm:$0xf]
      %v924 = vld [vmem:[%s898 + $0x64] sm:$0xf]
      %v925 = vld [vmem:[%s898 + $0x68] sm:$0xf]
      %v926 = vld [vmem:[%s898 + $0x6c] sm:$0xf]
      %v927 = vld [vmem:[%s898 + $0x70] sm:$0xf]
      %v928 = vld [vmem:[%s898 + $0x74] sm:$0xf]
      %v929 = vld [vmem:[%s898 + $0x78] sm:$0xf]
      %v930 = vld [vmem:[%s898 + $0x7c] sm:$0xf]
      %v940 = vunpack.c.l.b16 %v889
      %v941 = vunpack.c.h.b16 %v889
      %v942 = vunpack.c.l.b16 %v890
      %v943 = vunpack.c.h.b16 %v890
      %v944 = vunpack.c.l.b16 %v891
      %v945 = vunpack.c.h.b16 %v891
      %v946 = vunpack.c.l.b16 %v892
      %v947 = vunpack.c.h.b16 %v892
      %v948 = vunpack.c.l.b16 %v893
      %v949 = vunpack.c.h.b16 %v893
      %v950 = vunpack.c.l.b16 %v894
      %v951 = vunpack.c.h.b16 %v894
      %v952 = vunpack.c.l.b16 %v895
      %v953 = vunpack.c.h.b16 %v895
      %v954 = vunpack.c.l.b16 %v896
      %v955 = vunpack.c.h.b16 %v896
      %v956 = vunpack.c.l.b16 %v897
      %v957 = vunpack.c.h.b16 %v897
      %v958 = vpack.c.b16 %v942, %v940
      %v959 = vpack.c.b16 %v943, %v941
      %v960 = vpack.c.b16 %v946, %v944
      %v961 = vpack.c.b16 %v947, %v945
      %v962 = vpack.c.b16 %v950, %v948
      %v963 = vpack.c.b16 %v951, %v949
      %v964 = vpack.c.b16 %v954, %v952
      %v965 = vpack.c.b16 %v955, %v953
      %v966 = vpack.c.b16 %v956, %v956
      %v967 = vpack.c.b16 %v957, %v957
      %v969 = vshrl.u32 %v958, 16
      %v971 = vshll.u32 %v958, 16
      %v973 = vrot.slane %v971, 1
      %v974 = vor.u32 %v969, %v973
      %v976 = vshll.u32 %v960, 16
      %v978 = vrot.slane %v976, 1
      %v979 = vsel %vm256, %v974, %v978
      %v981 = vshrl.u32 %v959, 16
      %v983 = vshll.u32 %v959, 16
      %v985 = vrot.slane %v983, 1
      %v986 = vor.u32 %v981, %v985
      %v988 = vshll.u32 %v961, 16
      %v990 = vrot.slane %v988, 1
      %v991 = vsel %vm256, %v986, %v990
      %v992 = vshrl.u32 %v960, 16
      %v994 = vor.u32 %v992, %v978
      %v996 = vshll.u32 %v962, 16
      %v998 = vrot.slane %v996, 1
      %v999 = vsel %vm256, %v994, %v998
      %v1000 = vshrl.u32 %v961, 16
      %v1002 = vor.u32 %v1000, %v990
      %v1004 = vshll.u32 %v963, 16
      %v1006 = vrot.slane %v1004, 1
      %v1007 = vsel %vm256, %v1002, %v1006
      %v1008 = vshrl.u32 %v962, 16
      %v1010 = vor.u32 %v1008, %v998
      %v1012 = vshll.u32 %v964, 16
      %v1014 = vrot.slane %v1012, 1
      %v1015 = vsel %vm256, %v1010, %v1014
      %v1016 = vshrl.u32 %v963, 16
      %v1018 = vor.u32 %v1016, %v1006
      %v1020 = vshll.u32 %v965, 16
      %v1022 = vrot.slane %v1020, 1
      %v1023 = vsel %vm256, %v1018, %v1022
      %v1024 = vshrl.u32 %v964, 16
      %v1026 = vor.u32 %v1024, %v1014
      %v1028 = vshll.u32 %v966, 16
      %v1030 = vrot.slane %v1028, 1
      %v1031 = vsel %vm256, %v1026, %v1030
      %v1032 = vshrl.u32 %v965, 16
      %v1034 = vor.u32 %v1032, %v1022
      %v1036 = vshll.u32 %v967, 16
      %v1038 = vrot.slane %v1036, 1
      %v1039 = vsel %vm256, %v1034, %v1038
      %v1080 = vunpack.c.l.b16 %v899
      %v1081 = vunpack.c.l.b16 %v900
      %v1082 = vunpack.c.l.b16 %v901
      %v1083 = vunpack.c.l.b16 %v902
      %v1084 = vunpack.c.l.b16 %v903
      %v1085 = vunpack.c.l.b16 %v904
      %v1086 = vunpack.c.l.b16 %v905
      %v1087 = vunpack.c.l.b16 %v906
      %v1088 = vunpack.c.l.b16 %v907
      %v1089 = vunpack.c.l.b16 %v908
      %v1090 = vunpack.c.l.b16 %v909
      %v1091 = vunpack.c.l.b16 %v910
      %v1092 = vunpack.c.l.b16 %v911
      %v1093 = vunpack.c.l.b16 %v912
      %v1094 = vunpack.c.l.b16 %v913
      %v1095 = vunpack.c.l.b16 %v914
      %v1096 = vunpack.c.l.b16 %v915
      %v1097 = vunpack.c.l.b16 %v916
      %v1098 = vunpack.c.l.b16 %v917
      %v1099 = vunpack.c.l.b16 %v918
      %v1100 = vunpack.c.l.b16 %v919
      %v1101 = vunpack.c.l.b16 %v920
      %v1102 = vunpack.c.l.b16 %v921
      %v1103 = vunpack.c.l.b16 %v922
      %v1104 = vunpack.c.l.b16 %v923
      %v1105 = vunpack.c.l.b16 %v924
      %v1106 = vunpack.c.l.b16 %v925
      %v1107 = vunpack.c.l.b16 %v926
      %v1108 = vunpack.c.l.b16 %v927
      %v1109 = vunpack.c.l.b16 %v928
      %v1110 = vunpack.c.l.b16 %v929
      %v1111 = vunpack.c.l.b16 %v930
      %v1112 = vpack.c.b16 %v1081, %v1080
      %v1113 = vpack.c.b16 %v1083, %v1082
      %v1114 = vpack.c.b16 %v1085, %v1084
      %v1115 = vpack.c.b16 %v1087, %v1086
      %v1116 = vpack.c.b16 %v1089, %v1088
      %v1117 = vpack.c.b16 %v1091, %v1090
      %v1118 = vpack.c.b16 %v1093, %v1092
      %v1119 = vpack.c.b16 %v1095, %v1094
      %v1120 = vpack.c.b16 %v1097, %v1096
      %v1121 = vpack.c.b16 %v1099, %v1098
      %v1122 = vpack.c.b16 %v1101, %v1100
      %v1123 = vpack.c.b16 %v1103, %v1102
      %v1124 = vpack.c.b16 %v1105, %v1104
      %v1125 = vpack.c.b16 %v1107, %v1106
      %v1126 = vpack.c.b16 %v1109, %v1108
      %v1127 = vpack.c.b16 %v1111, %v1110
      %1144 = vmatprep.subr.bf16.mxu0 0
      %1145 = vmatpush1.bf16.msra.mxu0 %v1112
      %1146 = vmatprep.subr.bf16.mxu0 0
      %1147 = vmatpush1.bf16.msra.mxu0 %v1113
      %1148 = vmatprep.subr.bf16.mxu0 0
      %1149 = vmatpush1.bf16.msra.mxu0 %v1114
      %1150 = vmatprep.subr.bf16.mxu0 0
      %1151 = vmatpush1.bf16.msra.mxu0 %v1115
      %1152 = vmatprep.subr.bf16.mxu0 0
      %1153 = vmatpush1.bf16.msra.mxu0 %v1116
      %1154 = vmatprep.subr.bf16.mxu0 0
      %1155 = vmatpush1.bf16.msra.mxu0 %v1117
      %1156 = vmatprep.subr.bf16.mxu0 0
      %1157 = vmatpush1.bf16.msra.mxu0 %v1118
      %1158 = vmatprep.subr.bf16.mxu0 0
      %1159 = vmatpush1.bf16.msra.mxu0 %v1119
      %1160 = vmatprep.subr.bf16.mxu0 0
      %1161 = vmatpush1.bf16.msra.mxu0 %v1120
      %1162 = vmatprep.subr.bf16.mxu0 0
      %1163 = vmatpush1.bf16.msra.mxu0 %v1121
      %1164 = vmatprep.subr.bf16.mxu0 0
      %1165 = vmatpush1.bf16.msra.mxu0 %v1122
      %1166 = vmatprep.subr.bf16.mxu0 0
      %1167 = vmatpush1.bf16.msra.mxu0 %v1123
      %1168 = vmatprep.subr.bf16.mxu0 0
      %1169 = vmatpush1.bf16.msra.mxu0 %v1124
      %1170 = vmatprep.subr.bf16.mxu0 0
      %1171 = vmatpush1.bf16.msra.mxu0 %v1125
      %1172 = vmatprep.subr.bf16.mxu0 0
      %1173 = vmatpush1.bf16.msra.mxu0 %v1126
      %1174 = vmatprep.subr.bf16.mxu0 0
      %1175 = vmatpush1.bf16.msra.mxu0 %v1127
      %1176 = vmatprep.mubr.bf16.mxu0 %v991
      %1177 = vmatmul.mubr.bf16.gmra.mrb[0].mxu0 %v979
      %v1178 = vpop.f32.mrb[0].mxu0
      %v1179 = vadd.f32 0.0, %v1178
      %v1180 = vpop.f32.mrb[0].mxu0
      %v1181 = vpop.f32.mrb[0].mxu0
      %v1182 = vadd.f32 0.0, %v1181
      %v1183 = vpop.f32.mrb[0].mxu0
      %1184 = vmatprep.mubr.bf16.mxu0 %v1007
      %1185 = vmatmul.mubr.bf16.gmra.mrb[0].mxu0 %v999
      %v1186 = vpop.f32.mrb[0].mxu0
      %v1187 = vadd.f32 0.0, %v1186
      %v1188 = vpop.f32.mrb[0].mxu0
      %v1189 = vpop.f32.mrb[0].mxu0
      %v1190 = vadd.f32 0.0, %v1189
      %v1191 = vpop.f32.mrb[0].mxu0
      %1192 = vmatprep.mubr.bf16.mxu0 %v1023
      %1193 = vmatmul.mubr.bf16.gmra.mrb[0].mxu0 %v1015
      %v1194 = vpop.f32.mrb[0].mxu0
      %v1195 = vadd.f32 0.0, %v1194
      %v1196 = vpop.f32.mrb[0].mxu0
      %v1197 = vpop.f32.mrb[0].mxu0
      %v1198 = vadd.f32 0.0, %v1197
      %v1199 = vpop.f32.mrb[0].mxu0
      %1200 = vmatprep.mubr.bf16.mxu0 %v1039
      %1201 = vmatmul.mubr.bf16.gmra.mrb[0].mxu0 %v1031
      %v1202 = vpop.f32.mrb[0].mxu0
      %v1203 = vadd.f32 0.0, %v1202
      %v1204 = vpop.f32.mrb[0].mxu0
      %v1205 = vpop.f32.mrb[0].mxu0
      %v1206 = vadd.f32 0.0, %v1205
      %v1207 = vpop.f32.mrb[0].mxu0
      %1208 = vdwg.mxu0
      %v1209 = vadd.f32 %v881, %v1179
      %v1210 = vadd.f32 %v882, %v1182
      %v1211 = vadd.f32 %v883, %v1187
      %v1212 = vadd.f32 %v884, %v1190
      %v1213 = vadd.f32 %v885, %v1195
      %v1214 = vadd.f32 %v886, %v1198
      %v1215 = vadd.f32 %v887, %v1203
      %v1216 = vadd.f32 %v888, %v1206
      %v1217 = vmul.f32 %v1209, 0.2
      %v1218 = vmul.f32 %v1210, 0.2
      %v1219 = vmul.f32 %v1211, 0.2
      %v1220 = vmul.f32 %v1212, 0.2
      %v1221 = vmul.f32 %v1213, 0.2
      %v1222 = vmul.f32 %v1214, 0.2
      %v1223 = vmul.f32 %v1215, 0.2
      %v1224 = vmul.f32 %v1216, 0.2
      %v1225 = vmax.f32 %v1209, %v1217
      %v1226 = vmax.f32 %v1210, %v1218
      %v1227 = vmax.f32 %v1211, %v1219
      %v1228 = vmax.f32 %v1212, %v1220
      %v1229 = vmax.f32 %v1213, %v1221
      %v1230 = vmax.f32 %v1214, %v1222
      %v1231 = vmax.f32 %v1215, %v1223
      %v1232 = vmax.f32 %v1216, %v1224
      %v1233 = vpack.c.bf16 %v1226, %v1225
      %v1234 = vpack.c.bf16 %v1228, %v1227
      %v1235 = vpack.c.bf16 %v1230, %v1229
      %v1236 = vpack.c.bf16 %v1232, %v1231
      %v1241 = vunpack.c.l.b16 %v1233
      %v1242 = vunpack.c.h.b16 %v1233
      %v1243 = vunpack.c.l.b16 %v1234
      %v1244 = vunpack.c.h.b16 %v1234
      %v1245 = vunpack.c.l.b16 %v1235
      %v1246 = vunpack.c.h.b16 %v1235
      %v1247 = vunpack.c.l.b16 %v1236
      %v1248 = vunpack.c.h.b16 %v1236
      %v1249 = vpack.c.b16 %v1241, %v1241
      %v1250 = vpack.c.b16 %v1242, %v1242
      %v1251 = vpack.c.b16 %v1243, %v1243
      %v1252 = vpack.c.b16 %v1244, %v1244
      %v1253 = vpack.c.b16 %v1245, %v1245
      %v1254 = vpack.c.b16 %v1246, %v1246
      %v1255 = vpack.c.b16 %v1247, %v1247
      %v1256 = vpack.c.b16 %v1248, %v1248
      %1265 = vst [vmem:[%s143] sm:$0xf] %v1249
      %1266 = vst [vmem:[%s143 + $0x4] sm:$0xf] %v1250
      %1267 = vst [vmem:[%s143 + $0x8] sm:$0xf] %v1251
      %1268 = vst [vmem:[%s143 + $0xc] sm:$0xf] %v1252
      %1269 = vst [vmem:[%s143 + $0x10] sm:$0xf] %v1253
      %1270 = vst [vmem:[%s143 + $0x14] sm:$0xf] %v1254
      %1271 = vst [vmem:[%s143 + $0x18] sm:$0xf] %v1255
      %1272 = vst [vmem:[%s143 + $0x1c] sm:$0xf] %v1256
      %p1273 = scmp.lt.s32.totalorder %s13, 1
      %s1274 = scalar_select %p1273, %s13, 1
      %s1275 = smul.addr %s1274, 8
      %s1276 = smul.addr %s1275, 4
      %s1277 = scalar_lea.vmem %s2, %s1276
      // Predicated region
      $region29: #{discriminator_forward.5} parent=27 // pred_check
        %p1278 = pneg %p78
      $region30: #{discriminator_forward.5} parent=27 // pred_check_branch
        %1280 = sbr.rel (%p1278) target = $region32
      $region31: #{discriminator_forward.5} parent=27 // pred_region
        _
      $region32: #{discriminator_forward.5} parent=27 // pred_fallthru
        _
    $region28: #{discriminator_forward.5} parent=5 // pred_fallthru
      _
    %p1281 = scmp.le.s32.totalorder 2, %s8
    // Predicated region
    $region33: #{discriminator_forward.5} parent=5 // pred_check
      %p1282 = pneg %p1281
    $region34: #{discriminator_forward.5} parent=5 // pred_check_branch
      %1284 = sbr.rel (%p1282) target = $region36
    $region35: #{discriminator_forward.5} parent=5 // pred_region
      %s1285 = ssub.s32 %s8, 2
      // Predicated region
      $region37: #{discriminator_forward.5} parent=35 // pred_check
        %p1286 = pneg %p84
      $region38: #{discriminator_forward.5} parent=35 // pred_check_branch
        %1288 = sbr.rel (%p1286) target = $region40
      $region39: #{discriminator_forward.5} parent=35 // pred_region
        %p1289 = scmp.lt.s32.totalorder %s14, 1
        %s1290 = scalar_select %p1289, %s14, 1
        %s1291 = smul.addr %s1290, 8
        %s1292 = smul.addr %s1291, 4
        %s1293 = scalar_lea.vmem %s2, %s1292
      $region40: #{discriminator_forward.5} parent=35 // pred_fallthru
        _
    $region36: #{discriminator_forward.5} parent=5 // pred_fallthru
      _
  $region6: #{discriminator_forward.5} parent=0 // loop_footer
    %s12 = sadd.s32 1, %s8
  $region7: #{discriminator_forward.5} parent=0 // loop_footer_branch
    %7 = sbr.rel target = $region3
  $region8: #{discriminator_forward.5} parent=0 // loop_exit
    _

// kernel: discriminator_forward.6
$region0: #{discriminator_forward.6}
  #allocation0 [shape = 'u32[]', space=smem, size = 0x4, offset = 0x4, fixed_abs, tag = 'smem constant byte address 0x4 - core index']
  #allocation1 [shape = 'u32[144,128]{1,0:T(1,128)}', space=vmem, size = 0x12000, scoped, tag = 'internal scratch']
  %s0 = inlined_call_operand.vmem [shape: bf16[2,32,512], index: 0, kind: input, shape index: {}]
  %s1 = inlined_call_operand.vmem [shape: bf16[4,512,256], index: 1, kind: input, shape index: {}]
  %s2 = inlined_call_operand.vmem [shape: f32[2,16,256], index: 2, kind: output, shape index: {}]
  %s3 = sld [smem:[#allocation0]]
  $region41: #{discriminator_forward.6} parent=0
    _
  %s5 = ssub.s32 1, %s3
  %s6 = scalar_select 0, %s5, %s3
  loop: start=0, step=1, limit=4
  $region2: #{discriminator_forward.6} parent=0 // loop_pre_header
    _
  $region3: #{discriminator_forward.6} parent=0 // loop_header
    %s8 = sphi 0, %s12
    %p9 = scmp.ge.s32.totalorder %s8, 4
    %s18 = sphi 0, %s20
    %s21 = sphi 0, %s18
    %s22 = sphi 0, %s21
    %s38 = sphi 0, %s22
    %s42 = sphi 0, %s42
    %s44 = sphi 0, %s42
    %s45 = sphi 0, %s44
    %s59 = sphi 0, %s45
    %s65 = sphi 0, %s67
    %s68 = sphi 0, %s65
    %s69 = sphi 0, %s68
    %s85 = sphi 0, %s69
  $region4: #{discriminator_forward.6} parent=0 // loop_header_branch
    %11 = sbr.rel (%p9) target = $region8
  $region5: #{discriminator_forward.6} parent=0 // loop_body
    %s13 = ssub.s32 %s8, 1
    %s14 = ssub.s32 %s8, 2
    %s15 = sadd.s32 %s8, 1
    %s16 = ssub.s32 %s8, %s15
    %p17 = scmp.eq.s32.totalorder %s16, 0
    %s19 = sadd.s32 %s18, 1
    %s20 = scalar_select %p17, %s18, %s19
    %p23 = pneg %p17
    %p24 = scmp.eq.s32.totalorder %s8, 1
    %p25 = por %p23, %p24
    %p26 = scmp.ne.s32.totalorder %s18, %s21
    %p27 = scmp.eq.s32.totalorder %s8, 0
    %p28 = por %p26, %p27
    %p29 = scmp.ne.s32.totalorder %s18, %s21
    %p30 = scmp.eq.s32.totalorder %s13, 1
    %p31 = por %p29, %p30
    %p32 = scmp.ne.s32.totalorder %s21, %s22
    %p33 = scmp.eq.s32.totalorder %s13, 0
    %p34 = por %p32, %p33
    %p35 = scmp.ne.s32.totalorder %s21, %s22
    %p36 = scmp.eq.s32.totalorder %s14, 1
    %p37 = por %p35, %p36
    %p39 = scmp.ne.s32.totalorder %s22, %s38
    %p40 = scmp.eq.s32.totalorder %s14, 0
    %p41 = por %p39, %p40
    %s43 = sadd.s32 %s42, 1
    %p46 = scmp.eq.s32.totalorder %s8, 1
    %p47 = scmp.ne.s32.totalorder %s42, %s44
    %p48 = scmp.eq.s32.totalorder %s8, 0
    %p49 = por %p47, %p48
    %p50 = scmp.ne.s32.totalorder %s42, %s44
    %p51 = scmp.eq.s32.totalorder %s13, 1
    %p52 = por %p50, %p51
    %p53 = scmp.ne.s32.totalorder %s44, %s45
    %p54 = scmp.eq.s32.totalorder %s13, 0
    %p55 = por %p53, %p54
    %p56 = scmp.ne.s32.totalorder %s44, %s45
    %p57 = scmp.eq.s32.totalorder %s14, 1
    %p58 = por %p56, %p57
    %p60 = scmp.ne.s32.totalorder %s45, %s59
    %p61 = scmp.eq.s32.totalorder %s14, 0
    %p62 = por %p60, %p61
    %s63 = ssub.s32 %s8, %s15
    %p64 = scmp.eq.s32.totalorder %s63, 0
    %s66 = sadd.s32 %s65, 1
    %s67 = scalar_select %p64, %s65, %s66
    %p70 = pneg %p64
    %p71 = scmp.eq.s32.totalorder %s8, 1
    %p72 = por %p70, %p71
    %p73 = scmp.ne.s32.totalorder %s65, %s68
    %p74 = scmp.eq.s32.totalorder %s8, 0
    %p75 = por %p73, %p74
    %p76 = scmp.ne.s32.totalorder %s65, %s68
    %p77 = scmp.eq.s32.totalorder %s13, 1
    %p78 = por %p76, %p77
    %p79 = scmp.ne.s32.totalorder %s68, %s69
    %p80 = scmp.eq.s32.totalorder %s13, 0
    %p81 = por %p79, %p80
    %p82 = scmp.ne.s32.totalorder %s68, %s69
    %p83 = scmp.eq.s32.totalorder %s14, 1
    %p84 = por %p82, %p83
    %p86 = scmp.ne.s32.totalorder %s69, %s85
    %p87 = scmp.eq.s32.totalorder %s14, 0
    %p88 = por %p86, %p87
    %p89 = scmp.le.s32.totalorder 1, %s8
    %p90 = scmp.lt.s32.totalorder %s8, 3
    %p91 = pnand %p89, %p90
    %p92 = pneg %p91
    // Predicated region
    $region9: #{discriminator_forward.6} parent=5 // pred_check
      _
    $region10: #{discriminator_forward.6} parent=5 // pred_check_branch
      %94 = sbr.rel (%p91) target = $region12
    $region11: #{discriminator_forward.6} parent=5 // pred_region
      %s95 = ssub.s32 %s8, 1
      // Predicated region
      $region13: #{discriminator_forward.6} parent=11 // pred_check
        %p96 = pneg %p55
      $region14: #{discriminator_forward.6} parent=11 // pred_check_branch
        %98 = sbr.rel (%p96) target = $region16
      $region15: #{discriminator_forward.6} parent=11 // pred_region
        _
      $region16: #{discriminator_forward.6} parent=11 // pred_fallthru
        _
    $region12: #{discriminator_forward.6} parent=5 // pred_fallthru
      _
    %p99 = scmp.lt.s32.totalorder %s8, 2
    // Predicated region
    $region17: #{discriminator_forward.6} parent=5 // pred_check
      %p100 = pneg %p99
    $region18: #{discriminator_forward.6} parent=5 // pred_check_branch
      %102 = sbr.rel (%p100) target = $region20
    $region19: #{discriminator_forward.6} parent=5 // pred_region
      // Predicated region
      $region21: #{discriminator_forward.6} parent=19 // pred_check
        %p103 = pneg %p28
      $region22: #{discriminator_forward.6} parent=19 // pred_check_branch
        %105 = sbr.rel (%p103) target = $region24
      $region23: #{discriminator_forward.6} parent=19 // pred_region
        %p106 = scmp.lt.s32.totalorder %s8, 1
        %s107 = scalar_select %p106, %s8, 1
        %s108 = smul.addr %s107, 16
        %s109 = smul.addr %s108, 4
        %s110 = scalar_lea.vmem %s0, %s109
      $region24: #{discriminator_forward.6} parent=19 // pred_fallthru
        _
    $region20: #{discriminator_forward.6} parent=5 // pred_fallthru
      _
    %p111 = scmp.le.s32.totalorder 1, %s8
    %p112 = scmp.lt.s32.totalorder %s8, 3
    %p113 = pnand %p111, %p112
    %p114 = pneg %p113
    // Predicated region
    $region25: #{discriminator_forward.6} parent=5 // pred_check
      _
    $region26: #{discriminator_forward.6} parent=5 // pred_check_branch
      %116 = sbr.rel (%p113) target = $region28
    $region27: #{discriminator_forward.6} parent=5 // pred_region
      %s117 = ssub.s32 %s8, 1
      %p118 = scmp.lt.s32.totalorder %s13, 1
      %s119 = scalar_select %p118, %s13, 1
      %s120 = smul.addr %s119, 16
      %s121 = smul.addr %s120, 4
      %s122 = scalar_lea.vmem %s0, %s121
      %p123 = pneg %p34
      %p124 = pneg %p31
      %p125 = pneg %p55
      %p126 = pneg %p52
      %p127 = pneg %p81
      %p128 = pneg %p78
      %p129 = scmp.lt.s32.totalorder %s13, 1
      %s130 = scalar_select %p129, %s13, 1
      %s131 = smul.addr %s130, 4
      %s132 = smul.addr %s131, 8
      %s133 = scalar_lea.vmem %s2, %s132
      %p134 = scmp.lt.s32.totalorder %s13, 1
      %s135 = scalar_select %p134, %s13, 1
      %s136 = smul.addr %s135, 16
      %s137 = smul.addr %s136, 4
      %s138 = scalar_lea.vmem %s0, %s137
      %p139 = scmp.lt.s32.totalorder %s13, 1
      %s140 = scalar_select %p139, %s13, 1
      %s141 = smul.addr %s140, 4
      %s142 = smul.addr %s141, 8
      %s143 = scalar_lea.vmem %s2, %s142
      %v144 = vld [vmem:[%s138] sm:$0xff]
      %v145 = vld [vmem:[%s138 + $0x8] sm:$0xff]
      %v146 = vld [vmem:[%s138 + $0x10] sm:$0xff]
      %v147 = vld [vmem:[%s138 + $0x18] sm:$0xff]
      %v148 = vld [vmem:[%s1] sm:$0xff]
      %v149 = vld [vmem:[%s1 + $0x8] sm:$0xff]
      %v150 = vld [vmem:[%s1 + $0x10] sm:$0xff]
      %v151 = vld [vmem:[%s1 + $0x18] sm:$0xff]
      %v152 = vld [vmem:[%s1 + $0x20] sm:$0xff]
      %v153 = vld [vmem:[%s1 + $0x28] sm:$0xff]
      %v154 = vld [vmem:[%s1 + $0x30] sm:$0xff]
      %v155 = vld [vmem:[%s1 + $0x38] sm:$0xff]
      %v156 = vld [vmem:[%s1 + $0x40] sm:$0xff]
      %v157 = vld [vmem:[%s1 + $0x48] sm:$0xff]
      %v158 = vld [vmem:[%s1 + $0x50] sm:$0xff]
      %v159 = vld [vmem:[%s1 + $0x58] sm:$0xff]
      %v160 = vld [vmem:[%s1 + $0x60] sm:$0xff]
      %v161 = vld [vmem:[%s1 + $0x68] sm:$0xff]
      %v162 = vld [vmem:[%s1 + $0x70] sm:$0xff]
      %v163 = vld [vmem:[%s1 + $0x78] sm:$0xff]
      %v164 = vld [vmem:[%s1 + $0x80] sm:$0xff]
      %v165 = vld [vmem:[%s1 + $0x88] sm:$0xff]
      %v166 = vld [vmem:[%s1 + $0x90] sm:$0xff]
      %v167 = vld [vmem:[%s1 + $0x98] sm:$0xff]
      %v168 = vld [vmem:[%s1 + $0xa0] sm:$0xff]
      %v169 = vld [vmem:[%s1 + $0xa8] sm:$0xff]
      %v170 = vld [vmem:[%s1 + $0xb0] sm:$0xff]
      %v171 = vld [vmem:[%s1 + $0xb8] sm:$0xff]
      %v172 = vld [vmem:[%s1 + $0xc0] sm:$0xff]
      %v173 = vld [vmem:[%s1 + $0xc8] sm:$0xff]
      %v174 = vld [vmem:[%s1 + $0xd0] sm:$0xff]
      %v175 = vld [vmem:[%s1 + $0xd8] sm:$0xff]
      %v176 = vld [vmem:[%s1 + $0xe0] sm:$0xff]
      %v177 = vld [vmem:[%s1 + $0xe8] sm:$0xff]
      %v178 = vld [vmem:[%s1 + $0xf0] sm:$0xff]
      %v179 = vld [vmem:[%s1 + $0xf8] sm:$0xff]
      %v180 = vld [vmem:[%s1 + $0x100] sm:$0xff]
      %v181 = vld [vmem:[%s1 + $0x108] sm:$0xff]
      %v182 = vld [vmem:[%s1 + $0x110] sm:$0xff]
      %v183 = vld [vmem:[%s1 + $0x118] sm:$0xff]
      %v184 = vld [vmem:[%s1 + $0x120] sm:$0xff]
      %v185 = vld [vmem:[%s1 + $0x128] sm:$0xff]
      %v186 = vld [vmem:[%s1 + $0x130] sm:$0xff]
      %v187 = vld [vmem:[%s1 + $0x138] sm:$0xff]
      %v188 = vld [vmem:[%s1 + $0x140] sm:$0xff]
      %v189 = vld [vmem:[%s1 + $0x148] sm:$0xff]
      %v190 = vld [vmem:[%s1 + $0x150] sm:$0xff]
      %v191 = vld [vmem:[%s1 + $0x158] sm:$0xff]
      %v192 = vld [vmem:[%s1 + $0x160] sm:$0xff]
      %v193 = vld [vmem:[%s1 + $0x168] sm:$0xff]
      %v194 = vld [vmem:[%s1 + $0x170] sm:$0xff]
      %v195 = vld [vmem:[%s1 + $0x178] sm:$0xff]
      %v196 = vld [vmem:[%s1 + $0x180] sm:$0xff]
      %v197 = vld [vmem:[%s1 + $0x188] sm:$0xff]
      %v198 = vld [vmem:[%s1 + $0x190] sm:$0xff]
      %v199 = vld [vmem:[%s1 + $0x198] sm:$0xff]
      %v200 = vld [vmem:[%s1 + $0x1a0] sm:$0xff]
      %v201 = vld [vmem:[%s1 + $0x1a8] sm:$0xff]
      %v202 = vld [vmem:[%s1 + $0x1b0] sm:$0xff]
      %v203 = vld [vmem:[%s1 + $0x1b8] sm:$0xff]
      %v204 = vld [vmem:[%s1 + $0x1c0] sm:$0xff]
      %v205 = vld [vmem:[%s1 + $0x1c8] sm:$0xff]
      %v206 = vld [vmem:[%s1 + $0x1d0] sm:$0xff]
      %v207 = vld [vmem:[%s1 + $0x1d8] sm:$0xff]
      %v208 = vld [vmem:[%s1 + $0x1e0] sm:$0xff]
      %v209 = vld [vmem:[%s1 + $0x1e8] sm:$0xff]
      %v210 = vld [vmem:[%s1 + $0x1f0] sm:$0xff]
      %v211 = vld [vmem:[%s1 + $0x1f8] sm:$0xff]
      %v212 = vld [vmem:[%s138 + $0x20] sm:$0x11]
      %v213 = vld [vmem:[%s138 + $0x28] sm:$0x11]
      %s214 = scalar_lea.vmem %s1, 512
      %v215 = vld [vmem:[%s214] sm:$0xff]
      %v216 = vld [vmem:[%s214 + $0x8] sm:$0xff]
      %v217 = vld [vmem:[%s214 + $0x10] sm:$0xff]
      %v218 = vld [vmem:[%s214 + $0x18] sm:$0xff]
      %v219 = vld [vmem:[%s214 + $0x20] sm:$0xff]
      %v220 = vld [vmem:[%s214 + $0x28] sm:$0xff]
      %v221 = vld [vmem:[%s214 + $0x30] sm:$0xff]
      %v222 = vld [vmem:[%s214 + $0x38] sm:$0xff]
      %v223 = vld [vmem:[%s214 + $0x40] sm:$0xff]
      %v224 = vld [vmem:[%s214 + $0x48] sm:$0xff]
      %v225 = vld [vmem:[%s214 + $0x50] sm:$0xff]
      %v226 = vld [vmem:[%s214 + $0x58] sm:$0xff]
      %v227 = vld [vmem:[%s214 + $0x60] sm:$0xff]
      %v228 = vld [vmem:[%s214 + $0x68] sm:$0xff]
      %v229 = vld [vmem:[%s214 + $0x70] sm:$0xff]
      %v230 = vld [vmem:[%s214 + $0x78] sm:$0xff]
      %v231 = vld [vmem:[%s214 + $0x80] sm:$0xff]
      %v232 = vld [vmem:[%s214 + $0x88] sm:$0xff]
      %v233 = vld [vmem:[%s214 + $0x90] sm:$0xff]
      %v234 = vld [vmem:[%s214 + $0x98] sm:$0xff]
      %v235 = vld [vmem:[%s214 + $0xa0] sm:$0xff]
      %v236 = vld [vmem:[%s214 + $0xa8] sm:$0xff]
      %v237 = vld [vmem:[%s214 + $0xb0] sm:$0xff]
      %v238 = vld [vmem:[%s214 + $0xb8] sm:$0xff]
      %v239 = vld [vmem:[%s214 + $0xc0] sm:$0xff]
      %v240 = vld [vmem:[%s214 + $0xc8] sm:$0xff]
      %v241 = vld [vmem:[%s214 + $0xd0] sm:$0xff]
      %v242 = vld [vmem:[%s214 + $0xd8] sm:$0xff]
      %v243 = vld [vmem:[%s214 + $0xe0] sm:$0xff]
      %v244 = vld [vmem:[%s214 + $0xe8] sm:$0xff]
      %v245 = vld [vmem:[%s214 + $0xf0] sm:$0xff]
      %v246 = vld [vmem:[%s214 + $0xf8] sm:$0xff]
      %v247 = vld [vmem:[%s214 + $0x100] sm:$0xff]
      %v248 = vld [vmem:[%s214 + $0x108] sm:$0xff]
      %v249 = vld [vmem:[%s214 + $0x110] sm:$0xff]
      %v250 = vld [vmem:[%s214 + $0x118] sm:$0xff]
      %v251 = vld [vmem:[%s214 + $0x120] sm:$0xff]
      %v252 = vld [vmem:[%s214 + $0x128] sm:$0xff]
      %v253 = vld [vmem:[%s214 + $0x130] sm:$0xff]
      %v254 = vld [vmem:[%s214 + $0x138] sm:$0xff]
      %v255 = vld [vmem:[%s214 + $0x140] sm:$0xff]
      %v256 = vld [vmem:[%s214 + $0x148] sm:$0xff]
      %v257 = vld [vmem:[%s214 + $0x150] sm:$0xff]
      %v258 = vld [vmem:[%s214 + $0x158] sm:$0xff]
      %v259 = vld [vmem:[%s214 + $0x160] sm:$0xff]
      %v260 = vld [vmem:[%s214 + $0x168] sm:$0xff]
      %v261 = vld [vmem:[%s214 + $0x170] sm:$0xff]
      %v262 = vld [vmem:[%s214 + $0x178] sm:$0xff]
      %v263 = vld [vmem:[%s214 + $0x180] sm:$0xff]
      %v264 = vld [vmem:[%s214 + $0x188] sm:$0xff]
      %v265 = vld [vmem:[%s214 + $0x190] sm:$0xff]
      %v266 = vld [vmem:[%s214 + $0x198] sm:$0xff]
      %v267 = vld [vmem:[%s214 + $0x1a0] sm:$0xff]
      %v268 = vld [vmem:[%s214 + $0x1a8] sm:$0xff]
      %v269 = vld [vmem:[%s214 + $0x1b0] sm:$0xff]
      %v270 = vld [vmem:[%s214 + $0x1b8] sm:$0xff]
      %v271 = vld [vmem:[%s214 + $0x1c0] sm:$0xff]
      %v272 = vld [vmem:[%s214 + $0x1c8] sm:$0xff]
      %v273 = vld [vmem:[%s214 + $0x1d0] sm:$0xff]
      %v274 = vld [vmem:[%s214 + $0x1d8] sm:$0xff]
      %v275 = vld [vmem:[%s214 + $0x1e0] sm:$0xff]
      %v276 = vld [vmem:[%s214 + $0x1e8] sm:$0xff]
      %v277 = vld [vmem:[%s214 + $0x1f0] sm:$0xff]
      %v278 = vld [vmem:[%s214 + $0x1f8] sm:$0xff]
      %v285 = vunpack.c.l.b16 %v144
      %v286 = vunpack.c.h.b16 %v144
      %v287 = vunpack.c.l.b16 %v145
      %v288 = vunpack.c.h.b16 %v145
      %v289 = vunpack.c.l.b16 %v146
      %v290 = vunpack.c.h.b16 %v146
      %v291 = vunpack.c.l.b16 %v147
      %v292 = vunpack.c.h.b16 %v147
      %v293 = vunpack.c.l.b16 %v212
      %v294 = vunpack.c.h.b16 %v212
      %v295 = vunpack.c.l.b16 %v213
      %v296 = vunpack.c.h.b16 %v213
      %v297 = vpack.c.b16 %v289, %v285
      %v298 = vpack.c.b16 %v290, %v286
      %v299 = vpack.c.b16 %v291, %v287
      %v300 = vpack.c.b16 %v292, %v288
      %v301 = vpack.c.b16 %v293, %v293
      %v302 = vpack.c.b16 %v294, %v294
      %v303 = vpack.c.b16 %v295, %v295
      %v304 = vpack.c.b16 %v296, %v296
      %vm305 = vsmask.f32 7424
      %v307 = vshrl.u32 %v297, 16
      %v309 = vshll.u32 %v297, 16
      %v311 = vrot.slane %v309, 1
      %v312 = vor.u32 %v307, %v311
      %v314 = vshll.u32 %v301, 16
      %v316 = vrot.slane %v314, 1
      %v317 = vsel %vm305, %v312, %v316
      %v319 = vshrl.u32 %v298, 16
      %v321 = vshll.u32 %v298, 16
      %v323 = vrot.slane %v321, 1
      %v324 = vor.u32 %v319, %v323
      %v326 = vshll.u32 %v302, 16
      %v328 = vrot.slane %v326, 1
      %v329 = vsel %vm305, %v324, %v328
      %v331 = vshrl.u32 %v299, 16
      %v333 = vshll.u32 %v299, 16
      %v335 = vrot.slane %v333, 1
      %v336 = vor.u32 %v331, %v335
      %v338 = vshll.u32 %v303, 16
      %v340 = vrot.slane %v338, 1
      %v341 = vsel %vm305, %v336, %v340
      %v343 = vshrl.u32 %v300, 16
      %v345 = vshll.u32 %v300, 16
      %v347 = vrot.slane %v345, 1
      %v348 = vor.u32 %v343, %v347
      %v350 = vshll.u32 %v304, 16
      %v352 = vrot.slane %v350, 1
      %v353 = vsel %vm305, %v348, %v352
      %v422 = vunpack.c.l.b16 %v215
      %v423 = vunpack.c.h.b16 %v215
      %v424 = vunpack.c.l.b16 %v216
      %v425 = vunpack.c.h.b16 %v216
      %v426 = vunpack.c.l.b16 %v217
      %v427 = vunpack.c.h.b16 %v217
      %v428 = vunpack.c.l.b16 %v218
      %v429 = vunpack.c.h.b16 %v218
      %v430 = vunpack.c.l.b16 %v219
      %v431 = vunpack.c.h.b16 %v219
      %v432 = vunpack.c.l.b16 %v220
      %v433 = vunpack.c.h.b16 %v220
      %v434 = vunpack.c.l.b16 %v221
      %v435 = vunpack.c.h.b16 %v221
      %v436 = vunpack.c.l.b16 %v222
      %v437 = vunpack.c.h.b16 %v222
      %v438 = vunpack.c.l.b16 %v223
      %v439 = vunpack.c.h.b16 %v223
      %v440 = vunpack.c.l.b16 %v224
      %v441 = vunpack.c.h.b16 %v224
      %v442 = vunpack.c.l.b16 %v225
      %v443 = vunpack.c.h.b16 %v225
      %v444 = vunpack.c.l.b16 %v226
      %v445 = vunpack.c.h.b16 %v226
      %v446 = vunpack.c.l.b16 %v227
      %v447 = vunpack.c.h.b16 %v227
      %v448 = vunpack.c.l.b16 %v228
      %v449 = vunpack.c.h.b16 %v228
      %v450 = vunpack.c.l.b16 %v229
      %v451 = vunpack.c.h.b16 %v229
      %v452 = vunpack.c.l.b16 %v230
      %v453 = vunpack.c.h.b16 %v230
      %v454 = vunpack.c.l.b16 %v231
      %v455 = vunpack.c.h.b16 %v231
      %v456 = vunpack.c.l.b16 %v232
      %v457 = vunpack.c.h.b16 %v232
      %v458 = vunpack.c.l.b16 %v233
      %v459 = vunpack.c.h.b16 %v233
      %v460 = vunpack.c.l.b16 %v234
      %v461 = vunpack.c.h.b16 %v234
      %v462 = vunpack.c.l.b16 %v235
      %v463 = vunpack.c.h.b16 %v235
      %v464 = vunpack.c.l.b16 %v236
      %v465 = vunpack.c.h.b16 %v236
      %v466 = vunpack.c.l.b16 %v237
      %v467 = vunpack.c.h.b16 %v237
      %v468 = vunpack.c.l.b16 %v238
      %v469 = vunpack.c.h.b16 %v238
      %v470 = vunpack.c.l.b16 %v239
      %v471 = vunpack.c.h.b16 %v239
      %v472 = vunpack.c.l.b16 %v240
      %v473 = vunpack.c.h.b16 %v240
      %v474 = vunpack.c.l.b16 %v241
      %v475 = vunpack.c.h.b16 %v241
      %v476 = vunpack.c.l.b16 %v242
      %v477 = vunpack.c.h.b16 %v242
      %v478 = vunpack.c.l.b16 %v243
      %v479 = vunpack.c.h.b16 %v243
      %v480 = vunpack.c.l.b16 %v244
      %v481 = vunpack.c.h.b16 %v244
      %v482 = vunpack.c.l.b16 %v245
      %v483 = vunpack.c.h.b16 %v245
      %v484 = vunpack.c.l.b16 %v246
      %v485 = vunpack.c.h.b16 %v246
      %v486 = vunpack.c.l.b16 %v247
      %v487 = vunpack.c.h.b16 %v247
      %v488 = vunpack.c.l.b16 %v248
      %v489 = vunpack.c.h.b16 %v248
      %v490 = vunpack.c.l.b16 %v249
      %v491 = vunpack.c.h.b16 %v249
      %v492 = vunpack.c.l.b16 %v250
      %v493 = vunpack.c.h.b16 %v250
      %v494 = vunpack.c.l.b16 %v251
      %v495 = vunpack.c.h.b16 %v251
      %v496 = vunpack.c.l.b16 %v252
      %v497 = vunpack.c.h.b16 %v252
      %v498 = vunpack.c.l.b16 %v253
      %v499 = vunpack.c.h.b16 %v253
      %v500 = vunpack.c.l.b16 %v254
      %v501 = vunpack.c.h.b16 %v254
      %v502 = vunpack.c.l.b16 %v255
      %v503 = vunpack.c.h.b16 %v255
      %v504 = vunpack.c.l.b16 %v256
      %v505 = vunpack.c.h.b16 %v256
      %v506 = vunpack.c.l.b16 %v257
      %v507 = vunpack.c.h.b16 %v257
      %v508 = vunpack.c.l.b16 %v258
      %v509 = vunpack.c.h.b16 %v258
      %v510 = vunpack.c.l.b16 %v259
      %v511 = vunpack.c.h.b16 %v259
      %v512 = vunpack.c.l.b16 %v260
      %v513 = vunpack.c.h.b16 %v260
      %v514 = vunpack.c.l.b16 %v261
      %v515 = vunpack.c.h.b16 %v261
      %v516 = vunpack.c.l.b16 %v262
      %v517 = vunpack.c.h.b16 %v262
      %v518 = vunpack.c.l.b16 %v263
      %v519 = vunpack.c.h.b16 %v263
      %v520 = vunpack.c.l.b16 %v264
      %v521 = vunpack.c.h.b16 %v264
      %v522 = vunpack.c.l.b16 %v265
      %v523 = vunpack.c.h.b16 %v265
      %v524 = vunpack.c.l.b16 %v266
      %v525 = vunpack.c.h.b16 %v266
      %v526 = vunpack.c.l.b16 %v267
      %v527 = vunpack.c.h.b16 %v267
      %v528 = vunpack.c.l.b16 %v268
      %v529 = vunpack.c.h.b16 %v268
      %v530 = vunpack.c.l.b16 %v269
      %v531 = vunpack.c.h.b16 %v269
      %v532 = vunpack.c.l.b16 %v270
      %v533 = vunpack.c.h.b16 %v270
      %v534 = vunpack.c.l.b16 %v271
      %v535 = vunpack.c.h.b16 %v271
      %v536 = vunpack.c.l.b16 %v272
      %v537 = vunpack.c.h.b16 %v272
      %v538 = vunpack.c.l.b16 %v273
      %v539 = vunpack.c.h.b16 %v273
      %v540 = vunpack.c.l.b16 %v274
      %v541 = vunpack.c.h.b16 %v274
      %v542 = vunpack.c.l.b16 %v275
      %v543 = vunpack.c.h.b16 %v275
      %v544 = vunpack.c.l.b16 %v276
      %v545 = vunpack.c.h.b16 %v276
      %v546 = vunpack.c.l.b16 %v277
      %v547 = vunpack.c.h.b16 %v277
      %v548 = vunpack.c.l.b16 %v278
      %v549 = vunpack.c.h.b16 %v278
      %v550 = vpack.c.b16 %v424, %v422
      %v551 = vpack.c.b16 %v425, %v423
      %v552 = vpack.c.b16 %v428, %v426
      %v553 = vpack.c.b16 %v429, %v427
      %v554 = vpack.c.b16 %v432, %v430
      %v555 = vpack.c.b16 %v433, %v431
      %v556 = vpack.c.b16 %v436, %v434
      %v557 = vpack.c.b16 %v437, %v435
      %v558 = vpack.c.b16 %v440, %v438
      %v559 = vpack.c.b16 %v441, %v439
      %v560 = vpack.c.b16 %v444, %v442
      %v561 = vpack.c.b16 %v445, %v443
      %v562 = vpack.c.b16 %v448, %v446
      %v563 = vpack.c.b16 %v449, %v447
      %v564 = vpack.c.b16 %v452, %v450
      %v565 = vpack.c.b16 %v453, %v451
      %v566 = vpack.c.b16 %v456, %v454
      %v567 = vpack.c.b16 %v457, %v455
      %v568 = vpack.c.b16 %v460, %v458
      %v569 = vpack.c.b16 %v461, %v459
      %v570 = vpack.c.b16 %v464, %v462
      %v571 = vpack.c.b16 %v465, %v463
      %v572 = vpack.c.b16 %v468, %v466
      %v573 = vpack.c.b16 %v469, %v467
      %v574 = vpack.c.b16 %v472, %v470
      %v575 = vpack.c.b16 %v473, %v471
      %v576 = vpack.c.b16 %v476, %v474
      %v577 = vpack.c.b16 %v477, %v475
      %v578 = vpack.c.b16 %v480, %v478
      %v579 = vpack.c.b16 %v481, %v479
      %v580 = vpack.c.b16 %v484, %v482
      %v581 = vpack.c.b16 %v485, %v483
      %v582 = vpack.c.b16 %v488, %v486
      %v583 = vpack.c.b16 %v489, %v487
      %v584 = vpack.c.b16 %v492, %v490
      %v585 = vpack.c.b16 %v493, %v491
      %v586 = vpack.c.b16 %v496, %v494
      %v587 = vpack.c.b16 %v497, %v495
      %v588 = vpack.c.b16 %v500, %v498
      %v589 = vpack.c.b16 %v501, %v499
      %v590 = vpack.c.b16 %v504, %v502
      %v591 = vpack.c.b16 %v505, %v503
      %v592 = vpack.c.b16 %v508, %v506
      %v593 = vpack.c.b16 %v509, %v507
      %v594 = vpack.c.b16 %v512, %v510
      %v595 = vpack.c.b16 %v513, %v511
      %v596 = vpack.c.b16 %v516, %v514
      %v597 = vpack.c.b16 %v517, %v515
      %v598 = vpack.c.b16 %v520, %v518
      %v599 = vpack.c.b16 %v521, %v519
      %v600 = vpack.c.b16 %v524, %v522
      %v601 = vpack.c.b16 %v525, %v523
      %v602 = vpack.c.b16 %v528, %v526
      %v603 = vpack.c.b16 %v529, %v527
      %v604 = vpack.c.b16 %v532, %v530
      %v605 = vpack.c.b16 %v533, %v531
      %v606 = vpack.c.b16 %v536, %v534
      %v607 = vpack.c.b16 %v537, %v535
      %v608 = vpack.c.b16 %v540, %v538
      %v609 = vpack.c.b16 %v541, %v539
      %v610 = vpack.c.b16 %v544, %v542
      %v611 = vpack.c.b16 %v545, %v543
      %v612 = vpack.c.b16 %v548, %v546
      %v613 = vpack.c.b16 %v549, %v547
      %678 = vmatprep.subr.bf16.mxu0 %v551
      %679 = vmatpush1.bf16.msra.mxu0 %v550
      %680 = vmatprep.subr.bf16.mxu0 %v553
      %681 = vmatpush1.bf16.msra.mxu0 %v552
      %682 = vmatprep.subr.bf16.mxu0 %v555
      %683 = vmatpush1.bf16.msra.mxu0 %v554
      %684 = vmatprep.subr.bf16.mxu0 %v557
      %685 = vmatpush1.bf16.msra.mxu0 %v556
      %686 = vmatprep.subr.bf16.mxu0 %v559
      %687 = vmatpush1.bf16.msra.mxu0 %v558
      %688 = vmatprep.subr.bf16.mxu0 %v561
      %689 = vmatpush1.bf16.msra.mxu0 %v560
      %690 = vmatprep.subr.bf16.mxu0 %v563
      %691 = vmatpush1.bf16.msra.mxu0 %v562
      %692 = vmatprep.subr.bf16.mxu0 %v565
      %693 = vmatpush1.bf16.msra.mxu0 %v564
      %694 = vmatprep.subr.bf16.mxu0 %v567
      %695 = vmatpush1.bf16.msra.mxu0 %v566
      %696 = vmatprep.subr.bf16.mxu0 %v569
      %697 = vmatpush1.bf16.msra.mxu0 %v568
      %698 = vmatprep.subr.bf16.mxu0 %v571
      %699 = vmatpush1.bf16.msra.mxu0 %v570
      %700 = vmatprep.subr.bf16.mxu0 %v573
      %701 = vmatpush1.bf16.msra.mxu0 %v572
      %702 = vmatprep.subr.bf16.mxu0 %v575
      %703 = vmatpush1.bf16.msra.mxu0 %v574
      %704 = vmatprep.subr.bf16.mxu0 %v577
      %705 = vmatpush1.bf16.msra.mxu0 %v576
      %706 = vmatprep.subr.bf16.mxu0 %v579
      %707 = vmatpush1.bf16.msra.mxu0 %v578
      %708 = vmatprep.subr.bf16.mxu0 %v581
      %709 = vmatpush1.bf16.msra.mxu0 %v580
      %710 = vmatprep.mubr.bf16.mxu0 %v329
      %711 = vmatmul.mubr.bf16.gmra.mrb[0].mxu0 %v317
      %v712 = vpop.f32.mrb[0].mxu0
      %v713 = vadd.f32 0.0, %v712
      %v714 = vpop.f32.mrb[0].mxu0
      %v715 = vadd.f32 0.0, %v714
      %v716 = vpop.f32.mrb[0].mxu0
      %v717 = vadd.f32 0.0, %v716
      %v718 = vpop.f32.mrb[0].mxu0
      %v719 = vadd.f32 0.0, %v718
      %720 = vdwg.mxu0
      %721 = vmatprep.subr.bf16.mxu0 %v583
      %722 = vmatpush1.bf16.msra.mxu0 %v582
      %723 = vmatprep.subr.bf16.mxu0 %v585
      %724 = vmatpush1.bf16.msra.mxu0 %v584
      %725 = vmatprep.subr.bf16.mxu0 %v587
      %726 = vmatpush1.bf16.msra.mxu0 %v586
      %727 = vmatprep.subr.bf16.mxu0 %v589
      %728 = vmatpush1.bf16.msra.mxu0 %v588
      %729 = vmatprep.subr.bf16.mxu0 %v591
      %730 = vmatpush1.bf16.msra.mxu0 %v590
      %731 = vmatprep.subr.bf16.mxu0 %v593
      %732 = vmatpush1.bf16.msra.mxu0 %v592
      %733 = vmatprep.subr.bf16.mxu0 %v595
      %734 = vmatpush1.bf16.msra.mxu0 %v594
      %735 = vmatprep.subr.bf16.mxu0 %v597
      %736 = vmatpush1.bf16.msra.mxu0 %v596
      %737 = vmatprep.subr.bf16.mxu0 %v599
      %738 = vmatpush1.bf16.msra.mxu0 %v598
      %739 = vmatprep.subr.bf16.mxu0 %v601
      %740 = vmatpush1.bf16.msra.mxu0 %v600
      %741 = vmatprep.subr.bf16.mxu0 %v603
      %742 = vmatpush1.bf16.msra.mxu0 %v602
      %743 = vmatprep.subr.bf16.mxu0 %v605
      %744 = vmatpush1.bf16.msra.mxu0 %v604
      %745 = vmatprep.subr.bf16.mxu0 %v607
      %746 = vmatpush1.bf16.msra.mxu0 %v606
      %747 = vmatprep.subr.bf16.mxu0 %v609
      %748 = vmatpush1.bf16.msra.mxu0 %v608
      %749 = vmatprep.subr.bf16.mxu0 %v611
      %750 = vmatpush1.bf16.msra.mxu0 %v610
      %751 = vmatprep.subr.bf16.mxu0 %v613
      %752 = vmatpush1.bf16.msra.mxu0 %v612
      %753 = vmatprep.mubr.bf16.mxu0 %v353
      %754 = vmatmul.mubr.bf16.gmra.mrb[0].mxu0 %v341
      %v755 = vpop.f32.mrb[0].mxu0
      %v756 = vadd.f32 %v713, %v755
      %v757 = vpop.f32.mrb[0].mxu0
      %v758 = vadd.f32 %v715, %v757
      %v759 = vpop.f32.mrb[0].mxu0
      %v760 = vadd.f32 %v717, %v759
      %v761 = vpop.f32.mrb[0].mxu0
      %v762 = vadd.f32 %v719, %v761
      %763 = vdwg.mxu0
      %v832 = vunpack.c.l.b16 %v148
      %v833 = vunpack.c.h.b16 %v148
      %v834 = vunpack.c.l.b16 %v149
      %v835 = vunpack.c.h.b16 %v149
      %v836 = vunpack.c.l.b16 %v150
      %v837 = vunpack.c.h.b16 %v150
      %v838 = vunpack.c.l.b16 %v151
      %v839 = vunpack.c.h.b16 %v151
      %v840 = vunpack.c.l.b16 %v152
      %v841 = vunpack.c.h.b16 %v152
      %v842 = vunpack.c.l.b16 %v153
      %v843 = vunpack.c.h.b16 %v153
      %v844 = vunpack.c.l.b16 %v154
      %v845 = vunpack.c.h.b16 %v154
      %v846 = vunpack.c.l.b16 %v155
      %v847 = vunpack.c.h.b16 %v155
      %v848 = vunpack.c.l.b16 %v156
      %v849 = vunpack.c.h.b16 %v156
      %v850 = vunpack.c.l.b16 %v157
      %v851 = vunpack.c.h.b16 %v157
      %v852 = vunpack.c.l.b16 %v158
      %v853 = vunpack.c.h.b16 %v158
      %v854 = vunpack.c.l.b16 %v159
      %v855 = vunpack.c.h.b16 %v159
      %v856 = vunpack.c.l.b16 %v160
      %v857 = vunpack.c.h.b16 %v160
      %v858 = vunpack.c.l.b16 %v161
      %v859 = vunpack.c.h.b16 %v161
      %v860 = vunpack.c.l.b16 %v162
      %v861 = vunpack.c.h.b16 %v162
      %v862 = vunpack.c.l.b16 %v163
      %v863 = vunpack.c.h.b16 %v163
      %v864 = vunpack.c.l.b16 %v164
      %v865 = vunpack.c.h.b16 %v164
      %v866 = vunpack.c.l.b16 %v165
      %v867 = vunpack.c.h.b16 %v165
      %v868 = vunpack.c.l.b16 %v166
      %v869 = vunpack.c.h.b16 %v166
      %v870 = vunpack.c.l.b16 %v167
      %v871 = vunpack.c.h.b16 %v167
      %v872 = vunpack.c.l.b16 %v168
      %v873 = vunpack.c.h.b16 %v168
      %v874 = vunpack.c.l.b16 %v169
      %v875 = vunpack.c.h.b16 %v169
      %v876 = vunpack.c.l.b16 %v170
      %v877 = vunpack.c.h.b16 %v170
      %v878 = vunpack.c.l.b16 %v171
      %v879 = vunpack.c.h.b16 %v171
      %v880 = vunpack.c.l.b16 %v172
      %v881 = vunpack.c.h.b16 %v172
      %v882 = vunpack.c.l.b16 %v173
      %v883 = vunpack.c.h.b16 %v173
      %v884 = vunpack.c.l.b16 %v174
      %v885 = vunpack.c.h.b16 %v174
      %v886 = vunpack.c.l.b16 %v175
      %v887 = vunpack.c.h.b16 %v175
      %v888 = vunpack.c.l.b16 %v176
      %v889 = vunpack.c.h.b16 %v176
      %v890 = vunpack.c.l.b16 %v177
      %v891 = vunpack.c.h.b16 %v177
      %v892 = vunpack.c.l.b16 %v178
      %v893 = vunpack.c.h.b16 %v178
      %v894 = vunpack.c.l.b16 %v179
      %v895 = vunpack.c.h.b16 %v179
      %v896 = vunpack.c.l.b16 %v180
      %v897 = vunpack.c.h.b16 %v180
      %v898 = vunpack.c.l.b16 %v181
      %v899 = vunpack.c.h.b16 %v181
      %v900 = vunpack.c.l.b16 %v182
      %v901 = vunpack.c.h.b16 %v182
      %v902 = vunpack.c.l.b16 %v183
      %v903 = vunpack.c.h.b16 %v183
      %v904 = vunpack.c.l.b16 %v184
      %v905 = vunpack.c.h.b16 %v184
      %v906 = vunpack.c.l.b16 %v185
      %v907 = vunpack.c.h.b16 %v185
      %v908 = vunpack.c.l.b16 %v186
      %v909 = vunpack.c.h.b16 %v186
      %v910 = vunpack.c.l.b16 %v187
      %v911 = vunpack.c.h.b16 %v187
      %v912 = vunpack.c.l.b16 %v188
      %v913 = vunpack.c.h.b16 %v188
      %v914 = vunpack.c.l.b16 %v189
      %v915 = vunpack.c.h.b16 %v189
      %v916 = vunpack.c.l.b16 %v190
      %v917 = vunpack.c.h.b16 %v190
      %v918 = vunpack.c.l.b16 %v191
      %v919 = vunpack.c.h.b16 %v191
      %v920 = vunpack.c.l.b16 %v192
      %v921 = vunpack.c.h.b16 %v192
      %v922 = vunpack.c.l.b16 %v193
      %v923 = vunpack.c.h.b16 %v193
      %v924 = vunpack.c.l.b16 %v194
      %v925 = vunpack.c.h.b16 %v194
      %v926 = vunpack.c.l.b16 %v195
      %v927 = vunpack.c.h.b16 %v195
      %v928 = vunpack.c.l.b16 %v196
      %v929 = vunpack.c.h.b16 %v196
      %v930 = vunpack.c.l.b16 %v197
      %v931 = vunpack.c.h.b16 %v197
      %v932 = vunpack.c.l.b16 %v198
      %v933 = vunpack.c.h.b16 %v198
      %v934 = vunpack.c.l.b16 %v199
      %v935 = vunpack.c.h.b16 %v199
      %v936 = vunpack.c.l.b16 %v200
      %v937 = vunpack.c.h.b16 %v200
      %v938 = vunpack.c.l.b16 %v201
      %v939 = vunpack.c.h.b16 %v201
      %v940 = vunpack.c.l.b16 %v202
      %v941 = vunpack.c.h.b16 %v202
      %v942 = vunpack.c.l.b16 %v203
      %v943 = vunpack.c.h.b16 %v203
      %v944 = vunpack.c.l.b16 %v204
      %v945 = vunpack.c.h.b16 %v204
      %v946 = vunpack.c.l.b16 %v205
      %v947 = vunpack.c.h.b16 %v205
      %v948 = vunpack.c.l.b16 %v206
      %v949 = vunpack.c.h.b16 %v206
      %v950 = vunpack.c.l.b16 %v207
      %v951 = vunpack.c.h.b16 %v207
      %v952 = vunpack.c.l.b16 %v208
      %v953 = vunpack.c.h.b16 %v208
      %v954 = vunpack.c.l.b16 %v209
      %v955 = vunpack.c.h.b16 %v209
      %v956 = vunpack.c.l.b16 %v210
      %v957 = vunpack.c.h.b16 %v210
      %v958 = vunpack.c.l.b16 %v211
      %v959 = vunpack.c.h.b16 %v211
      %v960 = vpack.c.b16 %v834, %v832
      %v961 = vpack.c.b16 %v835, %v833
      %v962 = vpack.c.b16 %v838, %v836
      %v963 = vpack.c.b16 %v839, %v837
      %v964 = vpack.c.b16 %v842, %v840
      %v965 = vpack.c.b16 %v843, %v841
      %v966 = vpack.c.b16 %v846, %v844
      %v967 = vpack.c.b16 %v847, %v845
      %v968 = vpack.c.b16 %v850, %v848
      %v969 = vpack.c.b16 %v851, %v849
      %v970 = vpack.c.b16 %v854, %v852
      %v971 = vpack.c.b16 %v855, %v853
      %v972 = vpack.c.b16 %v858, %v856
      %v973 = vpack.c.b16 %v859, %v857
      %v974 = vpack.c.b16 %v862, %v860
      %v975 = vpack.c.b16 %v863, %v861
      %v976 = vpack.c.b16 %v866, %v864
      %v977 = vpack.c.b16 %v867, %v865
      %v978 = vpack.c.b16 %v870, %v868
      %v979 = vpack.c.b16 %v871, %v869
      %v980 = vpack.c.b16 %v874, %v872
      %v981 = vpack.c.b16 %v875, %v873
      %v982 = vpack.c.b16 %v878, %v876
      %v983 = vpack.c.b16 %v879, %v877
      %v984 = vpack.c.b16 %v882, %v880
      %v985 = vpack.c.b16 %v883, %v881
      %v986 = vpack.c.b16 %v886, %v884
      %v987 = vpack.c.b16 %v887, %v885
      %v988 = vpack.c.b16 %v890, %v888
      %v989 = vpack.c.b16 %v891, %v889
      %v990 = vpack.c.b16 %v894, %v892
      %v991 = vpack.c.b16 %v895, %v893
      %v992 = vpack.c.b16 %v898, %v896
      %v993 = vpack.c.b16 %v899, %v897
      %v994 = vpack.c.b16 %v902, %v900
      %v995 = vpack.c.b16 %v903, %v901
      %v996 = vpack.c.b16 %v906, %v904
      %v997 = vpack.c.b16 %v907, %v905
      %v998 = vpack.c.b16 %v910, %v908
      %v999 = vpack.c.b16 %v911, %v909
      %v1000 = vpack.c.b16 %v914, %v912
      %v1001 = vpack.c.b16 %v915, %v913
      %v1002 = vpack.c.b16 %v918, %v916
      %v1003 = vpack.c.b16 %v919, %v917
      %v1004 = vpack.c.b16 %v922, %v920
      %v1005 = vpack.c.b16 %v923, %v921
      %v1006 = vpack.c.b16 %v926, %v924
      %v1007 = vpack.c.b16 %v927, %v925
      %v1008 = vpack.c.b16 %v930, %v928
      %v1009 = vpack.c.b16 %v931, %v929
      %v1010 = vpack.c.b16 %v934, %v932
      %v1011 = vpack.c.b16 %v935, %v933
      %v1012 = vpack.c.b16 %v938, %v936
      %v1013 = vpack.c.b16 %v939, %v937
      %v1014 = vpack.c.b16 %v942, %v940
      %v1015 = vpack.c.b16 %v943, %v941
      %v1016 = vpack.c.b16 %v946, %v944
      %v1017 = vpack.c.b16 %v947, %v945
      %v1018 = vpack.c.b16 %v950, %v948
      %v1019 = vpack.c.b16 %v951, %v949
      %v1020 = vpack.c.b16 %v954, %v952
      %v1021 = vpack.c.b16 %v955, %v953
      %v1022 = vpack.c.b16 %v958, %v956
      %v1023 = vpack.c.b16 %v959, %v957
      %1088 = vmatprep.subr.bf16.mxu0 %v961
      %1089 = vmatpush1.bf16.msra.mxu0 %v960
      %1090 = vmatprep.subr.bf16.mxu0 %v963
      %1091 = vmatpush1.bf16.msra.mxu0 %v962
      %1092 = vmatprep.subr.bf16.mxu0 %v965
      %1093 = vmatpush1.bf16.msra.mxu0 %v964
      %1094 = vmatprep.subr.bf16.mxu0 %v967
      %1095 = vmatpush1.bf16.msra.mxu0 %v966
      %1096 = vmatprep.subr.bf16.mxu0 %v969
      %1097 = vmatpush1.bf16.msra.mxu0 %v968
      %1098 = vmatprep.subr.bf16.mxu0 %v971
      %1099 = vmatpush1.bf16.msra.mxu0 %v970
      %1100 = vmatprep.subr.bf16.mxu0 %v973
      %1101 = vmatpush1.bf16.msra.mxu0 %v972
      %1102 = vmatprep.subr.bf16.mxu0 %v975
      %1103 = vmatpush1.bf16.msra.mxu0 %v974
      %1104 = vmatprep.subr.bf16.mxu0 %v977
      %1105 = vmatpush1.bf16.msra.mxu0 %v976
      %1106 = vmatprep.subr.bf16.mxu0 %v979
      %1107 = vmatpush1.bf16.msra.mxu0 %v978
      %1108 = vmatprep.subr.bf16.mxu0 %v981
      %1109 = vmatpush1.bf16.msra.mxu0 %v980
      %1110 = vmatprep.subr.bf16.mxu0 %v983
      %1111 = vmatpush1.bf16.msra.mxu0 %v982
      %1112 = vmatprep.subr.bf16.mxu0 %v985
      %1113 = vmatpush1.bf16.msra.mxu0 %v984
      %1114 = vmatprep.subr.bf16.mxu0 %v987
      %1115 = vmatpush1.bf16.msra.mxu0 %v986
      %1116 = vmatprep.subr.bf16.mxu0 %v989
      %1117 = vmatpush1.bf16.msra.mxu0 %v988
      %1118 = vmatprep.subr.bf16.mxu0 %v991
      %1119 = vmatpush1.bf16.msra.mxu0 %v990
      %1120 = vmatprep.mubr.bf16.mxu0 %v298
      %1121 = vmatmul.mubr.bf16.gmra.mrb[0].mxu0 %v297
      %v1122 = vpop.f32.mrb[0].mxu0
      %v1123 = vadd.f32 %v756, %v1122
      %v1124 = vpop.f32.mrb[0].mxu0
      %v1125 = vadd.f32 %v758, %v1124
      %v1126 = vpop.f32.mrb[0].mxu0
      %v1127 = vadd.f32 %v760, %v1126
      %v1128 = vpop.f32.mrb[0].mxu0
      %v1129 = vadd.f32 %v762, %v1128
      %1130 = vdwg.mxu0
      %1131 = vmatprep.subr.bf16.mxu0 %v993
      %1132 = vmatpush1.bf16.msra.mxu0 %v992
      %1133 = vmatprep.subr.bf16.mxu0 %v995
      %1134 = vmatpush1.bf16.msra.mxu0 %v994
      %1135 = vmatprep.subr.bf16.mxu0 %v997
      %1136 = vmatpush1.bf16.msra.mxu0 %v996
      %1137 = vmatprep.subr.bf16.mxu0 %v999
      %1138 = vmatpush1.bf16.msra.mxu0 %v998
      %1139 = vmatprep.subr.bf16.mxu0 %v1001
      %1140 = vmatpush1.bf16.msra.mxu0 %v1000
      %1141 = vmatprep.subr.bf16.mxu0 %v1003
      %1142 = vmatpush1.bf16.msra.mxu0 %v1002
      %1143 = vmatprep.subr.bf16.mxu0 %v1005
      %1144 = vmatpush1.bf16.msra.mxu0 %v1004
      %1145 = vmatprep.subr.bf16.mxu0 %v1007
      %1146 = vmatpush1.bf16.msra.mxu0 %v1006
      %1147 = vmatprep.subr.bf16.mxu0 %v1009
      %1148 = vmatpush1.bf16.msra.mxu0 %v1008
      %1149 = vmatprep.subr.bf16.mxu0 %v1011
      %1150 = vmatpush1.bf16.msra.mxu0 %v1010
      %1151 = vmatprep.subr.bf16.mxu0 %v1013
      %1152 = vmatpush1.bf16.msra.mxu0 %v1012
      %1153 = vmatprep.subr.bf16.mxu0 %v1015
      %1154 = vmatpush1.bf16.msra.mxu0 %v1014
      %1155 = vmatprep.subr.bf16.mxu0 %v1017
      %1156 = vmatpush1.bf16.msra.mxu0 %v1016
      %1157 = vmatprep.subr.bf16.mxu0 %v1019
      %1158 = vmatpush1.bf16.msra.mxu0 %v1018
      %1159 = vmatprep.subr.bf16.mxu0 %v1021
      %1160 = vmatpush1.bf16.msra.mxu0 %v1020
      %1161 = vmatprep.subr.bf16.mxu0 %v1023
      %1162 = vmatpush1.bf16.msra.mxu0 %v1022
      %1163 = vmatprep.mubr.bf16.mxu0 %v300
      %1164 = vmatmul.mubr.bf16.gmra.mrb[0].mxu0 %v299
      %v1165 = vpop.f32.mrb[0].mxu0
      %v1166 = vadd.f32 %v1123, %v1165
      %v1167 = vpop.f32.mrb[0].mxu0
      %v1168 = vadd.f32 %v1125, %v1167
      %v1169 = vpop.f32.mrb[0].mxu0
      %v1170 = vadd.f32 %v1127, %v1169
      %v1171 = vpop.f32.mrb[0].mxu0
      %v1172 = vadd.f32 %v1129, %v1171
      %1173 = vdwg.mxu0
      %v1174 = vld [vmem:[%s138] sm:$0xcc]
      %v1175 = vld [vmem:[%s138 + $0x8] sm:$0xcc]
      %v1176 = vld [vmem:[%s138 + $0x20] sm:$0x77]
      %v1177 = vld [vmem:[%s138 + $0x28] sm:$0x77]
      %s1178 = scalar_lea.vmem %s1, 1024
      %v1179 = vld [vmem:[%s1178] sm:$0xff]
      %v1180 = vld [vmem:[%s1178 + $0x8] sm:$0xff]
      %v1181 = vld [vmem:[%s1178 + $0x10] sm:$0xff]
      %v1182 = vld [vmem:[%s1178 + $0x18] sm:$0xff]
      %v1183 = vld [vmem:[%s1178 + $0x20] sm:$0xff]
      %v1184 = vld [vmem:[%s1178 + $0x28] sm:$0xff]
      %v1185 = vld [vmem:[%s1178 + $0x30] sm:$0xff]
      %v1186 = vld [vmem:[%s1178 + $0x38] sm:$0xff]
      %v1187 = vld [vmem:[%s1178 + $0x40] sm:$0xff]
      %v1188 = vld [vmem:[%s1178 + $0x48] sm:$0xff]
      %v1189 = vld [vmem:[%s1178 + $0x50] sm:$0xff]
      %v1190 = vld [vmem:[%s1178 + $0x58] sm:$0xff]
      %v1191 = vld [vmem:[%s1178 + $0x60] sm:$0xff]
      %v1192 = vld [vmem:[%s1178 + $0x68] sm:$0xff]
      %v1193 = vld [vmem:[%s1178 + $0x70] sm:$0xff]
      %v1194 = vld [vmem:[%s1178 + $0x78] sm:$0xff]
      %v1195 = vld [vmem:[%s1178 + $0x80] sm:$0xff]
      %v1196 = vld [vmem:[%s1178 + $0x88] sm:$0xff]
      %v1197 = vld [vmem:[%s1178 + $0x90] sm:$0xff]
      %v1198 = vld [vmem:[%s1178 + $0x98] sm:$0xff]
      %v1199 = vld [vmem:[%s1178 + $0xa0] sm:$0xff]
      %v1200 = vld [vmem:[%s1178 + $0xa8] sm:$0xff]
      %v1201 = vld [vmem:[%s1178 + $0xb0] sm:$0xff]
      %v1202 = vld [vmem:[%s1178 + $0xb8] sm:$0xff]
      %v1203 = vld [vmem:[%s1178 + $0xc0] sm:$0xff]
      %v1204 = vld [vmem:[%s1178 + $0xc8] sm:$0xff]
      %v1205 = vld [vmem:[%s1178 + $0xd0] sm:$0xff]
      %v1206 = vld [vmem:[%s1178 + $0xd8] sm:$0xff]
      %v1207 = vld [vmem:[%s1178 + $0xe0] sm:$0xff]
      %v1208 = vld [vmem:[%s1178 + $0xe8] sm:$0xff]
      %v1209 = vld [vmem:[%s1178 + $0xf0] sm:$0xff]
      %v1210 = vld [vmem:[%s1178 + $0xf8] sm:$0xff]
      %v1211 = vld [vmem:[%s1178 + $0x100] sm:$0xff]
      %v1212 = vld [vmem:[%s1178 + $0x108] sm:$0xff]
      %v1213 = vld [vmem:[%s1178 + $0x110] sm:$0xff]
      %v1214 = vld [vmem:[%s1178 + $0x118] sm:$0xff]
      %v1215 = vld [vmem:[%s1178 + $0x120] sm:$0xff]
      %v1216 = vld [vmem:[%s1178 + $0x128] sm:$0xff]
      %v1217 = vld [vmem:[%s1178 + $0x130] sm:$0xff]
      %v1218 = vld [vmem:[%s1178 + $0x138] sm:$0xff]
      %v1219 = vld [vmem:[%s1178 + $0x140] sm:$0xff]
      %v1220 = vld [vmem:[%s1178 + $0x148] sm:$0xff]
      %v1221 = vld [vmem:[%s1178 + $0x150] sm:$0xff]
      %v1222 = vld [vmem:[%s1178 + $0x158] sm:$0xff]
      %v1223 = vld [vmem:[%s1178 + $0x160] sm:$0xff]
      %v1224 = vld [vmem:[%s1178 + $0x168] sm:$0xff]
      %v1225 = vld [vmem:[%s1178 + $0x170] sm:$0xff]
      %v1226 = vld [vmem:[%s1178 + $0x178] sm:$0xff]
      %v1227 = vld [vmem:[%s1178 + $0x180] sm:$0xff]
      %v1228 = vld [vmem:[%s1178 + $0x188] sm:$0xff]
      %v1229 = vld [vmem:[%s1178 + $0x190] sm:$0xff]
      %v1230 = vld [vmem:[%s1178 + $0x198] sm:$0xff]
      %v1231 = vld [vmem:[%s1178 + $0x1a0] sm:$0xff]
      %v1232 = vld [vmem:[%s1178 + $0x1a8] sm:$0xff]
      %v1233 = vld [vmem:[%s1178 + $0x1b0] sm:$0xff]
      %v1234 = vld [vmem:[%s1178 + $0x1b8] sm:$0xff]
      %v1235 = vld [vmem:[%s1178 + $0x1c0] sm:$0xff]
      %v1236 = vld [vmem:[%s1178 + $0x1c8] sm:$0xff]
      %v1237 = vld [vmem:[%s1178 + $0x1d0] sm:$0xff]
      %v1238 = vld [vmem:[%s1178 + $0x1d8] sm:$0xff]
      %v1239 = vld [vmem:[%s1178 + $0x1e0] sm:$0xff]
      %v1240 = vld [vmem:[%s1178 + $0x1e8] sm:$0xff]
      %v1241 = vld [vmem:[%s1178 + $0x1f0] sm:$0xff]
      %v1242 = vld [vmem:[%s1178 + $0x1f8] sm:$0xff]
      %v1247 = vunpack.c.l.b16 %v1174
      %v1248 = vunpack.c.h.b16 %v1174
      %v1249 = vunpack.c.l.b16 %v1175
      %v1250 = vunpack.c.h.b16 %v1175
      %v1251 = vunpack.c.l.b16 %v1176
      %v1252 = vunpack.c.h.b16 %v1176
      %v1253 = vunpack.c.l.b16 %v1177
      %v1254 = vunpack.c.h.b16 %v1177
      %v1255 = vpack.c.b16 %v289, %v1247
      %v1256 = vpack.c.b16 %v290, %v1248
      %v1257 = vpack.c.b16 %v291, %v1249
      %v1258 = vpack.c.b16 %v292, %v1250
      %v1259 = vpack.c.b16 %v1251, %v1251
      %v1260 = vpack.c.b16 %v1252, %v1252
      %v1261 = vpack.c.b16 %v1253, %v1253
      %v1262 = vpack.c.b16 %v1254, %v1254
      %vm1263 = vsmask.f32 5376
      %v1265 = vshrl.u32 %v1255, 16
      %v1267 = vrot.slane %v1265, 2
      %v1268 = vshll.u32 %v1255, 16
      %v1270 = vrot.slane %v1268, 3
      %v1271 = vor.u32 %v1267, %v1270
      %v1273 = vshrl.u32 %v1259, 16
      %v1275 = vrot.slane %v1273, 2
      %v1276 = vshll.u32 %v1259, 16
      %v1278 = vrot.slane %v1276, 3
      %v1279 = vor.u32 %v1275, %v1278
      %v1280 = vsel %vm1263, %v1271, %v1279
      %v1282 = vshrl.u32 %v1256, 16
      %v1284 = vrot.slane %v1282, 2
      %v1285 = vshll.u32 %v1256, 16
      %v1287 = vrot.slane %v1285, 3
      %v1288 = vor.u32 %v1284, %v1287
      %v1290 = vshrl.u32 %v1260, 16
      %v1292 = vrot.slane %v1290, 2
      %v1293 = vshll.u32 %v1260, 16
      %v1295 = vrot.slane %v1293, 3
      %v1296 = vor.u32 %v1292, %v1295
      %v1297 = vsel %vm1263, %v1288, %v1296
      %v1299 = vshrl.u32 %v1257, 16
      %v1301 = vrot.slane %v1299, 2
      %v1302 = vshll.u32 %v1257, 16
      %v1304 = vrot.slane %v1302, 3
      %v1305 = vor.u32 %v1301, %v1304
      %v1307 = vshrl.u32 %v1261, 16
      %v1309 = vrot.slane %v1307, 2
      %v1310 = vshll.u32 %v1261, 16
      %v1312 = vrot.slane %v1310, 3
      %v1313 = vor.u32 %v1309, %v1312
      %v1314 = vsel %vm1263, %v1305, %v1313
      %v1316 = vshrl.u32 %v1258, 16
      %v1318 = vrot.slane %v1316, 2
      %v1319 = vshll.u32 %v1258, 16
      %v1321 = vrot.slane %v1319, 3
      %v1322 = vor.u32 %v1318, %v1321
      %v1324 = vshrl.u32 %v1262, 16
      %v1326 = vrot.slane %v1324, 2
      %v1327 = vshll.u32 %v1262, 16
      %v1329 = vrot.slane %v1327, 3
      %v1330 = vor.u32 %v1326, %v1329
      %v1331 = vsel %vm1263, %v1322, %v1330
      %v1400 = vunpack.c.l.b16 %v1179
      %v1401 = vunpack.c.h.b16 %v1179
      %v1402 = vunpack.c.l.b16 %v1180
      %v1403 = vunpack.c.h.b16 %v1180
      %v1404 = vunpack.c.l.b16 %v1181
      %v1405 = vunpack.c.h.b16 %v1181
      %v1406 = vunpack.c.l.b16 %v1182
      %v1407 = vunpack.c.h.b16 %v1182
      %v1408 = vunpack.c.l.b16 %v1183
      %v1409 = vunpack.c.h.b16 %v1183
      %v1410 = vunpack.c.l.b16 %v1184
      %v1411 = vunpack.c.h.b16 %v1184
      %v1412 = vunpack.c.l.b16 %v1185
      %v1413 = vunpack.c.h.b16 %v1185
      %v1414 = vunpack.c.l.b16 %v1186
      %v1415 = vunpack.c.h.b16 %v1186
      %v1416 = vunpack.c.l.b16 %v1187
      %v1417 = vunpack.c.h.b16 %v1187
      %v1418 = vunpack.c.l.b16 %v1188
      %v1419 = vunpack.c.h.b16 %v1188
      %v1420 = vunpack.c.l.b16 %v1189
      %v1421 = vunpack.c.h.b16 %v1189
      %v1422 = vunpack.c.l.b16 %v1190
      %v1423 = vunpack.c.h.b16 %v1190
      %v1424 = vunpack.c.l.b16 %v1191
      %v1425 = vunpack.c.h.b16 %v1191
      %v1426 = vunpack.c.l.b16 %v1192
      %v1427 = vunpack.c.h.b16 %v1192
      %v1428 = vunpack.c.l.b16 %v1193
      %v1429 = vunpack.c.h.b16 %v1193
      %v1430 = vunpack.c.l.b16 %v1194
      %v1431 = vunpack.c.h.b16 %v1194
      %v1432 = vunpack.c.l.b16 %v1195
      %v1433 = vunpack.c.h.b16 %v1195
      %v1434 = vunpack.c.l.b16 %v1196
      %v1435 = vunpack.c.h.b16 %v1196
      %v1436 = vunpack.c.l.b16 %v1197
      %v1437 = vunpack.c.h.b16 %v1197
      %v1438 = vunpack.c.l.b16 %v1198
      %v1439 = vunpack.c.h.b16 %v1198
      %v1440 = vunpack.c.l.b16 %v1199
      %v1441 = vunpack.c.h.b16 %v1199
      %v1442 = vunpack.c.l.b16 %v1200
      %v1443 = vunpack.c.h.b16 %v1200
      %v1444 = vunpack.c.l.b16 %v1201
      %v1445 = vunpack.c.h.b16 %v1201
      %v1446 = vunpack.c.l.b16 %v1202
      %v1447 = vunpack.c.h.b16 %v1202
      %v1448 = vunpack.c.l.b16 %v1203
      %v1449 = vunpack.c.h.b16 %v1203
      %v1450 = vunpack.c.l.b16 %v1204
      %v1451 = vunpack.c.h.b16 %v1204
      %v1452 = vunpack.c.l.b16 %v1205
      %v1453 = vunpack.c.h.b16 %v1205
      %v1454 = vunpack.c.l.b16 %v1206
      %v1455 = vunpack.c.h.b16 %v1206
      %v1456 = vunpack.c.l.b16 %v1207
      %v1457 = vunpack.c.h.b16 %v1207
      %v1458 = vunpack.c.l.b16 %v1208
      %v1459 = vunpack.c.h.b16 %v1208
      %v1460 = vunpack.c.l.b16 %v1209
      %v1461 = vunpack.c.h.b16 %v1209
      %v1462 = vunpack.c.l.b16 %v1210
      %v1463 = vunpack.c.h.b16 %v1210
      %v1464 = vunpack.c.l.b16 %v1211
      %v1465 = vunpack.c.h.b16 %v1211
      %v1466 = vunpack.c.l.b16 %v1212
      %v1467 = vunpack.c.h.b16 %v1212
      %v1468 = vunpack.c.l.b16 %v1213
      %v1469 = vunpack.c.h.b16 %v1213
      %v1470 = vunpack.c.l.b16 %v1214
      %v1471 = vunpack.c.h.b16 %v1214
      %v1472 = vunpack.c.l.b16 %v1215
      %v1473 = vunpack.c.h.b16 %v1215
      %v1474 = vunpack.c.l.b16 %v1216
      %v1475 = vunpack.c.h.b16 %v1216
      %v1476 = vunpack.c.l.b16 %v1217
      %v1477 = vunpack.c.h.b16 %v1217
      %v1478 = vunpack.c.l.b16 %v1218
      %v1479 = vunpack.c.h.b16 %v1218
      %v1480 = vunpack.c.l.b16 %v1219
      %v1481 = vunpack.c.h.b16 %v1219
      %v1482 = vunpack.c.l.b16 %v1220
      %v1483 = vunpack.c.h.b16 %v1220
      %v1484 = vunpack.c.l.b16 %v1221
      %v1485 = vunpack.c.h.b16 %v1221
      %v1486 = vunpack.c.l.b16 %v1222
      %v1487 = vunpack.c.h.b16 %v1222
      %v1488 = vunpack.c.l.b16 %v1223
      %v1489 = vunpack.c.h.b16 %v1223
      %v1490 = vunpack.c.l.b16 %v1224
      %v1491 = vunpack.c.h.b16 %v1224
      %v1492 = vunpack.c.l.b16 %v1225
      %v1493 = vunpack.c.h.b16 %v1225
      %v1494 = vunpack.c.l.b16 %v1226
      %v1495 = vunpack.c.h.b16 %v1226
      %v1496 = vunpack.c.l.b16 %v1227
      %v1497 = vunpack.c.h.b16 %v1227
      %v1498 = vunpack.c.l.b16 %v1228
      %v1499 = vunpack.c.h.b16 %v1228
      %v1500 = vunpack.c.l.b16 %v1229
      %v1501 = vunpack.c.h.b16 %v1229
      %v1502 = vunpack.c.l.b16 %v1230
      %v1503 = vunpack.c.h.b16 %v1230
      %v1504 = vunpack.c.l.b16 %v1231
      %v1505 = vunpack.c.h.b16 %v1231
      %v1506 = vunpack.c.l.b16 %v1232
      %v1507 = vunpack.c.h.b16 %v1232
      %v1508 = vunpack.c.l.b16 %v1233
      %v1509 = vunpack.c.h.b16 %v1233
      %v1510 = vunpack.c.l.b16 %v1234
      %v1511 = vunpack.c.h.b16 %v1234
      %v1512 = vunpack.c.l.b16 %v1235
      %v1513 = vunpack.c.h.b16 %v1235
      %v1514 = vunpack.c.l.b16 %v1236
      %v1515 = vunpack.c.h.b16 %v1236
      %v1516 = vunpack.c.l.b16 %v1237
      %v1517 = vunpack.c.h.b16 %v1237
      %v1518 = vunpack.c.l.b16 %v1238
      %v1519 = vunpack.c.h.b16 %v1238
      %v1520 = vunpack.c.l.b16 %v1239
      %v1521 = vunpack.c.h.b16 %v1239
      %v1522 = vunpack.c.l.b16 %v1240
      %v1523 = vunpack.c.h.b16 %v1240
      %v1524 = vunpack.c.l.b16 %v1241
      %v1525 = vunpack.c.h.b16 %v1241
      %v1526 = vunpack.c.l.b16 %v1242
      %v1527 = vunpack.c.h.b16 %v1242
      %v1528 = vpack.c.b16 %v1402, %v1400
      %v1529 = vpack.c.b16 %v1403, %v1401
      %v1530 = vpack.c.b16 %v1406, %v1404
      %v1531 = vpack.c.b16 %v1407, %v1405
      %v1532 = vpack.c.b16 %v1410, %v1408
      %v1533 = vpack.c.b16 %v1411, %v1409
      %v1534 = vpack.c.b16 %v1414, %v1412
      %v1535 = vpack.c.b16 %v1415, %v1413
      %v1536 = vpack.c.b16 %v1418, %v1416
      %v1537 = vpack.c.b16 %v1419, %v1417
      %v1538 = vpack.c.b16 %v1422, %v1420
      %v1539 = vpack.c.b16 %v1423, %v1421
      %v1540 = vpack.c.b16 %v1426, %v1424
      %v1541 = vpack.c.b16 %v1427, %v1425
      %v1542 = vpack.c.b16 %v1430, %v1428
      %v1543 = vpack.c.b16 %v1431, %v1429
      %v1544 = vpack.c.b16 %v1434, %v1432
      %v1545 = vpack.c.b16 %v1435, %v1433
      %v1546 = vpack.c.b16 %v1438, %v1436
      %v1547 = vpack.c.b16 %v1439, %v1437
      %v1548 = vpack.c.b16 %v1442, %v1440
      %v1549 = vpack.c.b16 %v1443, %v1441
      %v1550 = vpack.c.b16 %v1446, %v1444
      %v1551 = vpack.c.b16 %v1447, %v1445
      %v1552 = vpack.c.b16 %v1450, %v1448
      %v1553 = vpack.c.b16 %v1451, %v1449
      %v1554 = vpack.c.b16 %v1454, %v1452
      %v1555 = vpack.c.b16 %v1455, %v1453
      %v1556 = vpack.c.b16 %v1458, %v1456
      %v1557 = vpack.c.b16 %v1459, %v1457
      %v1558 = vpack.c.b16 %v1462, %v1460
      %v1559 = vpack.c.b16 %v1463, %v1461
      %v1560 = vpack.c.b16 %v1466, %v1464
      %v1561 = vpack.c.b16 %v1467, %v1465
      %v1562 = vpack.c.b16 %v1470, %v1468
      %v1563 = vpack.c.b16 %v1471, %v1469
      %v1564 = vpack.c.b16 %v1474, %v1472
      %v1565 = vpack.c.b16 %v1475, %v1473
      %v1566 = vpack.c.b16 %v1478, %v1476
      %v1567 = vpack.c.b16 %v1479, %v1477
      %v1568 = vpack.c.b16 %v1482, %v1480
      %v1569 = vpack.c.b16 %v1483, %v1481
      %v1570 = vpack.c.b16 %v1486, %v1484
      %v1571 = vpack.c.b16 %v1487, %v1485
      %v1572 = vpack.c.b16 %v1490, %v1488
      %v1573 = vpack.c.b16 %v1491, %v1489
      %v1574 = vpack.c.b16 %v1494, %v1492
      %v1575 = vpack.c.b16 %v1495, %v1493
      %v1576 = vpack.c.b16 %v1498, %v1496
      %v1577 = vpack.c.b16 %v1499, %v1497
      %v1578 = vpack.c.b16 %v1502, %v1500
      %v1579 = vpack.c.b16 %v1503, %v1501
      %v1580 = vpack.c.b16 %v1506, %v1504
      %v1581 = vpack.c.b16 %v1507, %v1505
      %v1582 = vpack.c.b16 %v1510, %v1508
      %v1583 = vpack.c.b16 %v1511, %v1509
      %v1584 = vpack.c.b16 %v1514, %v1512
      %v1585 = vpack.c.b16 %v1515, %v1513
      %v1586 = vpack.c.b16 %v1518, %v1516
      %v1587 = vpack.c.b16 %v1519, %v1517
      %v1588 = vpack.c.b16 %v1522, %v1520
      %v1589 = vpack.c.b16 %v1523, %v1521
      %v1590 = vpack.c.b16 %v1526, %v1524
      %v1591 = vpack.c.b16 %v1527, %v1525
      %1656 = vmatprep.subr.bf16.mxu0 %v1529
      %1657 = vmatpush1.bf16.msra.mxu0 %v1528
      %1658 = vmatprep.subr.bf16.mxu0 %v1531
      %1659 = vmatpush1.bf16.msra.mxu0 %v1530
      %1660 = vmatprep.subr.bf16.mxu0 %v1533
      %1661 = vmatpush1.bf16.msra.mxu0 %v1532
      %1662 = vmatprep.subr.bf16.mxu0 %v1535
      %1663 = vmatpush1.bf16.msra.mxu0 %v1534
      %1664 = vmatprep.subr.bf16.mxu0 %v1537
      %1665 = vmatpush1.bf16.msra.mxu0 %v1536
      %1666 = vmatprep.subr.bf16.mxu0 %v1539
      %1667 = vmatpush1.bf16.msra.mxu0 %v1538
      %1668 = vmatprep.subr.bf16.mxu0 %v1541
      %1669 = vmatpush1.bf16.msra.mxu0 %v1540
      %1670 = vmatprep.subr.bf16.mxu0 %v1543
      %1671 = vmatpush1.bf16.msra.mxu0 %v1542
      %1672 = vmatprep.subr.bf16.mxu0 %v1545
      %1673 = vmatpush1.bf16.msra.mxu0 %v1544
      %1674 = vmatprep.subr.bf16.mxu0 %v1547
      %1675 = vmatpush1.bf16.msra.mxu0 %v1546
      %1676 = vmatprep.subr.bf16.mxu0 %v1549
      %1677 = vmatpush1.bf16.msra.mxu0 %v1548
      %1678 = vmatprep.subr.bf16.mxu0 %v1551
      %1679 = vmatpush1.bf16.msra.mxu0 %v1550
      %1680 = vmatprep.subr.bf16.mxu0 %v1553
      %1681 = vmatpush1.bf16.msra.mxu0 %v1552
      %1682 = vmatprep.subr.bf16.mxu0 %v1555
      %1683 = vmatpush1.bf16.msra.mxu0 %v1554
      %1684 = vmatprep.subr.bf16.mxu0 %v1557
      %1685 = vmatpush1.bf16.msra.mxu0 %v1556
      %1686 = vmatprep.subr.bf16.mxu0 %v1559
      %1687 = vmatpush1.bf16.msra.mxu0 %v1558
      %1688 = vmatprep.mubr.bf16.mxu0 %v1297
      %1689 = vmatmul.mubr.bf16.gmra.mrb[0].mxu0 %v1280
      %v1690 = vpop.f32.mrb[0].mxu0
      %v1691 = vadd.f32 0.0, %v1690
      %v1692 = vpop.f32.mrb[0].mxu0
      %v1693 = vadd.f32 0.0, %v1692
      %v1694 = vpop.f32.mrb[0].mxu0
      %v1695 = vadd.f32 0.0, %v1694
      %v1696 = vpop.f32.mrb[0].mxu0
      %v1697 = vadd.f32 0.0, %v1696
      %1698 = vdwg.mxu0
      %1699 = vmatprep.subr.bf16.mxu0 %v1561
      %1700 = vmatpush1.bf16.msra.mxu0 %v1560
      %1701 = vmatprep.subr.bf16.mxu0 %v1563
      %1702 = vmatpush1.bf16.msra.mxu0 %v1562
      %1703 = vmatprep.subr.bf16.mxu0 %v1565
      %1704 = vmatpush1.bf16.msra.mxu0 %v1564
      %1705 = vmatprep.subr.bf16.mxu0 %v1567
      %1706 = vmatpush1.bf16.msra.mxu0 %v1566
      %1707 = vmatprep.subr.bf16.mxu0 %v1569
      %1708 = vmatpush1.bf16.msra.mxu0 %v1568
      %1709 = vmatprep.subr.bf16.mxu0 %v1571
      %1710 = vmatpush1.bf16.msra.mxu0 %v1570
      %1711 = vmatprep.subr.bf16.mxu0 %v1573
      %1712 = vmatpush1.bf16.msra.mxu0 %v1572
      %1713 = vmatprep.subr.bf16.mxu0 %v1575
      %1714 = vmatpush1.bf16.msra.mxu0 %v1574
      %1715 = vmatprep.subr.bf16.mxu0 %v1577
      %1716 = vmatpush1.bf16.msra.mxu0 %v1576
      %1717 = vmatprep.subr.bf16.mxu0 %v1579
      %1718 = vmatpush1.bf16.msra.mxu0 %v1578
      %1719 = vmatprep.subr.bf16.mxu0 %v1581
      %1720 = vmatpush1.bf16.msra.mxu0 %v1580
      %1721 = vmatprep.subr.bf16.mxu0 %v1583
      %1722 = vmatpush1.bf16.msra.mxu0 %v1582
      %1723 = vmatprep.subr.bf16.mxu0 %v1585
      %1724 = vmatpush1.bf16.msra.mxu0 %v1584
      %1725 = vmatprep.subr.bf16.mxu0 %v1587
      %1726 = vmatpush1.bf16.msra.mxu0 %v1586
      %1727 = vmatprep.subr.bf16.mxu0 %v1589
      %1728 = vmatpush1.bf16.msra.mxu0 %v1588
      %1729 = vmatprep.subr.bf16.mxu0 %v1591
      %1730 = vmatpush1.bf16.msra.mxu0 %v1590
      %1731 = vmatprep.mubr.bf16.mxu0 %v1331
      %1732 = vmatmul.mubr.bf16.gmra.mrb[0].mxu0 %v1314
      %v1733 = vpop.f32.mrb[0].mxu0
      %v1734 = vadd.f32 %v1691, %v1733
      %v1735 = vpop.f32.mrb[0].mxu0
      %v1736 = vadd.f32 %v1693, %v1735
      %v1737 = vpop.f32.mrb[0].mxu0
      %v1738 = vadd.f32 %v1695, %v1737
      %v1739 = vpop.f32.mrb[0].mxu0
      %v1740 = vadd.f32 %v1697, %v1739
      %1741 = vdwg.mxu0
      %v1742 = vadd.f32 %v1166, %v1734
      %v1743 = vadd.f32 %v1168, %v1736
      %v1744 = vadd.f32 %v1170, %v1738
      %v1745 = vadd.f32 %v1172, %v1740
      %v1746 = vld [vmem:[%s138] sm:$0x88]
      %v1747 = vld [vmem:[%s138 + $0x8] sm:$0x88]
      %s1748 = scalar_lea.vmem %s1, 1536
      %v1749 = vld [vmem:[%s1748] sm:$0xff]
      %v1750 = vld [vmem:[%s1748 + $0x8] sm:$0xff]
      %v1751 = vld [vmem:[%s1748 + $0x10] sm:$0xff]
      %v1752 = vld [vmem:[%s1748 + $0x18] sm:$0xff]
      %v1753 = vld [vmem:[%s1748 + $0x20] sm:$0xff]
      %v1754 = vld [vmem:[%s1748 + $0x28] sm:$0xff]
      %v1755 = vld [vmem:[%s1748 + $0x30] sm:$0xff]
      %v1756 = vld [vmem:[%s1748 + $0x38] sm:$0xff]
      %v1757 = vld [vmem:[%s1748 + $0x40] sm:$0xff]
      %v1758 = vld [vmem:[%s1748 + $0x48] sm:$0xff]
      %v1759 = vld [vmem:[%s1748 + $0x50] sm:$0xff]
      %v1760 = vld [vmem:[%s1748 + $0x58] sm:$0xff]
      %v1761 = vld [vmem:[%s1748 + $0x60] sm:$0xff]
      %v1762 = vld [vmem:[%s1748 + $0x68] sm:$0xff]
      %v1763 = vld [vmem:[%s1748 + $0x70] sm:$0xff]
      %v1764 = vld [vmem:[%s1748 + $0x78] sm:$0xff]
      %v1765 = vld [vmem:[%s1748 + $0x80] sm:$0xff]
      %v1766 = vld [vmem:[%s1748 + $0x88] sm:$0xff]
      %v1767 = vld [vmem:[%s1748 + $0x90] sm:$0xff]
      %v1768 = vld [vmem:[%s1748 + $0x98] sm:$0xff]
      %v1769 = vld [vmem:[%s1748 + $0xa0] sm:$0xff]
      %v1770 = vld [vmem:[%s1748 + $0xa8] sm:$0xff]
      %v1771 = vld [vmem:[%s1748 + $0xb0] sm:$0xff]
      %v1772 = vld [vmem:[%s1748 + $0xb8] sm:$0xff]
      %v1773 = vld [vmem:[%s1748 + $0xc0] sm:$0xff]
      %v1774 = vld [vmem:[%s1748 + $0xc8] sm:$0xff]
      %v1775 = vld [vmem:[%s1748 + $0xd0] sm:$0xff]
      %v1776 = vld [vmem:[%s1748 + $0xd8] sm:$0xff]
      %v1777 = vld [vmem:[%s1748 + $0xe0] sm:$0xff]
      %v1778 = vld [vmem:[%s1748 + $0xe8] sm:$0xff]
      %v1779 = vld [vmem:[%s1748 + $0xf0] sm:$0xff]
      %v1780 = vld [vmem:[%s1748 + $0xf8] sm:$0xff]
      %v1781 = vld [vmem:[%s1748 + $0x100] sm:$0xff]
      %v1782 = vld [vmem:[%s1748 + $0x108] sm:$0xff]
      %v1783 = vld [vmem:[%s1748 + $0x110] sm:$0xff]
      %v1784 = vld [vmem:[%s1748 + $0x118] sm:$0xff]
      %v1785 = vld [vmem:[%s1748 + $0x120] sm:$0xff]
      %v1786 = vld [vmem:[%s1748 + $0x128] sm:$0xff]
      %v1787 = vld [vmem:[%s1748 + $0x130] sm:$0xff]
      %v1788 = vld [vmem:[%s1748 + $0x138] sm:$0xff]
      %v1789 = vld [vmem:[%s1748 + $0x140] sm:$0xff]
      %v1790 = vld [vmem:[%s1748 + $0x148] sm:$0xff]
      %v1791 = vld [vmem:[%s1748 + $0x150] sm:$0xff]
      %v1792 = vld [vmem:[%s1748 + $0x158] sm:$0xff]
      %v1793 = vld [vmem:[%s1748 + $0x160] sm:$0xff]
      %v1794 = vld [vmem:[%s1748 + $0x168] sm:$0xff]
      %v1795 = vld [vmem:[%s1748 + $0x170] sm:$0xff]
      %v1796 = vld [vmem:[%s1748 + $0x178] sm:$0xff]
      %v1797 = vld [vmem:[%s1748 + $0x180] sm:$0xff]
      %v1798 = vld [vmem:[%s1748 + $0x188] sm:$0xff]
      %v1799 = vld [vmem:[%s1748 + $0x190] sm:$0xff]
      %v1800 = vld [vmem:[%s1748 + $0x198] sm:$0xff]
      %v1801 = vld [vmem:[%s1748 + $0x1a0] sm:$0xff]
      %v1802 = vld [vmem:[%s1748 + $0x1a8] sm:$0xff]
      %v1803 = vld [vmem:[%s1748 + $0x1b0] sm:$0xff]
      %v1804 = vld [vmem:[%s1748 + $0x1b8] sm:$0xff]
      %v1805 = vld [vmem:[%s1748 + $0x1c0] sm:$0xff]
      %v1806 = vld [vmem:[%s1748 + $0x1c8] sm:$0xff]
      %v1807 = vld [vmem:[%s1748 + $0x1d0] sm:$0xff]
      %v1808 = vld [vmem:[%s1748 + $0x1d8] sm:$0xff]
      %v1809 = vld [vmem:[%s1748 + $0x1e0] sm:$0xff]
      %v1810 = vld [vmem:[%s1748 + $0x1e8] sm:$0xff]
      %v1811 = vld [vmem:[%s1748 + $0x1f0] sm:$0xff]
      %v1812 = vld [vmem:[%s1748 + $0x1f8] sm:$0xff]
      %v1815 = vunpack.c.l.b16 %v1746
      %v1816 = vunpack.c.h.b16 %v1746
      %v1817 = vunpack.c.l.b16 %v1747
      %v1818 = vunpack.c.h.b16 %v1747
      %v1819 = vpack.c.b16 %v289, %v1815
      %v1820 = vpack.c.b16 %v290, %v1816
      %v1821 = vpack.c.b16 %v291, %v1817
      %v1822 = vpack.c.b16 %v292, %v1818
      %vm1823 = vcmask 1044480
      %v1824 = vrot.slane %v1819, 3
      %v1825 = vrot.slane %v1259, 3
      %v1826 = vsel %vm1823, %v1824, %v1825
      %v1827 = vrot.slane %v1820, 3
      %v1828 = vrot.slane %v1260, 3
      %v1829 = vsel %vm1823, %v1827, %v1828
      %v1830 = vrot.slane %v1821, 3
      %v1831 = vrot.slane %v1261, 3
      %v1832 = vsel %vm1823, %v1830, %v1831
      %v1833 = vrot.slane %v1822, 3
      %v1834 = vrot.slane %v1262, 3
      %v1835 = vsel %vm1823, %v1833, %v1834
      %v1904 = vunpack.c.l.b16 %v1749
      %v1905 = vunpack.c.h.b16 %v1749
      %v1906 = vunpack.c.l.b16 %v1750
      %v1907 = vunpack.c.h.b16 %v1750
      %v1908 = vunpack.c.l.b16 %v1751
      %v1909 = vunpack.c.h.b16 %v1751
      %v1910 = vunpack.c.l.b16 %v1752
      %v1911 = vunpack.c.h.b16 %v1752
      %v1912 = vunpack.c.l.b16 %v1753
      %v1913 = vunpack.c.h.b16 %v1753
      %v1914 = vunpack.c.l.b16 %v1754
      %v1915 = vunpack.c.h.b16 %v1754
      %v1916 = vunpack.c.l.b16 %v1755
      %v1917 = vunpack.c.h.b16 %v1755
      %v1918 = vunpack.c.l.b16 %v1756
      %v1919 = vunpack.c.h.b16 %v1756
      %v1920 = vunpack.c.l.b16 %v1757
      %v1921 = vunpack.c.h.b16 %v1757
      %v1922 = vunpack.c.l.b16 %v1758
      %v1923 = vunpack.c.h.b16 %v1758
      %v1924 = vunpack.c.l.b16 %v1759
      %v1925 = vunpack.c.h.b16 %v1759
      %v1926 = vunpack.c.l.b16 %v1760
      %v1927 = vunpack.c.h.b16 %v1760
      %v1928 = vunpack.c.l.b16 %v1761
      %v1929 = vunpack.c.h.b16 %v1761
      %v1930 = vunpack.c.l.b16 %v1762
      %v1931 = vunpack.c.h.b16 %v1762
      %v1932 = vunpack.c.l.b16 %v1763
      %v1933 = vunpack.c.h.b16 %v1763
      %v1934 = vunpack.c.l.b16 %v1764
      %v1935 = vunpack.c.h.b16 %v1764
      %v1936 = vunpack.c.l.b16 %v1765
      %v1937 = vunpack.c.h.b16 %v1765
      %v1938 = vunpack.c.l.b16 %v1766
      %v1939 = vunpack.c.h.b16 %v1766
      %v1940 = vunpack.c.l.b16 %v1767
      %v1941 = vunpack.c.h.b16 %v1767
      %v1942 = vunpack.c.l.b16 %v1768
      %v1943 = vunpack.c.h.b16 %v1768
      %v1944 = vunpack.c.l.b16 %v1769
      %v1945 = vunpack.c.h.b16 %v1769
      %v1946 = vunpack.c.l.b16 %v1770
      %v1947 = vunpack.c.h.b16 %v1770
      %v1948 = vunpack.c.l.b16 %v1771
      %v1949 = vunpack.c.h.b16 %v1771
      %v1950 = vunpack.c.l.b16 %v1772
      %v1951 = vunpack.c.h.b16 %v1772
      %v1952 = vunpack.c.l.b16 %v1773
      %v1953 = vunpack.c.h.b16 %v1773
      %v1954 = vunpack.c.l.b16 %v1774
      %v1955 = vunpack.c.h.b16 %v1774
      %v1956 = vunpack.c.l.b16 %v1775
      %v1957 = vunpack.c.h.b16 %v1775
      %v1958 = vunpack.c.l.b16 %v1776
      %v1959 = vunpack.c.h.b16 %v1776
      %v1960 = vunpack.c.l.b16 %v1777
      %v1961 = vunpack.c.h.b16 %v1777
      %v1962 = vunpack.c.l.b16 %v1778
      %v1963 = vunpack.c.h.b16 %v1778
      %v1964 = vunpack.c.l.b16 %v1779
      %v1965 = vunpack.c.h.b16 %v1779
      %v1966 = vunpack.c.l.b16 %v1780
      %v1967 = vunpack.c.h.b16 %v1780
      %v1968 = vunpack.c.l.b16 %v1781
      %v1969 = vunpack.c.h.b16 %v1781
      %v1970 = vunpack.c.l.b16 %v1782
      %v1971 = vunpack.c.h.b16 %v1782
      %v1972 = vunpack.c.l.b16 %v1783
      %v1973 = vunpack.c.h.b16 %v1783
      %v1974 = vunpack.c.l.b16 %v1784
      %v1975 = vunpack.c.h.b16 %v1784
      %v1976 = vunpack.c.l.b16 %v1785
      %v1977 = vunpack.c.h.b16 %v1785
      %v1978 = vunpack.c.l.b16 %v1786
      %v1979 = vunpack.c.h.b16 %v1786
      %v1980 = vunpack.c.l.b16 %v1787
      %v1981 = vunpack.c.h.b16 %v1787
      %v1982 = vunpack.c.l.b16 %v1788
      %v1983 = vunpack.c.h.b16 %v1788
      %v1984 = vunpack.c.l.b16 %v1789
      %v1985 = vunpack.c.h.b16 %v1789
      %v1986 = vunpack.c.l.b16 %v1790
      %v1987 = vunpack.c.h.b16 %v1790
      %v1988 = vunpack.c.l.b16 %v1791
      %v1989 = vunpack.c.h.b16 %v1791
      %v1990 = vunpack.c.l.b16 %v1792
      %v1991 = vunpack.c.h.b16 %v1792
      %v1992 = vunpack.c.l.b16 %v1793
      %v1993 = vunpack.c.h.b16 %v1793
      %v1994 = vunpack.c.l.b16 %v1794
      %v1995 = vunpack.c.h.b16 %v1794
      %v1996 = vunpack.c.l.b16 %v1795
      %v1997 = vunpack.c.h.b16 %v1795
      %v1998 = vunpack.c.l.b16 %v1796
      %v1999 = vunpack.c.h.b16 %v1796
      %v2000 = vunpack.c.l.b16 %v1797
      %v2001 = vunpack.c.h.b16 %v1797
      %v2002 = vunpack.c.l.b16 %v1798
      %v2003 = vunpack.c.h.b16 %v1798
      %v2004 = vunpack.c.l.b16 %v1799
      %v2005 = vunpack.c.h.b16 %v1799
      %v2006 = vunpack.c.l.b16 %v1800
      %v2007 = vunpack.c.h.b16 %v1800
      %v2008 = vunpack.c.l.b16 %v1801
      %v2009 = vunpack.c.h.b16 %v1801
      %v2010 = vunpack.c.l.b16 %v1802
      %v2011 = vunpack.c.h.b16 %v1802
      %v2012 = vunpack.c.l.b16 %v1803
      %v2013 = vunpack.c.h.b16 %v1803
      %v2014 = vunpack.c.l.b16 %v1804
      %v2015 = vunpack.c.h.b16 %v1804
      %v2016 = vunpack.c.l.b16 %v1805
      %v2017 = vunpack.c.h.b16 %v1805
      %v2018 = vunpack.c.l.b16 %v1806
      %v2019 = vunpack.c.h.b16 %v1806
      %v2020 = vunpack.c.l.b16 %v1807
      %v2021 = vunpack.c.h.b16 %v1807
      %v2022 = vunpack.c.l.b16 %v1808
      %v2023 = vunpack.c.h.b16 %v1808
      %v2024 = vunpack.c.l.b16 %v1809
      %v2025 = vunpack.c.h.b16 %v1809
      %v2026 = vunpack.c.l.b16 %v1810
      %v2027 = vunpack.c.h.b16 %v1810
      %v2028 = vunpack.c.l.b16 %v1811
      %v2029 = vunpack.c.h.b16 %v1811
      %v2030 = vunpack.c.l.b16 %v1812
      %v2031 = vunpack.c.h.b16 %v1812
      %v2032 = vpack.c.b16 %v1906, %v1904
      %v2033 = vpack.c.b16 %v1907, %v1905
      %v2034 = vpack.c.b16 %v1910, %v1908
      %v2035 = vpack.c.b16 %v1911, %v1909
      %v2036 = vpack.c.b16 %v1914, %v1912
      %v2037 = vpack.c.b16 %v1915, %v1913
      %v2038 = vpack.c.b16 %v1918, %v1916
      %v2039 = vpack.c.b16 %v1919, %v1917
      %v2040 = vpack.c.b16 %v1922, %v1920
      %v2041 = vpack.c.b16 %v1923, %v1921
      %v2042 = vpack.c.b16 %v1926, %v1924
      %v2043 = vpack.c.b16 %v1927, %v1925
      %v2044 = vpack.c.b16 %v1930, %v1928
      %v2045 = vpack.c.b16 %v1931, %v1929
      %v2046 = vpack.c.b16 %v1934, %v1932
      %v2047 = vpack.c.b16 %v1935, %v1933
      %v2048 = vpack.c.b16 %v1938, %v1936
      %v2049 = vpack.c.b16 %v1939, %v1937
      %v2050 = vpack.c.b16 %v1942, %v1940
      %v2051 = vpack.c.b16 %v1943, %v1941
      %v2052 = vpack.c.b16 %v1946, %v1944
      %v2053 = vpack.c.b16 %v1947, %v1945
      %v2054 = vpack.c.b16 %v1950, %v1948
      %v2055 = vpack.c.b16 %v1951, %v1949
      %v2056 = vpack.c.b16 %v1954, %v1952
      %v2057 = vpack.c.b16 %v1955, %v1953
      %v2058 = vpack.c.b16 %v1958, %v1956
      %v2059 = vpack.c.b16 %v1959, %v1957
      %v2060 = vpack.c.b16 %v1962, %v1960
      %v2061 = vpack.c.b16 %v1963, %v1961
      %v2062 = vpack.c.b16 %v1966, %v1964
      %v2063 = vpack.c.b16 %v1967, %v1965
      %v2064 = vpack.c.b16 %v1970, %v1968
      %v2065 = vpack.c.b16 %v1971, %v1969
      %v2066 = vpack.c.b16 %v1974, %v1972
      %v2067 = vpack.c.b16 %v1975, %v1973
      %v2068 = vpack.c.b16 %v1978, %v1976
      %v2069 = vpack.c.b16 %v1979, %v1977
      %v2070 = vpack.c.b16 %v1982, %v1980
      %v2071 = vpack.c.b16 %v1983, %v1981
      %v2072 = vpack.c.b16 %v1986, %v1984
      %v2073 = vpack.c.b16 %v1987, %v1985
      %v2074 = vpack.c.b16 %v1990, %v1988
      %v2075 = vpack.c.b16 %v1991, %v1989
      %v2076 = vpack.c.b16 %v1994, %v1992
      %v2077 = vpack.c.b16 %v1995, %v1993
      %v2078 = vpack.c.b16 %v1998, %v1996
      %v2079 = vpack.c.b16 %v1999, %v1997
      %v2080 = vpack.c.b16 %v2002, %v2000
      %v2081 = vpack.c.b16 %v2003, %v2001
      %v2082 = vpack.c.b16 %v2006, %v2004
      %v2083 = vpack.c.b16 %v2007, %v2005
      %v2084 = vpack.c.b16 %v2010, %v2008
      %v2085 = vpack.c.b16 %v2011, %v2009
      %v2086 = vpack.c.b16 %v2014, %v2012
      %v2087 = vpack.c.b16 %v2015, %v2013
      %v2088 = vpack.c.b16 %v2018, %v2016
      %v2089 = vpack.c.b16 %v2019, %v2017
      %v2090 = vpack.c.b16 %v2022, %v2020
      %v2091 = vpack.c.b16 %v2023, %v2021
      %v2092 = vpack.c.b16 %v2026, %v2024
      %v2093 = vpack.c.b16 %v2027, %v2025
      %v2094 = vpack.c.b16 %v2030, %v2028
      %v2095 = vpack.c.b16 %v2031, %v2029
      %2160 = vmatprep.subr.bf16.mxu0 %v2033
      %2161 = vmatpush1.bf16.msra.mxu0 %v2032
      %2162 = vmatprep.subr.bf16.mxu0 %v2035
      %2163 = vmatpush1.bf16.msra.mxu0 %v2034
      %2164 = vmatprep.subr.bf16.mxu0 %v2037
      %2165 = vmatpush1.bf16.msra.mxu0 %v2036
      %2166 = vmatprep.subr.bf16.mxu0 %v2039
      %2167 = vmatpush1.bf16.msra.mxu0 %v2038
      %2168 = vmatprep.subr.bf16.mxu0 %v2041
      %2169 = vmatpush1.bf16.msra.mxu0 %v2040
      %2170 = vmatprep.subr.bf16.mxu0 %v2043
      %2171 = vmatpush1.bf16.msra.mxu0 %v2042
      %2172 = vmatprep.subr.bf16.mxu0 %v2045
      %2173 = vmatpush1.bf16.msra.mxu0 %v2044
      %2174 = vmatprep.subr.bf16.mxu0 %v2047
      %2175 = vmatpush1.bf16.msra.mxu0 %v2046
      %2176 = vmatprep.subr.bf16.mxu0 %v2049
      %2177 = vmatpush1.bf16.msra.mxu0 %v2048
      %2178 = vmatprep.subr.bf16.mxu0 %v2051
      %2179 = vmatpush1.bf16.msra.mxu0 %v2050
      %2180 = vmatprep.subr.bf16.mxu0 %v2053
      %2181 = vmatpush1.bf16.msra.mxu0 %v2052
      %2182 = vmatprep.subr.bf16.mxu0 %v2055
      %2183 = vmatpush1.bf16.msra.mxu0 %v2054
      %2184 = vmatprep.subr.bf16.mxu0 %v2057
      %2185 = vmatpush1.bf16.msra.mxu0 %v2056
      %2186 = vmatprep.subr.bf16.mxu0 %v2059
      %2187 = vmatpush1.bf16.msra.mxu0 %v2058
      %2188 = vmatprep.subr.bf16.mxu0 %v2061
      %2189 = vmatpush1.bf16.msra.mxu0 %v2060
      %2190 = vmatprep.subr.bf16.mxu0 %v2063
      %2191 = vmatpush1.bf16.msra.mxu0 %v2062
      %2192 = vmatprep.mubr.bf16.mxu0 %v1829
      %2193 = vmatmul.mubr.bf16.gmra.mrb[0].mxu0 %v1826
      %v2194 = vpop.f32.mrb[0].mxu0
      %v2195 = vadd.f32 0.0, %v2194
      %v2196 = vpop.f32.mrb[0].mxu0
      %v2197 = vadd.f32 0.0, %v2196
      %v2198 = vpop.f32.mrb[0].mxu0
      %v2199 = vadd.f32 0.0, %v2198
      %v2200 = vpop.f32.mrb[0].mxu0
      %v2201 = vadd.f32 0.0, %v2200
      %2202 = vdwg.mxu0
      %2203 = vmatprep.subr.bf16.mxu0 %v2065
      %2204 = vmatpush1.bf16.msra.mxu0 %v2064
      %2205 = vmatprep.subr.bf16.mxu0 %v2067
      %2206 = vmatpush1.bf16.msra.mxu0 %v2066
      %2207 = vmatprep.subr.bf16.mxu0 %v2069
      %2208 = vmatpush1.bf16.msra.mxu0 %v2068
      %2209 = vmatprep.subr.bf16.mxu0 %v2071
      %2210 = vmatpush1.bf16.msra.mxu0 %v2070
      %2211 = vmatprep.subr.bf16.mxu0 %v2073
      %2212 = vmatpush1.bf16.msra.mxu0 %v2072
      %2213 = vmatprep.subr.bf16.mxu0 %v2075
      %2214 = vmatpush1.bf16.msra.mxu0 %v2074
      %2215 = vmatprep.subr.bf16.mxu0 %v2077
      %2216 = vmatpush1.bf16.msra.mxu0 %v2076
      %2217 = vmatprep.subr.bf16.mxu0 %v2079
      %2218 = vmatpush1.bf16.msra.mxu0 %v2078
      %2219 = vmatprep.subr.bf16.mxu0 %v2081
      %2220 = vmatpush1.bf16.msra.mxu0 %v2080
      %2221 = vmatprep.subr.bf16.mxu0 %v2083
      %2222 = vmatpush1.bf16.msra.mxu0 %v2082
      %2223 = vmatprep.subr.bf16.mxu0 %v2085
      %2224 = vmatpush1.bf16.msra.mxu0 %v2084
      %2225 = vmatprep.subr.bf16.mxu0 %v2087
      %2226 = vmatpush1.bf16.msra.mxu0 %v2086
      %2227 = vmatprep.subr.bf16.mxu0 %v2089
      %2228 = vmatpush1.bf16.msra.mxu0 %v2088
      %2229 = vmatprep.subr.bf16.mxu0 %v2091
      %2230 = vmatpush1.bf16.msra.mxu0 %v2090
      %2231 = vmatprep.subr.bf16.mxu0 %v2093
      %2232 = vmatpush1.bf16.msra.mxu0 %v2092
      %2233 = vmatprep.subr.bf16.mxu0 %v2095
      %2234 = vmatpush1.bf16.msra.mxu0 %v2094
      %2235 = vmatprep.mubr.bf16.mxu0 %v1835
      %2236 = vmatmul.mubr.bf16.gmra.mrb[0].mxu0 %v1832
      %v2237 = vpop.f32.mrb[0].mxu0
      %v2238 = vadd.f32 %v2195, %v2237
      %v2239 = vpop.f32.mrb[0].mxu0
      %v2240 = vadd.f32 %v2197, %v2239
      %v2241 = vpop.f32.mrb[0].mxu0
      %v2242 = vadd.f32 %v2199, %v2241
      %v2243 = vpop.f32.mrb[0].mxu0
      %v2244 = vadd.f32 %v2201, %v2243
      %2245 = vdwg.mxu0
      %v2246 = vadd.f32 %v1742, %v2238
      %v2247 = vadd.f32 %v1743, %v2240
      %v2248 = vadd.f32 %v1744, %v2242
      %v2249 = vadd.f32 %v1745, %v2244
      %v2250 = vmul.f32 %v2246, 0.2
      %v2251 = vmul.f32 %v2247, 0.2
      %v2252 = vmul.f32 %v2248, 0.2
      %v2253 = vmul.f32 %v2249, 0.2
      %v2254 = vmax.f32 %v2246, %v2250
      %v2255 = vmax.f32 %v2247, %v2251
      %v2256 = vmax.f32 %v2248, %v2252
      %v2257 = vmax.f32 %v2249, %v2253
      %2258 = vst [vmem:[%s143] sm:$0xff] %v2254
      %2259 = vst [vmem:[%s143 + $0x8] sm:$0xff] %v2255
      %2260 = vst [vmem:[%s143 + $0x10] sm:$0xff] %v2256
      %2261 = vst [vmem:[%s143 + $0x18] sm:$0xff] %v2257
      %p2262 = scmp.lt.s32.totalorder %s13, 1
      %s2263 = scalar_select %p2262, %s13, 1
      %s2264 = smul.addr %s2263, 4
      %s2265 = smul.addr %s2264, 8
      %s2266 = scalar_lea.vmem %s2, %s2265
      // Predicated region
      $region29: #{discriminator_forward.6} parent=27 // pred_check
        %p2267 = pneg %p78
      $region30: #{discriminator_forward.6} parent=27 // pred_check_branch
        %2269 = sbr.rel (%p2267) target = $region32
      $region31: #{discriminator_forward.6} parent=27 // pred_region
        _
      $region32: #{discriminator_forward.6} parent=27 // pred_fallthru
        _
    $region28: #{discriminator_forward.6} parent=5 // pred_fallthru
      _
    %p2270 = scmp.le.s32.totalorder 2, %s8
    // Predicated region
    $region33: #{discriminator_forward.6} parent=5 // pred_check
      %p2271 = pneg %p2270
    $region34: #{discriminator_forward.6} parent=5 // pred_check_branch
      %2273 = sbr.rel (%p2271) target = $region36
    $region35: #{discriminator_forward.6} parent=5 // pred_region
      %s2274 = ssub.s32 %s8, 2
      // Predicated region
      $region37: #{discriminator_forward.6} parent=35 // pred_check
        %p2275 = pneg %p84
      $region38: #{discriminator_forward.6} parent=35 // pred_check_branch
        %2277 = sbr.rel (%p2275) target = $region40
      $region39: #{discriminator_forward.6} parent=35 // pred_region
        %p2278 = scmp.lt.s32.totalorder %s14, 1
        %s2279 = scalar_select %p2278, %s14, 1
        %s2280 = smul.addr %s2279, 4
        %s2281 = smul.addr %s2280, 8
        %s2282 = scalar_lea.vmem %s2, %s2281
      $region40: #{discriminator_forward.6} parent=35 // pred_fallthru
        _
    $region36: #{discriminator_forward.6} parent=5 // pred_fallthru
      _
  $region6: #{discriminator_forward.6} parent=0 // loop_footer
    %s12 = sadd.s32 1, %s8
  $region7: #{discriminator_forward.6} parent=0 // loop_footer_branch
    %7 = sbr.rel target = $region3
  $region8: #{discriminator_forward.6} parent=0 // loop_exit
    _

// kernel: discriminator_forward.7
$region0: #{discriminator_forward.7}
  #allocation0 [shape = 'u32[]', space=smem, size = 0x4, offset = 0x4, fixed_abs, tag = 'smem constant byte address 0x4 - core index']
  #allocation1 [shape = 'u32[144,128]{1,0:T(1,128)}', space=vmem, size = 0x12000, scoped, tag = 'internal scratch']
  %s0 = inlined_call_operand.vmem [shape: bf16[2,2304], index: 0, kind: input, shape index: {}]
  %s1 = inlined_call_operand.vmem [shape: bf16[2304,128], index: 1, kind: input, shape index: {}]
  %s2 = inlined_call_operand.vmem [shape: f32[1,128], index: 2, kind: input, shape index: {}]
  %s3 = inlined_call_operand.vmem [shape: f32[2,128], index: 3, kind: output, shape index: {}]
  %s4 = sld [smem:[#allocation0]]
  $region22: #{discriminator_forward.7} parent=0
    _
  %s6 = ssub.s32 1, %s4
  %s7 = scalar_select 0, %s6, %s4
  // Predicated region
  $region2: #{discriminator_forward.7} parent=0 // pred_check
    _
  $region3: #{discriminator_forward.7} parent=0 // pred_check_branch
    %9 = sbr.rel (0) target = $region5
  $region4: #{discriminator_forward.7} parent=0 // pred_region
    _
  $region5: #{discriminator_forward.7} parent=0 // pred_fallthru
    _
  // Predicated region
  $region6: #{discriminator_forward.7} parent=0 // pred_check
    _
  $region7: #{discriminator_forward.7} parent=0 // pred_check_branch
    %11 = sbr.rel (0) target = $region9
  $region8: #{discriminator_forward.7} parent=0 // pred_region
    _
  $region9: #{discriminator_forward.7} parent=0 // pred_fallthru
    _
  // Predicated region
  $region10: #{discriminator_forward.7} parent=0 // pred_check
    _
  $region11: #{discriminator_forward.7} parent=0 // pred_check_branch
    %13 = sbr.rel (0) target = $region13
  $region12: #{discriminator_forward.7} parent=0 // pred_region
    _
  $region13: #{discriminator_forward.7} parent=0 // pred_fallthru
    _
  %v15 = vld [vmem:[%s0] sm:$0xff]
  %v16 = vld [vmem:[%s0 + $0x8] sm:$0xff]
  %v17 = vld [vmem:[%s0 + $0x10] sm:$0x3]
  %v18 = vld [vmem:[%s1] sm:$0xf]
  %v19 = vld [vmem:[%s1 + $0x4] sm:$0xf]
  %v20 = vld [vmem:[%s1 + $0x8] sm:$0xf]
  %v21 = vld [vmem:[%s1 + $0xc] sm:$0xf]
  %v22 = vld [vmem:[%s1 + $0x10] sm:$0xf]
  %v23 = vld [vmem:[%s1 + $0x14] sm:$0xf]
  %v24 = vld [vmem:[%s1 + $0x18] sm:$0xf]
  %v25 = vld [vmem:[%s1 + $0x1c] sm:$0xf]
  %v26 = vld [vmem:[%s1 + $0x20] sm:$0xf]
  %v27 = vld [vmem:[%s1 + $0x24] sm:$0xf]
  %v28 = vld [vmem:[%s1 + $0x28] sm:$0xf]
  %v29 = vld [vmem:[%s1 + $0x2c] sm:$0xf]
  %v30 = vld [vmem:[%s1 + $0x30] sm:$0xf]
  %v31 = vld [vmem:[%s1 + $0x34] sm:$0xf]
  %v32 = vld [vmem:[%s1 + $0x38] sm:$0xf]
  %v33 = vld [vmem:[%s1 + $0x3c] sm:$0xf]
  %v34 = vld [vmem:[%s1 + $0x40] sm:$0xf]
  %v35 = vld [vmem:[%s1 + $0x44] sm:$0xf]
  %v36 = vld [vmem:[%s1 + $0x48] sm:$0xf]
  %v37 = vld [vmem:[%s1 + $0x4c] sm:$0xf]
  %v38 = vld [vmem:[%s1 + $0x50] sm:$0xf]
  %v39 = vld [vmem:[%s1 + $0x54] sm:$0xf]
  %v40 = vld [vmem:[%s1 + $0x58] sm:$0xf]
  %v41 = vld [vmem:[%s1 + $0x5c] sm:$0xf]
  %v42 = vld [vmem:[%s1 + $0x60] sm:$0xf]
  %v43 = vld [vmem:[%s1 + $0x64] sm:$0xf]
  %v44 = vld [vmem:[%s1 + $0x68] sm:$0xf]
  %v45 = vld [vmem:[%s1 + $0x6c] sm:$0xf]
  %v46 = vld [vmem:[%s1 + $0x70] sm:$0xf]
  %v47 = vld [vmem:[%s1 + $0x74] sm:$0xf]
  %v48 = vld [vmem:[%s1 + $0x78] sm:$0xf]
  %v49 = vld [vmem:[%s1 + $0x7c] sm:$0xf]
  %v50 = vld [vmem:[%s1 + $0x80] sm:$0xf]
  %v51 = vld [vmem:[%s1 + $0x84] sm:$0xf]
  %v52 = vld [vmem:[%s1 + $0x88] sm:$0xf]
  %v53 = vld [vmem:[%s1 + $0x8c] sm:$0xf]
  %v54 = vld [vmem:[%s1 + $0x90] sm:$0xf]
  %v55 = vld [vmem:[%s1 + $0x94] sm:$0xf]
  %v56 = vld [vmem:[%s1 + $0x98] sm:$0xf]
  %v57 = vld [vmem:[%s1 + $0x9c] sm:$0xf]
  %v58 = vld [vmem:[%s1 + $0xa0] sm:$0xf]
  %v59 = vld [vmem:[%s1 + $0xa4] sm:$0xf]
  %v60 = vld [vmem:[%s1 + $0xa8] sm:$0xf]
  %v61 = vld [vmem:[%s1 + $0xac] sm:$0xf]
  %v62 = vld [vmem:[%s1 + $0xb0] sm:$0xf]
  %v63 = vld [vmem:[%s1 + $0xb4] sm:$0xf]
  %v64 = vld [vmem:[%s1 + $0xb8] sm:$0xf]
  %v65 = vld [vmem:[%s1 + $0xbc] sm:$0xf]
  %v66 = vld [vmem:[%s1 + $0xc0] sm:$0xf]
  %v67 = vld [vmem:[%s1 + $0xc4] sm:$0xf]
  %v68 = vld [vmem:[%s1 + $0xc8] sm:$0xf]
  %v69 = vld [vmem:[%s1 + $0xcc] sm:$0xf]
  %v70 = vld [vmem:[%s1 + $0xd0] sm:$0xf]
  %v71 = vld [vmem:[%s1 + $0xd4] sm:$0xf]
  %v72 = vld [vmem:[%s1 + $0xd8] sm:$0xf]
  %v73 = vld [vmem:[%s1 + $0xdc] sm:$0xf]
  %v74 = vld [vmem:[%s1 + $0xe0] sm:$0xf]
  %v75 = vld [vmem:[%s1 + $0xe4] sm:$0xf]
  %v76 = vld [vmem:[%s1 + $0xe8] sm:$0xf]
  %v77 = vld [vmem:[%s1 + $0xec] sm:$0xf]
  %v78 = vld [vmem:[%s1 + $0xf0] sm:$0xf]
  %v79 = vld [vmem:[%s1 + $0xf4] sm:$0xf]
  %v80 = vld [vmem:[%s1 + $0xf8] sm:$0xf]
  %v81 = vld [vmem:[%s1 + $0xfc] sm:$0xf]
  %v82 = vld [vmem:[%s1 + $0x100] sm:$0xf]
  %v83 = vld [vmem:[%s1 + $0x104] sm:$0xf]
  %v84 = vld [vmem:[%s1 + $0x108] sm:$0xf]
  %v85 = vld [vmem:[%s1 + $0x10c] sm:$0xf]
  %v86 = vld [vmem:[%s1 + $0x110] sm:$0xf]
  %v87 = vld [vmem:[%s1 + $0x114] sm:$0xf]
  %v88 = vld [vmem:[%s1 + $0x118] sm:$0xf]
  %v89 = vld [vmem:[%s1 + $0x11c] sm:$0xf]
  %v90 = vld [vmem:[%s1 + $0x120] sm:$0xf]
  %v91 = vld [vmem:[%s1 + $0x124] sm:$0xf]
  %v92 = vld [vmem:[%s1 + $0x128] sm:$0xf]
  %v93 = vld [vmem:[%s1 + $0x12c] sm:$0xf]
  %v94 = vld [vmem:[%s1 + $0x130] sm:$0xf]
  %v95 = vld [vmem:[%s1 + $0x134] sm:$0xf]
  %v96 = vld [vmem:[%s1 + $0x138] sm:$0xf]
  %v97 = vld [vmem:[%s1 + $0x13c] sm:$0xf]
  %v98 = vld [vmem:[%s1 + $0x140] sm:$0xf]
  %v99 = vld [vmem:[%s1 + $0x144] sm:$0xf]
  %v100 = vld [vmem:[%s1 + $0x148] sm:$0xf]
  %v101 = vld [vmem:[%s1 + $0x14c] sm:$0xf]
  %v102 = vld [vmem:[%s1 + $0x150] sm:$0xf]
  %v103 = vld [vmem:[%s1 + $0x154] sm:$0xf]
  %v104 = vld [vmem:[%s1 + $0x158] sm:$0xf]
  %v105 = vld [vmem:[%s1 + $0x15c] sm:$0xf]
  %v106 = vld [vmem:[%s1 + $0x160] sm:$0xf]
  %v107 = vld [vmem:[%s1 + $0x164] sm:$0xf]
  %v108 = vld [vmem:[%s1 + $0x168] sm:$0xf]
  %v109 = vld [vmem:[%s1 + $0x16c] sm:$0xf]
  %v110 = vld [vmem:[%s1 + $0x170] sm:$0xf]
  %v111 = vld [vmem:[%s1 + $0x174] sm:$0xf]
  %v112 = vld [vmem:[%s1 + $0x178] sm:$0xf]
  %v113 = vld [vmem:[%s1 + $0x17c] sm:$0xf]
  %v114 = vld [vmem:[%s1 + $0x180] sm:$0xf]
  %v115 = vld [vmem:[%s1 + $0x184] sm:$0xf]
  %v116 = vld [vmem:[%s1 + $0x188] sm:$0xf]
  %v117 = vld [vmem:[%s1 + $0x18c] sm:$0xf]
  %v118 = vld [vmem:[%s1 + $0x190] sm:$0xf]
  %v119 = vld [vmem:[%s1 + $0x194] sm:$0xf]
  %v120 = vld [vmem:[%s1 + $0x198] sm:$0xf]
  %v121 = vld [vmem:[%s1 + $0x19c] sm:$0xf]
  %v122 = vld [vmem:[%s1 + $0x1a0] sm:$0xf]
  %v123 = vld [vmem:[%s1 + $0x1a4] sm:$0xf]
  %v124 = vld [vmem:[%s1 + $0x1a8] sm:$0xf]
  %v125 = vld [vmem:[%s1 + $0x1ac] sm:$0xf]
  %v126 = vld [vmem:[%s1 + $0x1b0] sm:$0xf]
  %v127 = vld [vmem:[%s1 + $0x1b4] sm:$0xf]
  %v128 = vld [vmem:[%s1 + $0x1b8] sm:$0xf]
  %v129 = vld [vmem:[%s1 + $0x1bc] sm:$0xf]
  %v130 = vld [vmem:[%s1 + $0x1c0] sm:$0xf]
  %v131 = vld [vmem:[%s1 + $0x1c4] sm:$0xf]
  %v132 = vld [vmem:[%s1 + $0x1c8] sm:$0xf]
  %v133 = vld [vmem:[%s1 + $0x1cc] sm:$0xf]
  %v134 = vld [vmem:[%s1 + $0x1d0] sm:$0xf]
  %v135 = vld [vmem:[%s1 + $0x1d4] sm:$0xf]
  %v136 = vld [vmem:[%s1 + $0x1d8] sm:$0xf]
  %v137 = vld [vmem:[%s1 + $0x1dc] sm:$0xf]
  %v138 = vld [vmem:[%s1 + $0x1e0] sm:$0xf]
  %v139 = vld [vmem:[%s1 + $0x1e4] sm:$0xf]
  %v140 = vld [vmem:[%s1 + $0x1e8] sm:$0xf]
  %v141 = vld [vmem:[%s1 + $0x1ec] sm:$0xf]
  %v142 = vld [vmem:[%s1 + $0x1f0] sm:$0xf]
  %v143 = vld [vmem:[%s1 + $0x1f4] sm:$0xf]
  %v144 = vld [vmem:[%s1 + $0x1f8] sm:$0xf]
  %v145 = vld [vmem:[%s1 + $0x1fc] sm:$0xf]
  %v146 = vld [vmem:[%s1 + $0x200] sm:$0xf]
  %v147 = vld [vmem:[%s1 + $0x204] sm:$0xf]
  %v148 = vld [vmem:[%s1 + $0x208] sm:$0xf]
  %v149 = vld [vmem:[%s1 + $0x20c] sm:$0xf]
  %v150 = vld [vmem:[%s1 + $0x210] sm:$0xf]
  %v151 = vld [vmem:[%s1 + $0x214] sm:$0xf]
  %v152 = vld [vmem:[%s1 + $0x218] sm:$0xf]
  %v153 = vld [vmem:[%s1 + $0x21c] sm:$0xf]
  %v154 = vld [vmem:[%s1 + $0x220] sm:$0xf]
  %v155 = vld [vmem:[%s1 + $0x224] sm:$0xf]
  %v156 = vld [vmem:[%s1 + $0x228] sm:$0xf]
  %v157 = vld [vmem:[%s1 + $0x22c] sm:$0xf]
  %v158 = vld [vmem:[%s1 + $0x230] sm:$0xf]
  %v159 = vld [vmem:[%s1 + $0x234] sm:$0xf]
  %v160 = vld [vmem:[%s1 + $0x238] sm:$0xf]
  %v161 = vld [vmem:[%s1 + $0x23c] sm:$0xf]
  %v162 = vld [vmem:[%s1 + $0x240] sm:$0xf]
  %v163 = vld [vmem:[%s1 + $0x244] sm:$0xf]
  %v164 = vld [vmem:[%s1 + $0x248] sm:$0xf]
  %v165 = vld [vmem:[%s1 + $0x24c] sm:$0xf]
  %v166 = vld [vmem:[%s1 + $0x250] sm:$0xf]
  %v167 = vld [vmem:[%s1 + $0x254] sm:$0xf]
  %v168 = vld [vmem:[%s1 + $0x258] sm:$0xf]
  %v169 = vld [vmem:[%s1 + $0x25c] sm:$0xf]
  %v170 = vld [vmem:[%s1 + $0x260] sm:$0xf]
  %v171 = vld [vmem:[%s1 + $0x264] sm:$0xf]
  %v172 = vld [vmem:[%s1 + $0x268] sm:$0xf]
  %v173 = vld [vmem:[%s1 + $0x26c] sm:$0xf]
  %v174 = vld [vmem:[%s1 + $0x270] sm:$0xf]
  %v175 = vld [vmem:[%s1 + $0x274] sm:$0xf]
  %v176 = vld [vmem:[%s1 + $0x278] sm:$0xf]
  %v177 = vld [vmem:[%s1 + $0x27c] sm:$0xf]
  %v178 = vld [vmem:[%s1 + $0x280] sm:$0xf]
  %v179 = vld [vmem:[%s1 + $0x284] sm:$0xf]
  %v180 = vld [vmem:[%s1 + $0x288] sm:$0xf]
  %v181 = vld [vmem:[%s1 + $0x28c] sm:$0xf]
  %v182 = vld [vmem:[%s1 + $0x290] sm:$0xf]
  %v183 = vld [vmem:[%s1 + $0x294] sm:$0xf]
  %v184 = vld [vmem:[%s1 + $0x298] sm:$0xf]
  %v185 = vld [vmem:[%s1 + $0x29c] sm:$0xf]
  %v186 = vld [vmem:[%s1 + $0x2a0] sm:$0xf]
  %v187 = vld [vmem:[%s1 + $0x2a4] sm:$0xf]
  %v188 = vld [vmem:[%s1 + $0x2a8] sm:$0xf]
  %v189 = vld [vmem:[%s1 + $0x2ac] sm:$0xf]
  %v190 = vld [vmem:[%s1 + $0x2b0] sm:$0xf]
  %v191 = vld [vmem:[%s1 + $0x2b4] sm:$0xf]
  %v192 = vld [vmem:[%s1 + $0x2b8] sm:$0xf]
  %v193 = vld [vmem:[%s1 + $0x2bc] sm:$0xf]
  %v194 = vld [vmem:[%s1 + $0x2c0] sm:$0xf]
  %v195 = vld [vmem:[%s1 + $0x2c4] sm:$0xf]
  %v196 = vld [vmem:[%s1 + $0x2c8] sm:$0xf]
  %v197 = vld [vmem:[%s1 + $0x2cc] sm:$0xf]
  %v198 = vld [vmem:[%s1 + $0x2d0] sm:$0xf]
  %v199 = vld [vmem:[%s1 + $0x2d4] sm:$0xf]
  %v200 = vld [vmem:[%s1 + $0x2d8] sm:$0xf]
  %v201 = vld [vmem:[%s1 + $0x2dc] sm:$0xf]
  %v202 = vld [vmem:[%s1 + $0x2e0] sm:$0xf]
  %v203 = vld [vmem:[%s1 + $0x2e4] sm:$0xf]
  %v204 = vld [vmem:[%s1 + $0x2e8] sm:$0xf]
  %v205 = vld [vmem:[%s1 + $0x2ec] sm:$0xf]
  %v206 = vld [vmem:[%s1 + $0x2f0] sm:$0xf]
  %v207 = vld [vmem:[%s1 + $0x2f4] sm:$0xf]
  %v208 = vld [vmem:[%s1 + $0x2f8] sm:$0xf]
  %v209 = vld [vmem:[%s1 + $0x2fc] sm:$0xf]
  %v210 = vld [vmem:[%s1 + $0x300] sm:$0xf]
  %v211 = vld [vmem:[%s1 + $0x304] sm:$0xf]
  %v212 = vld [vmem:[%s1 + $0x308] sm:$0xf]
  %v213 = vld [vmem:[%s1 + $0x30c] sm:$0xf]
  %v214 = vld [vmem:[%s1 + $0x310] sm:$0xf]
  %v215 = vld [vmem:[%s1 + $0x314] sm:$0xf]
  %v216 = vld [vmem:[%s1 + $0x318] sm:$0xf]
  %v217 = vld [vmem:[%s1 + $0x31c] sm:$0xf]
  %v218 = vld [vmem:[%s1 + $0x320] sm:$0xf]
  %v219 = vld [vmem:[%s1 + $0x324] sm:$0xf]
  %v220 = vld [vmem:[%s1 + $0x328] sm:$0xf]
  %v221 = vld [vmem:[%s1 + $0x32c] sm:$0xf]
  %v222 = vld [vmem:[%s1 + $0x330] sm:$0xf]
  %v223 = vld [vmem:[%s1 + $0x334] sm:$0xf]
  %v224 = vld [vmem:[%s1 + $0x338] sm:$0xf]
  %v225 = vld [vmem:[%s1 + $0x33c] sm:$0xf]
  %v226 = vld [vmem:[%s1 + $0x340] sm:$0xf]
  %v227 = vld [vmem:[%s1 + $0x344] sm:$0xf]
  %v228 = vld [vmem:[%s1 + $0x348] sm:$0xf]
  %v229 = vld [vmem:[%s1 + $0x34c] sm:$0xf]
  %v230 = vld [vmem:[%s1 + $0x350] sm:$0xf]
  %v231 = vld [vmem:[%s1 + $0x354] sm:$0xf]
  %v232 = vld [vmem:[%s1 + $0x358] sm:$0xf]
  %v233 = vld [vmem:[%s1 + $0x35c] sm:$0xf]
  %v234 = vld [vmem:[%s1 + $0x360] sm:$0xf]
  %v235 = vld [vmem:[%s1 + $0x364] sm:$0xf]
  %v236 = vld [vmem:[%s1 + $0x368] sm:$0xf]
  %v237 = vld [vmem:[%s1 + $0x36c] sm:$0xf]
  %v238 = vld [vmem:[%s1 + $0x370] sm:$0xf]
  %v239 = vld [vmem:[%s1 + $0x374] sm:$0xf]
  %v240 = vld [vmem:[%s1 + $0x378] sm:$0xf]
  %v241 = vld [vmem:[%s1 + $0x37c] sm:$0xf]
  %v242 = vld [vmem:[%s1 + $0x380] sm:$0xf]
  %v243 = vld [vmem:[%s1 + $0x384] sm:$0xf]
  %v244 = vld [vmem:[%s1 + $0x388] sm:$0xf]
  %v245 = vld [vmem:[%s1 + $0x38c] sm:$0xf]
  %v246 = vld [vmem:[%s1 + $0x390] sm:$0xf]
  %v247 = vld [vmem:[%s1 + $0x394] sm:$0xf]
  %v248 = vld [vmem:[%s1 + $0x398] sm:$0xf]
  %v249 = vld [vmem:[%s1 + $0x39c] sm:$0xf]
  %v250 = vld [vmem:[%s1 + $0x3a0] sm:$0xf]
  %v251 = vld [vmem:[%s1 + $0x3a4] sm:$0xf]
  %v252 = vld [vmem:[%s1 + $0x3a8] sm:$0xf]
  %v253 = vld [vmem:[%s1 + $0x3ac] sm:$0xf]
  %v254 = vld [vmem:[%s1 + $0x3b0] sm:$0xf]
  %v255 = vld [vmem:[%s1 + $0x3b4] sm:$0xf]
  %v256 = vld [vmem:[%s1 + $0x3b8] sm:$0xf]
  %v257 = vld [vmem:[%s1 + $0x3bc] sm:$0xf]
  %v258 = vld [vmem:[%s1 + $0x3c0] sm:$0xf]
  %v259 = vld [vmem:[%s1 + $0x3c4] sm:$0xf]
  %v260 = vld [vmem:[%s1 + $0x3c8] sm:$0xf]
  %v261 = vld [vmem:[%s1 + $0x3cc] sm:$0xf]
  %v262 = vld [vmem:[%s1 + $0x3d0] sm:$0xf]
  %v263 = vld [vmem:[%s1 + $0x3d4] sm:$0xf]
  %v264 = vld [vmem:[%s1 + $0x3d8] sm:$0xf]
  %v265 = vld [vmem:[%s1 + $0x3dc] sm:$0xf]
  %v266 = vld [vmem:[%s1 + $0x3e0] sm:$0xf]
  %v267 = vld [vmem:[%s1 + $0x3e4] sm:$0xf]
  %v268 = vld [vmem:[%s1 + $0x3e8] sm:$0xf]
  %v269 = vld [vmem:[%s1 + $0x3ec] sm:$0xf]
  %v270 = vld [vmem:[%s1 + $0x3f0] sm:$0xf]
  %v271 = vld [vmem:[%s1 + $0x3f4] sm:$0xf]
  %v272 = vld [vmem:[%s1 + $0x3f8] sm:$0xf]
  %v273 = vld [vmem:[%s1 + $0x3fc] sm:$0xf]
  %v274 = vld [vmem:[%s1 + $0x400] sm:$0xf]
  %v275 = vld [vmem:[%s1 + $0x404] sm:$0xf]
  %v276 = vld [vmem:[%s1 + $0x408] sm:$0xf]
  %v277 = vld [vmem:[%s1 + $0x40c] sm:$0xf]
  %v278 = vld [vmem:[%s1 + $0x410] sm:$0xf]
  %v279 = vld [vmem:[%s1 + $0x414] sm:$0xf]
  %v280 = vld [vmem:[%s1 + $0x418] sm:$0xf]
  %v281 = vld [vmem:[%s1 + $0x41c] sm:$0xf]
  %v282 = vld [vmem:[%s1 + $0x420] sm:$0xf]
  %v283 = vld [vmem:[%s1 + $0x424] sm:$0xf]
  %v284 = vld [vmem:[%s1 + $0x428] sm:$0xf]
  %v285 = vld [vmem:[%s1 + $0x42c] sm:$0xf]
  %v286 = vld [vmem:[%s1 + $0x430] sm:$0xf]
  %v287 = vld [vmem:[%s1 + $0x434] sm:$0xf]
  %v288 = vld [vmem:[%s1 + $0x438] sm:$0xf]
  %v289 = vld [vmem:[%s1 + $0x43c] sm:$0xf]
  %v290 = vld [vmem:[%s1 + $0x440] sm:$0xf]
  %v291 = vld [vmem:[%s1 + $0x444] sm:$0xf]
  %v292 = vld [vmem:[%s1 + $0x448] sm:$0xf]
  %v293 = vld [vmem:[%s1 + $0x44c] sm:$0xf]
  %v294 = vld [vmem:[%s1 + $0x450] sm:$0xf]
  %v295 = vld [vmem:[%s1 + $0x454] sm:$0xf]
  %v296 = vld [vmem:[%s1 + $0x458] sm:$0xf]
  %v297 = vld [vmem:[%s1 + $0x45c] sm:$0xf]
  %v298 = vld [vmem:[%s1 + $0x460] sm:$0xf]
  %v299 = vld [vmem:[%s1 + $0x464] sm:$0xf]
  %v300 = vld [vmem:[%s1 + $0x468] sm:$0xf]
  %v301 = vld [vmem:[%s1 + $0x46c] sm:$0xf]
  %v302 = vld [vmem:[%s1 + $0x470] sm:$0xf]
  %v303 = vld [vmem:[%s1 + $0x474] sm:$0xf]
  %v304 = vld [vmem:[%s1 + $0x478] sm:$0xf]
  %v305 = vld [vmem:[%s1 + $0x47c] sm:$0xf]
  %v306 = vld [vmem:[%s2] sm:$0x1]
  %v308 = vlaneseq
  %v309 = vshrl.u32 %v308, 7
  %v310 = vsub.s32 0, %v309
  %v311 = vrot.slane %v306, %v310
  %v316 = vcombine.high %v15, %v15
  %v318 = vunpack.c.l.s4 1966171168
  %v319 = vunpack.c.0.s8 %v318
  %v320 = vlaneseq
  %v321 = vshrl.u32 %v320, 7
  %v322 = vsub.s32 %v319, %v321
  %v323 = vrot.slane %v15, %v322
  %v325 = vunpack.c.l.s4 1966171168
  %v326 = vunpack.c.0.s8 %v325
  %v327 = vlaneseq
  %v328 = vshrl.u32 %v327, 7
  %v329 = vsub.s32 %v326, %v328
  %v330 = vrot.slane %v316, %v329
  %v331 = vcombine.high %v323, %v323
  %v332 = vcombine.high %v330, %v330
  %v334 = vunpack.c.l.s4 1966171168
  %v335 = vunpack.c.0.s8 %v334
  %v336 = vlaneseq
  %v337 = vshrl.u32 %v336, 7
  %v338 = vsub.s32 %v335, %v337
  %v339 = vrot.slane %v323, %v338
  %v341 = vunpack.c.l.s4 1966171168
  %v342 = vunpack.c.0.s8 %v341
  %v343 = vlaneseq
  %v344 = vshrl.u32 %v343, 7
  %v345 = vsub.s32 %v342, %v344
  %v346 = vrot.slane %v330, %v345
  %v348 = vunpack.c.l.s4 1966171168
  %v349 = vunpack.c.0.s8 %v348
  %v350 = vlaneseq
  %v351 = vshrl.u32 %v350, 7
  %v352 = vsub.s32 %v349, %v351
  %v353 = vrot.slane %v331, %v352
  %v355 = vunpack.c.l.s4 1966171168
  %v356 = vunpack.c.0.s8 %v355
  %v357 = vlaneseq
  %v358 = vshrl.u32 %v357, 7
  %v359 = vsub.s32 %v356, %v358
  %v360 = vrot.slane %v332, %v359
  %v361 = vcombine.high %v339, %v339
  %v362 = vcombine.high %v346, %v346
  %v363 = vcombine.high %v353, %v353
  %v364 = vcombine.high %v360, %v360
  %v365 = vcombine.high %v16, %v16
  %v367 = vunpack.c.l.s4 1966171168
  %v368 = vunpack.c.0.s8 %v367
  %v369 = vlaneseq
  %v370 = vshrl.u32 %v369, 7
  %v371 = vsub.s32 %v368, %v370
  %v372 = vrot.slane %v16, %v371
  %v374 = vunpack.c.l.s4 1966171168
  %v375 = vunpack.c.0.s8 %v374
  %v376 = vlaneseq
  %v377 = vshrl.u32 %v376, 7
  %v378 = vsub.s32 %v375, %v377
  %v379 = vrot.slane %v365, %v378
  %v380 = vcombine.high %v372, %v372
  %v381 = vcombine.high %v379, %v379
  %v383 = vunpack.c.l.s4 1966171168
  %v384 = vunpack.c.0.s8 %v383
  %v385 = vlaneseq
  %v386 = vshrl.u32 %v385, 7
  %v387 = vsub.s32 %v384, %v386
  %v388 = vrot.slane %v372, %v387
  %v390 = vunpack.c.l.s4 1966171168
  %v391 = vunpack.c.0.s8 %v390
  %v392 = vlaneseq
  %v393 = vshrl.u32 %v392, 7
  %v394 = vsub.s32 %v391, %v393
  %v395 = vrot.slane %v379, %v394
  %v397 = vunpack.c.l.s4 1966171168
  %v398 = vunpack.c.0.s8 %v397
  %v399 = vlaneseq
  %v400 = vshrl.u32 %v399, 7
  %v401 = vsub.s32 %v398, %v400
  %v402 = vrot.slane %v380, %v401
  %v404 = vunpack.c.l.s4 1966171168
  %v405 = vunpack.c.0.s8 %v404
  %v406 = vlaneseq
  %v407 = vshrl.u32 %v406, 7
  %v408 = vsub.s32 %v405, %v407
  %v409 = vrot.slane %v381, %v408
  %v410 = vcombine.high %v388, %v388
  %v411 = vcombine.high %v395, %v395
  %v412 = vcombine.high %v402, %v402
  %v413 = vcombine.high %v409, %v409
  %v415 = vunpack.c.l.s4 1966171168
  %v416 = vunpack.c.0.s8 %v415
  %v417 = vlaneseq
  %v418 = vshrl.u32 %v417, 7
  %v419 = vsub.s32 %v416, %v418
  %v420 = vrot.slane %v17, %v419
  %v421 = vcombine.high %v420, %v420
  %v423 = vunpack.c.l.s4 1966171168
  %v424 = vunpack.c.0.s8 %v423
  %v425 = vlaneseq
  %v426 = vshrl.u32 %v425, 7
  %v427 = vsub.s32 %v424, %v426
  %v428 = vrot.slane %v420, %v427
  %v430 = vunpack.c.l.s4 1966171168
  %v431 = vunpack.c.0.s8 %v430
  %v432 = vlaneseq
  %v433 = vshrl.u32 %v432, 7
  %v434 = vsub.s32 %v431, %v433
  %v435 = vrot.slane %v421, %v434
  %v742 = vunpack.c.l.b16 %v18
  %v743 = vunpack.c.l.b16 %v19
  %v744 = vunpack.c.l.b16 %v20
  %v745 = vunpack.c.l.b16 %v21
  %v746 = vunpack.c.l.b16 %v22
  %v747 = vunpack.c.l.b16 %v23
  %v748 = vunpack.c.l.b16 %v24
  %v749 = vunpack.c.l.b16 %v25
  %v750 = vunpack.c.l.b16 %v26
  %v751 = vunpack.c.l.b16 %v27
  %v752 = vunpack.c.l.b16 %v28
  %v753 = vunpack.c.l.b16 %v29
  %v754 = vunpack.c.l.b16 %v30
  %v755 = vunpack.c.l.b16 %v31
  %v756 = vunpack.c.l.b16 %v32
  %v757 = vunpack.c.l.b16 %v33
  %v758 = vunpack.c.l.b16 %v34
  %v759 = vunpack.c.l.b16 %v35
  %v760 = vunpack.c.l.b16 %v36
  %v761 = vunpack.c.l.b16 %v37
  %v762 = vunpack.c.l.b16 %v38
  %v763 = vunpack.c.l.b16 %v39
  %v764 = vunpack.c.l.b16 %v40
  %v765 = vunpack.c.l.b16 %v41
  %v766 = vunpack.c.l.b16 %v42
  %v767 = vunpack.c.l.b16 %v43
  %v768 = vunpack.c.l.b16 %v44
  %v769 = vunpack.c.l.b16 %v45
  %v770 = vunpack.c.l.b16 %v46
  %v771 = vunpack.c.l.b16 %v47
  %v772 = vunpack.c.l.b16 %v48
  %v773 = vunpack.c.l.b16 %v49
  %v774 = vunpack.c.l.b16 %v50
  %v775 = vunpack.c.l.b16 %v51
  %v776 = vunpack.c.l.b16 %v52
  %v777 = vunpack.c.l.b16 %v53
  %v778 = vunpack.c.l.b16 %v54
  %v779 = vunpack.c.l.b16 %v55
  %v780 = vunpack.c.l.b16 %v56
  %v781 = vunpack.c.l.b16 %v57
  %v782 = vunpack.c.l.b16 %v58
  %v783 = vunpack.c.l.b16 %v59
  %v784 = vunpack.c.l.b16 %v60
  %v785 = vunpack.c.l.b16 %v61
  %v786 = vunpack.c.l.b16 %v62
  %v787 = vunpack.c.l.b16 %v63
  %v788 = vunpack.c.l.b16 %v64
  %v789 = vunpack.c.l.b16 %v65
  %v790 = vunpack.c.l.b16 %v66
  %v791 = vunpack.c.l.b16 %v67
  %v792 = vunpack.c.l.b16 %v68
  %v793 = vunpack.c.l.b16 %v69
  %v794 = vunpack.c.l.b16 %v70
  %v795 = vunpack.c.l.b16 %v71
  %v796 = vunpack.c.l.b16 %v72
  %v797 = vunpack.c.l.b16 %v73
  %v798 = vunpack.c.l.b16 %v74
  %v799 = vunpack.c.l.b16 %v75
  %v800 = vunpack.c.l.b16 %v76
  %v801 = vunpack.c.l.b16 %v77
  %v802 = vunpack.c.l.b16 %v78
  %v803 = vunpack.c.l.b16 %v79
  %v804 = vunpack.c.l.b16 %v80
  %v805 = vunpack.c.l.b16 %v81
  %v806 = vunpack.c.l.b16 %v82
  %v807 = vunpack.c.l.b16 %v83
  %v808 = vunpack.c.l.b16 %v84
  %v809 = vunpack.c.l.b16 %v85
  %v810 = vunpack.c.l.b16 %v86
  %v811 = vunpack.c.l.b16 %v87
  %v812 = vunpack.c.l.b16 %v88
  %v813 = vunpack.c.l.b16 %v89
  %v814 = vunpack.c.l.b16 %v90
  %v815 = vunpack.c.l.b16 %v91
  %v816 = vunpack.c.l.b16 %v92
  %v817 = vunpack.c.l.b16 %v93
  %v818 = vunpack.c.l.b16 %v94
  %v819 = vunpack.c.l.b16 %v95
  %v820 = vunpack.c.l.b16 %v96
  %v821 = vunpack.c.l.b16 %v97
  %v822 = vunpack.c.l.b16 %v98
  %v823 = vunpack.c.l.b16 %v99
  %v824 = vunpack.c.l.b16 %v100
  %v825 = vunpack.c.l.b16 %v101
  %v826 = vunpack.c.l.b16 %v102
  %v827 = vunpack.c.l.b16 %v103
  %v828 = vunpack.c.l.b16 %v104
  %v829 = vunpack.c.l.b16 %v105
  %v830 = vunpack.c.l.b16 %v106
  %v831 = vunpack.c.l.b16 %v107
  %v832 = vunpack.c.l.b16 %v108
  %v833 = vunpack.c.l.b16 %v109
  %v834 = vunpack.c.l.b16 %v110
  %v835 = vunpack.c.l.b16 %v111
  %v836 = vunpack.c.l.b16 %v112
  %v837 = vunpack.c.l.b16 %v113
  %v838 = vunpack.c.l.b16 %v114
  %v839 = vunpack.c.l.b16 %v115
  %v840 = vunpack.c.l.b16 %v116
  %v841 = vunpack.c.l.b16 %v117
  %v842 = vunpack.c.l.b16 %v118
  %v843 = vunpack.c.l.b16 %v119
  %v844 = vunpack.c.l.b16 %v120
  %v845 = vunpack.c.l.b16 %v121
  %v846 = vunpack.c.l.b16 %v122
  %v847 = vunpack.c.l.b16 %v123
  %v848 = vunpack.c.l.b16 %v124
  %v849 = vunpack.c.l.b16 %v125
  %v850 = vunpack.c.l.b16 %v126
  %v851 = vunpack.c.l.b16 %v127
  %v852 = vunpack.c.l.b16 %v128
  %v853 = vunpack.c.l.b16 %v129
  %v854 = vunpack.c.l.b16 %v130
  %v855 = vunpack.c.l.b16 %v131
  %v856 = vunpack.c.l.b16 %v132
  %v857 = vunpack.c.l.b16 %v133
  %v858 = vunpack.c.l.b16 %v134
  %v859 = vunpack.c.l.b16 %v135
  %v860 = vunpack.c.l.b16 %v136
  %v861 = vunpack.c.l.b16 %v137
  %v862 = vunpack.c.l.b16 %v138
  %v863 = vunpack.c.l.b16 %v139
  %v864 = vunpack.c.l.b16 %v140
  %v865 = vunpack.c.l.b16 %v141
  %v866 = vunpack.c.l.b16 %v142
  %v867 = vunpack.c.l.b16 %v143
  %v868 = vunpack.c.l.b16 %v144
  %v869 = vunpack.c.l.b16 %v145
  %v870 = vunpack.c.l.b16 %v146
  %v871 = vunpack.c.l.b16 %v147
  %v872 = vunpack.c.l.b16 %v148
  %v873 = vunpack.c.l.b16 %v149
  %v874 = vunpack.c.l.b16 %v150
  %v875 = vunpack.c.l.b16 %v151
  %v876 = vunpack.c.l.b16 %v152
  %v877 = vunpack.c.l.b16 %v153
  %v878 = vunpack.c.l.b16 %v154
  %v879 = vunpack.c.l.b16 %v155
  %v880 = vunpack.c.l.b16 %v156
  %v881 = vunpack.c.l.b16 %v157
  %v882 = vunpack.c.l.b16 %v158
  %v883 = vunpack.c.l.b16 %v159
  %v884 = vunpack.c.l.b16 %v160
  %v885 = vunpack.c.l.b16 %v161
  %v886 = vunpack.c.l.b16 %v162
  %v887 = vunpack.c.l.b16 %v163
  %v888 = vunpack.c.l.b16 %v164
  %v889 = vunpack.c.l.b16 %v165
  %v890 = vunpack.c.l.b16 %v166
  %v891 = vunpack.c.l.b16 %v167
  %v892 = vunpack.c.l.b16 %v168
  %v893 = vunpack.c.l.b16 %v169
  %v894 = vunpack.c.l.b16 %v170
  %v895 = vunpack.c.l.b16 %v171
  %v896 = vunpack.c.l.b16 %v172
  %v897 = vunpack.c.l.b16 %v173
  %v898 = vunpack.c.l.b16 %v174
  %v899 = vunpack.c.l.b16 %v175
  %v900 = vunpack.c.l.b16 %v176
  %v901 = vunpack.c.l.b16 %v177
  %v902 = vunpack.c.l.b16 %v178
  %v903 = vunpack.c.l.b16 %v179
  %v904 = vunpack.c.l.b16 %v180
  %v905 = vunpack.c.l.b16 %v181
  %v906 = vunpack.c.l.b16 %v182
  %v907 = vunpack.c.l.b16 %v183
  %v908 = vunpack.c.l.b16 %v184
  %v909 = vunpack.c.l.b16 %v185
  %v910 = vunpack.c.l.b16 %v186
  %v911 = vunpack.c.l.b16 %v187
  %v912 = vunpack.c.l.b16 %v188
  %v913 = vunpack.c.l.b16 %v189
  %v914 = vunpack.c.l.b16 %v190
  %v915 = vunpack.c.l.b16 %v191
  %v916 = vunpack.c.l.b16 %v192
  %v917 = vunpack.c.l.b16 %v193
  %v918 = vunpack.c.l.b16 %v194
  %v919 = vunpack.c.l.b16 %v195
  %v920 = vunpack.c.l.b16 %v196
  %v921 = vunpack.c.l.b16 %v197
  %v922 = vunpack.c.l.b16 %v198
  %v923 = vunpack.c.l.b16 %v199
  %v924 = vunpack.c.l.b16 %v200
  %v925 = vunpack.c.l.b16 %v201
  %v926 = vunpack.c.l.b16 %v202
  %v927 = vunpack.c.l.b16 %v203
  %v928 = vunpack.c.l.b16 %v204
  %v929 = vunpack.c.l.b16 %v205
  %v930 = vunpack.c.l.b16 %v206
  %v931 = vunpack.c.l.b16 %v207
  %v932 = vunpack.c.l.b16 %v208
  %v933 = vunpack.c.l.b16 %v209
  %v934 = vunpack.c.l.b16 %v210
  %v935 = vunpack.c.l.b16 %v211
  %v936 = vunpack.c.l.b16 %v212
  %v937 = vunpack.c.l.b16 %v213
  %v938 = vunpack.c.l.b16 %v214
  %v939 = vunpack.c.l.b16 %v215
  %v940 = vunpack.c.l.b16 %v216
  %v941 = vunpack.c.l.b16 %v217
  %v942 = vunpack.c.l.b16 %v218
  %v943 = vunpack.c.l.b16 %v219
  %v944 = vunpack.c.l.b16 %v220
  %v945 = vunpack.c.l.b16 %v221
  %v946 = vunpack.c.l.b16 %v222
  %v947 = vunpack.c.l.b16 %v223
  %v948 = vunpack.c.l.b16 %v224
  %v949 = vunpack.c.l.b16 %v225
  %v950 = vunpack.c.l.b16 %v226
  %v951 = vunpack.c.l.b16 %v227
  %v952 = vunpack.c.l.b16 %v228
  %v953 = vunpack.c.l.b16 %v229
  %v954 = vunpack.c.l.b16 %v230
  %v955 = vunpack.c.l.b16 %v231
  %v956 = vunpack.c.l.b16 %v232
  %v957 = vunpack.c.l.b16 %v233
  %v958 = vunpack.c.l.b16 %v234
  %v959 = vunpack.c.l.b16 %v235
  %v960 = vunpack.c.l.b16 %v236
  %v961 = vunpack.c.l.b16 %v237
  %v962 = vunpack.c.l.b16 %v238
  %v963 = vunpack.c.l.b16 %v239
  %v964 = vunpack.c.l.b16 %v240
  %v965 = vunpack.c.l.b16 %v241
  %v966 = vunpack.c.l.b16 %v242
  %v967 = vunpack.c.l.b16 %v243
  %v968 = vunpack.c.l.b16 %v244
  %v969 = vunpack.c.l.b16 %v245
  %v970 = vunpack.c.l.b16 %v246
  %v971 = vunpack.c.l.b16 %v247
  %v972 = vunpack.c.l.b16 %v248
  %v973 = vunpack.c.l.b16 %v249
  %v974 = vunpack.c.l.b16 %v250
  %v975 = vunpack.c.l.b16 %v251
  %v976 = vunpack.c.l.b16 %v252
  %v977 = vunpack.c.l.b16 %v253
  %v978 = vunpack.c.l.b16 %v254
  %v979 = vunpack.c.l.b16 %v255
  %v980 = vunpack.c.l.b16 %v256
  %v981 = vunpack.c.l.b16 %v257
  %v982 = vunpack.c.l.b16 %v258
  %v983 = vunpack.c.l.b16 %v259
  %v984 = vunpack.c.l.b16 %v260
  %v985 = vunpack.c.l.b16 %v261
  %v986 = vunpack.c.l.b16 %v262
  %v987 = vunpack.c.l.b16 %v263
  %v988 = vunpack.c.l.b16 %v264
  %v989 = vunpack.c.l.b16 %v265
  %v990 = vunpack.c.l.b16 %v266
  %v991 = vunpack.c.l.b16 %v267
  %v992 = vunpack.c.l.b16 %v268
  %v993 = vunpack.c.l.b16 %v269
  %v994 = vunpack.c.l.b16 %v270
  %v995 = vunpack.c.l.b16 %v271
  %v996 = vunpack.c.l.b16 %v272
  %v997 = vunpack.c.l.b16 %v273
  %v998 = vunpack.c.l.b16 %v274
  %v999 = vunpack.c.l.b16 %v275
  %v1000 = vunpack.c.l.b16 %v276
  %v1001 = vunpack.c.l.b16 %v277
  %v1002 = vunpack.c.l.b16 %v278
  %v1003 = vunpack.c.l.b16 %v279
  %v1004 = vunpack.c.l.b16 %v280
  %v1005 = vunpack.c.l.b16 %v281
  %v1006 = vunpack.c.l.b16 %v282
  %v1007 = vunpack.c.l.b16 %v283
  %v1008 = vunpack.c.l.b16 %v284
  %v1009 = vunpack.c.l.b16 %v285
  %v1010 = vunpack.c.l.b16 %v286
  %v1011 = vunpack.c.l.b16 %v287
  %v1012 = vunpack.c.l.b16 %v288
  %v1013 = vunpack.c.l.b16 %v289
  %v1014 = vunpack.c.l.b16 %v290
  %v1015 = vunpack.c.l.b16 %v291
  %v1016 = vunpack.c.l.b16 %v292
  %v1017 = vunpack.c.l.b16 %v293
  %v1018 = vunpack.c.l.b16 %v294
  %v1019 = vunpack.c.l.b16 %v295
  %v1020 = vunpack.c.l.b16 %v296
  %v1021 = vunpack.c.l.b16 %v297
  %v1022 = vunpack.c.l.b16 %v298
  %v1023 = vunpack.c.l.b16 %v299
  %v1024 = vunpack.c.l.b16 %v300
  %v1025 = vunpack.c.l.b16 %v301
  %v1026 = vunpack.c.l.b16 %v302
  %v1027 = vunpack.c.l.b16 %v303
  %v1028 = vunpack.c.l.b16 %v304
  %v1029 = vunpack.c.l.b16 %v305
  %v1030 = vpack.c.b16 %v743, %v742
  %v1031 = vpack.c.b16 %v745, %v744
  %v1032 = vpack.c.b16 %v747, %v746
  %v1033 = vpack.c.b16 %v749, %v748
  %v1034 = vpack.c.b16 %v751, %v750
  %v1035 = vpack.c.b16 %v753, %v752
  %v1036 = vpack.c.b16 %v755, %v754
  %v1037 = vpack.c.b16 %v757, %v756
  %v1038 = vpack.c.b16 %v759, %v758
  %v1039 = vpack.c.b16 %v761, %v760
  %v1040 = vpack.c.b16 %v763, %v762
  %v1041 = vpack.c.b16 %v765, %v764
  %v1042 = vpack.c.b16 %v767, %v766
  %v1043 = vpack.c.b16 %v769, %v768
  %v1044 = vpack.c.b16 %v771, %v770
  %v1045 = vpack.c.b16 %v773, %v772
  %v1046 = vpack.c.b16 %v775, %v774
  %v1047 = vpack.c.b16 %v777, %v776
  %v1048 = vpack.c.b16 %v779, %v778
  %v1049 = vpack.c.b16 %v781, %v780
  %v1050 = vpack.c.b16 %v783, %v782
  %v1051 = vpack.c.b16 %v785, %v784
  %v1052 = vpack.c.b16 %v787, %v786
  %v1053 = vpack.c.b16 %v789, %v788
  %v1054 = vpack.c.b16 %v791, %v790
  %v1055 = vpack.c.b16 %v793, %v792
  %v1056 = vpack.c.b16 %v795, %v794
  %v1057 = vpack.c.b16 %v797, %v796
  %v1058 = vpack.c.b16 %v799, %v798
  %v1059 = vpack.c.b16 %v801, %v800
  %v1060 = vpack.c.b16 %v803, %v802
  %v1061 = vpack.c.b16 %v805, %v804
  %v1062 = vpack.c.b16 %v807, %v806
  %v1063 = vpack.c.b16 %v809, %v808
  %v1064 = vpack.c.b16 %v811, %v810
  %v1065 = vpack.c.b16 %v813, %v812
  %v1066 = vpack.c.b16 %v815, %v814
  %v1067 = vpack.c.b16 %v817, %v816
  %v1068 = vpack.c.b16 %v819, %v818
  %v1069 = vpack.c.b16 %v821, %v820
  %v1070 = vpack.c.b16 %v823, %v822
  %v1071 = vpack.c.b16 %v825, %v824
  %v1072 = vpack.c.b16 %v827, %v826
  %v1073 = vpack.c.b16 %v829, %v828
  %v1074 = vpack.c.b16 %v831, %v830
  %v1075 = vpack.c.b16 %v833, %v832
  %v1076 = vpack.c.b16 %v835, %v834
  %v1077 = vpack.c.b16 %v837, %v836
  %v1078 = vpack.c.b16 %v839, %v838
  %v1079 = vpack.c.b16 %v841, %v840
  %v1080 = vpack.c.b16 %v843, %v842
  %v1081 = vpack.c.b16 %v845, %v844
  %v1082 = vpack.c.b16 %v847, %v846
  %v1083 = vpack.c.b16 %v849, %v848
  %v1084 = vpack.c.b16 %v851, %v850
  %v1085 = vpack.c.b16 %v853, %v852
  %v1086 = vpack.c.b16 %v855, %v854
  %v1087 = vpack.c.b16 %v857, %v856
  %v1088 = vpack.c.b16 %v859, %v858
  %v1089 = vpack.c.b16 %v861, %v860
  %v1090 = vpack.c.b16 %v863, %v862
  %v1091 = vpack.c.b16 %v865, %v864
  %v1092 = vpack.c.b16 %v867, %v866
  %v1093 = vpack.c.b16 %v869, %v868
  %v1094 = vpack.c.b16 %v871, %v870
  %v1095 = vpack.c.b16 %v873, %v872
  %v1096 = vpack.c.b16 %v875, %v874
  %v1097 = vpack.c.b16 %v877, %v876
  %v1098 = vpack.c.b16 %v879, %v878
  %v1099 = vpack.c.b16 %v881, %v880
  %v1100 = vpack.c.b16 %v883, %v882
  %v1101 = vpack.c.b16 %v885, %v884
  %v1102 = vpack.c.b16 %v887, %v886
  %v1103 = vpack.c.b16 %v889, %v888
  %v1104 = vpack.c.b16 %v891, %v890
  %v1105 = vpack.c.b16 %v893, %v892
  %v1106 = vpack.c.b16 %v895, %v894
  %v1107 = vpack.c.b16 %v897, %v896
  %v1108 = vpack.c.b16 %v899, %v898
  %v1109 = vpack.c.b16 %v901, %v900
  %v1110 = vpack.c.b16 %v903, %v902
  %v1111 = vpack.c.b16 %v905, %v904
  %v1112 = vpack.c.b16 %v907, %v906
  %v1113 = vpack.c.b16 %v909, %v908
  %v1114 = vpack.c.b16 %v911, %v910
  %v1115 = vpack.c.b16 %v913, %v912
  %v1116 = vpack.c.b16 %v915, %v914
  %v1117 = vpack.c.b16 %v917, %v916
  %v1118 = vpack.c.b16 %v919, %v918
  %v1119 = vpack.c.b16 %v921, %v920
  %v1120 = vpack.c.b16 %v923, %v922
  %v1121 = vpack.c.b16 %v925, %v924
  %v1122 = vpack.c.b16 %v927, %v926
  %v1123 = vpack.c.b16 %v929, %v928
  %v1124 = vpack.c.b16 %v931, %v930
  %v1125 = vpack.c.b16 %v933, %v932
  %v1126 = vpack.c.b16 %v935, %v934
  %v1127 = vpack.c.b16 %v937, %v936
  %v1128 = vpack.c.b16 %v939, %v938
  %v1129 = vpack.c.b16 %v941, %v940
  %v1130 = vpack.c.b16 %v943, %v942
  %v1131 = vpack.c.b16 %v945, %v944
  %v1132 = vpack.c.b16 %v947, %v946
  %v1133 = vpack.c.b16 %v949, %v948
  %v1134 = vpack.c.b16 %v951, %v950
  %v1135 = vpack.c.b16 %v953, %v952
  %v1136 = vpack.c.b16 %v955, %v954
  %v1137 = vpack.c.b16 %v957, %v956
  %v1138 = vpack.c.b16 %v959, %v958
  %v1139 = vpack.c.b16 %v961, %v960
  %v1140 = vpack.c.b16 %v963, %v962
  %v1141 = vpack.c.b16 %v965, %v964
  %v1142 = vpack.c.b16 %v967, %v966
  %v1143 = vpack.c.b16 %v969, %v968
  %v1144 = vpack.c.b16 %v971, %v970
  %v1145 = vpack.c.b16 %v973, %v972
  %v1146 = vpack.c.b16 %v975, %v974
  %v1147 = vpack.c.b16 %v977, %v976
  %v1148 = vpack.c.b16 %v979, %v978
  %v1149 = vpack.c.b16 %v981, %v980
  %v1150 = vpack.c.b16 %v983, %v982
  %v1151 = vpack.c.b16 %v985, %v984
  %v1152 = vpack.c.b16 %v987, %v986
  %v1153 = vpack.c.b16 %v989, %v988
  %v1154 = vpack.c.b16 %v991, %v990
  %v1155 = vpack.c.b16 %v993, %v992
  %v1156 = vpack.c.b16 %v995, %v994
  %v1157 = vpack.c.b16 %v997, %v996
  %v1158 = vpack.c.b16 %v999, %v998
  %v1159 = vpack.c.b16 %v1001, %v1000
  %v1160 = vpack.c.b16 %v1003, %v1002
  %v1161 = vpack.c.b16 %v1005, %v1004
  %v1162 = vpack.c.b16 %v1007, %v1006
  %v1163 = vpack.c.b16 %v1009, %v1008
  %v1164 = vpack.c.b16 %v1011, %v1010
  %v1165 = vpack.c.b16 %v1013, %v1012
  %v1166 = vpack.c.b16 %v1015, %v1014
  %v1167 = vpack.c.b16 %v1017, %v1016
  %v1168 = vpack.c.b16 %v1019, %v1018
  %v1169 = vpack.c.b16 %v1021, %v1020
  %v1170 = vpack.c.b16 %v1023, %v1022
  %v1171 = vpack.c.b16 %v1025, %v1024
  %v1172 = vpack.c.b16 %v1027, %v1026
  %v1173 = vpack.c.b16 %v1029, %v1028
  %1318 = vmatprep.subr.bf16.mxu0 0
  %1319 = vmatpush1.bf16.msra.mxu0 %v1030
  %1320 = vmatprep.subr.bf16.mxu0 0
  %1321 = vmatpush1.bf16.msra.mxu0 %v1031
  %1322 = vmatprep.subr.bf16.mxu0 0
  %1323 = vmatpush1.bf16.msra.mxu0 %v1032
  %1324 = vmatprep.subr.bf16.mxu0 0
  %1325 = vmatpush1.bf16.msra.mxu0 %v1033
  %1326 = vmatprep.subr.bf16.mxu0 0
  %1327 = vmatpush1.bf16.msra.mxu0 %v1034
  %1328 = vmatprep.subr.bf16.mxu0 0
  %1329 = vmatpush1.bf16.msra.mxu0 %v1035
  %1330 = vmatprep.subr.bf16.mxu0 0
  %1331 = vmatpush1.bf16.msra.mxu0 %v1036
  %1332 = vmatprep.subr.bf16.mxu0 0
  %1333 = vmatpush1.bf16.msra.mxu0 %v1037
  %1334 = vmatprep.subr.bf16.mxu0 0
  %1335 = vmatpush1.bf16.msra.mxu0 %v1038
  %1336 = vmatprep.subr.bf16.mxu0 0
  %1337 = vmatpush1.bf16.msra.mxu0 %v1039
  %1338 = vmatprep.subr.bf16.mxu0 0
  %1339 = vmatpush1.bf16.msra.mxu0 %v1040
  %1340 = vmatprep.subr.bf16.mxu0 0
  %1341 = vmatpush1.bf16.msra.mxu0 %v1041
  %1342 = vmatprep.subr.bf16.mxu0 0
  %1343 = vmatpush1.bf16.msra.mxu0 %v1042
  %1344 = vmatprep.subr.bf16.mxu0 0
  %1345 = vmatpush1.bf16.msra.mxu0 %v1043
  %1346 = vmatprep.subr.bf16.mxu0 0
  %1347 = vmatpush1.bf16.msra.mxu0 %v1044
  %1348 = vmatprep.subr.bf16.mxu0 0
  %1349 = vmatpush1.bf16.msra.mxu0 %v1045
  %1350 = vmatprep.mubr.bf16.mxu0 %v353
  %1351 = vmatmul.mubr.bf16.gmra.mrb[0].mxu0 %v339
  %v1352 = vpop.f32.mrb[0].mxu0
  %v1353 = vadd.f32 %v311, %v1352
  %v1354 = vpop.f32.mrb[0].mxu0
  %v1355 = vpop.f32.mrb[0].mxu0
  %v1356 = vpop.f32.mrb[0].mxu0
  %1357 = vdwg.mxu0
  %1358 = vmatprep.subr.bf16.mxu0 0
  %1359 = vmatpush1.bf16.msra.mxu0 %v1046
  %1360 = vmatprep.subr.bf16.mxu0 0
  %1361 = vmatpush1.bf16.msra.mxu0 %v1047
  %1362 = vmatprep.subr.bf16.mxu0 0
  %1363 = vmatpush1.bf16.msra.mxu0 %v1048
  %1364 = vmatprep.subr.bf16.mxu0 0
  %1365 = vmatpush1.bf16.msra.mxu0 %v1049
  %1366 = vmatprep.subr.bf16.mxu0 0
  %1367 = vmatpush1.bf16.msra.mxu0 %v1050
  %1368 = vmatprep.subr.bf16.mxu0 0
  %1369 = vmatpush1.bf16.msra.mxu0 %v1051
  %1370 = vmatprep.subr.bf16.mxu0 0
  %1371 = vmatpush1.bf16.msra.mxu0 %v1052
  %1372 = vmatprep.subr.bf16.mxu0 0
  %1373 = vmatpush1.bf16.msra.mxu0 %v1053
  %1374 = vmatprep.subr.bf16.mxu0 0
  %1375 = vmatpush1.bf16.msra.mxu0 %v1054
  %1376 = vmatprep.subr.bf16.mxu0 0
  %1377 = vmatpush1.bf16.msra.mxu0 %v1055
  %1378 = vmatprep.subr.bf16.mxu0 0
  %1379 = vmatpush1.bf16.msra.mxu0 %v1056
  %1380 = vmatprep.subr.bf16.mxu0 0
  %1381 = vmatpush1.bf16.msra.mxu0 %v1057
  %1382 = vmatprep.subr.bf16.mxu0 0
  %1383 = vmatpush1.bf16.msra.mxu0 %v1058
  %1384 = vmatprep.subr.bf16.mxu0 0
  %1385 = vmatpush1.bf16.msra.mxu0 %v1059
  %1386 = vmatprep.subr.bf16.mxu0 0
  %1387 = vmatpush1.bf16.msra.mxu0 %v1060
  %1388 = vmatprep.subr.bf16.mxu0 0
  %1389 = vmatpush1.bf16.msra.mxu0 %v1061
  %1390 = vmatprep.mubr.bf16.mxu0 %v363
  %1391 = vmatmul.mubr.bf16.gmra.mrb[0].mxu0 %v361
  %v1392 = vpop.f32.mrb[0].mxu0
  %v1393 = vadd.f32 %v1353, %v1392
  %v1394 = vpop.f32.mrb[0].mxu0
  %v1395 = vpop.f32.mrb[0].mxu0
  %v1396 = vpop.f32.mrb[0].mxu0
  %1397 = vdwg.mxu0
  %1398 = vmatprep.subr.bf16.mxu0 0
  %1399 = vmatpush1.bf16.msra.mxu0 %v1062
  %1400 = vmatprep.subr.bf16.mxu0 0
  %1401 = vmatpush1.bf16.msra.mxu0 %v1063
  %1402 = vmatprep.subr.bf16.mxu0 0
  %1403 = vmatpush1.bf16.msra.mxu0 %v1064
  %1404 = vmatprep.subr.bf16.mxu0 0
  %1405 = vmatpush1.bf16.msra.mxu0 %v1065
  %1406 = vmatprep.subr.bf16.mxu0 0
  %1407 = vmatpush1.bf16.msra.mxu0 %v1066
  %1408 = vmatprep.subr.bf16.mxu0 0
  %1409 = vmatpush1.bf16.msra.mxu0 %v1067
  %1410 = vmatprep.subr.bf16.mxu0 0
  %1411 = vmatpush1.bf16.msra.mxu0 %v1068
  %1412 = vmatprep.subr.bf16.mxu0 0
  %1413 = vmatpush1.bf16.msra.mxu0 %v1069
  %1414 = vmatprep.subr.bf16.mxu0 0
  %1415 = vmatpush1.bf16.msra.mxu0 %v1070
  %1416 = vmatprep.subr.bf16.mxu0 0
  %1417 = vmatpush1.bf16.msra.mxu0 %v1071
  %1418 = vmatprep.subr.bf16.mxu0 0
  %1419 = vmatpush1.bf16.msra.mxu0 %v1072
  %1420 = vmatprep.subr.bf16.mxu0 0
  %1421 = vmatpush1.bf16.msra.mxu0 %v1073
  %1422 = vmatprep.subr.bf16.mxu0 0
  %1423 = vmatpush1.bf16.msra.mxu0 %v1074
  %1424 = vmatprep.subr.bf16.mxu0 0
  %1425 = vmatpush1.bf16.msra.mxu0 %v1075
  %1426 = vmatprep.subr.bf16.mxu0 0
  %1427 = vmatpush1.bf16.msra.mxu0 %v1076
  %1428 = vmatprep.subr.bf16.mxu0 0
  %1429 = vmatpush1.bf16.msra.mxu0 %v1077
  %1430 = vmatprep.mubr.bf16.mxu0 %v360
  %1431 = vmatmul.mubr.bf16.gmra.mrb[0].mxu0 %v346
  %v1432 = vpop.f32.mrb[0].mxu0
  %v1433 = vadd.f32 %v1393, %v1432
  %v1434 = vpop.f32.mrb[0].mxu0
  %v1435 = vpop.f32.mrb[0].mxu0
  %v1436 = vpop.f32.mrb[0].mxu0
  %1437 = vdwg.mxu0
  %1438 = vmatprep.subr.bf16.mxu0 0
  %1439 = vmatpush1.bf16.msra.mxu0 %v1078
  %1440 = vmatprep.subr.bf16.mxu0 0
  %1441 = vmatpush1.bf16.msra.mxu0 %v1079
  %1442 = vmatprep.subr.bf16.mxu0 0
  %1443 = vmatpush1.bf16.msra.mxu0 %v1080
  %1444 = vmatprep.subr.bf16.mxu0 0
  %1445 = vmatpush1.bf16.msra.mxu0 %v1081
  %1446 = vmatprep.subr.bf16.mxu0 0
  %1447 = vmatpush1.bf16.msra.mxu0 %v1082
  %1448 = vmatprep.subr.bf16.mxu0 0
  %1449 = vmatpush1.bf16.msra.mxu0 %v1083
  %1450 = vmatprep.subr.bf16.mxu0 0
  %1451 = vmatpush1.bf16.msra.mxu0 %v1084
  %1452 = vmatprep.subr.bf16.mxu0 0
  %1453 = vmatpush1.bf16.msra.mxu0 %v1085
  %1454 = vmatprep.subr.bf16.mxu0 0
  %1455 = vmatpush1.bf16.msra.mxu0 %v1086
  %1456 = vmatprep.subr.bf16.mxu0 0
  %1457 = vmatpush1.bf16.msra.mxu0 %v1087
  %1458 = vmatprep.subr.bf16.mxu0 0
  %1459 = vmatpush1.bf16.msra.mxu0 %v1088
  %1460 = vmatprep.subr.bf16.mxu0 0
  %1461 = vmatpush1.bf16.msra.mxu0 %v1089
  %1462 = vmatprep.subr.bf16.mxu0 0
  %1463 = vmatpush1.bf16.msra.mxu0 %v1090
  %1464 = vmatprep.subr.bf16.mxu0 0
  %1465 = vmatpush1.bf16.msra.mxu0 %v1091
  %1466 = vmatprep.subr.bf16.mxu0 0
  %1467 = vmatpush1.bf16.msra.mxu0 %v1092
  %1468 = vmatprep.subr.bf16.mxu0 0
  %1469 = vmatpush1.bf16.msra.mxu0 %v1093
  %1470 = vmatprep.mubr.bf16.mxu0 %v364
  %1471 = vmatmul.mubr.bf16.gmra.mrb[0].mxu0 %v362
  %v1472 = vpop.f32.mrb[0].mxu0
  %v1473 = vadd.f32 %v1433, %v1472
  %v1474 = vpop.f32.mrb[0].mxu0
  %v1475 = vpop.f32.mrb[0].mxu0
  %v1476 = vpop.f32.mrb[0].mxu0
  %1477 = vdwg.mxu0
  %1478 = vmatprep.subr.bf16.mxu0 0
  %1479 = vmatpush1.bf16.msra.mxu0 %v1094
  %1480 = vmatprep.subr.bf16.mxu0 0
  %1481 = vmatpush1.bf16.msra.mxu0 %v1095
  %1482 = vmatprep.subr.bf16.mxu0 0
  %1483 = vmatpush1.bf16.msra.mxu0 %v1096
  %1484 = vmatprep.subr.bf16.mxu0 0
  %1485 = vmatpush1.bf16.msra.mxu0 %v1097
  %1486 = vmatprep.subr.bf16.mxu0 0
  %1487 = vmatpush1.bf16.msra.mxu0 %v1098
  %1488 = vmatprep.subr.bf16.mxu0 0
  %1489 = vmatpush1.bf16.msra.mxu0 %v1099
  %1490 = vmatprep.subr.bf16.mxu0 0
  %1491 = vmatpush1.bf16.msra.mxu0 %v1100
  %1492 = vmatprep.subr.bf16.mxu0 0
  %1493 = vmatpush1.bf16.msra.mxu0 %v1101
  %1494 = vmatprep.subr.bf16.mxu0 0
  %1495 = vmatpush1.bf16.msra.mxu0 %v1102
  %1496 = vmatprep.subr.bf16.mxu0 0
  %1497 = vmatpush1.bf16.msra.mxu0 %v1103
  %1498 = vmatprep.subr.bf16.mxu0 0
  %1499 = vmatpush1.bf16.msra.mxu0 %v1104
  %1500 = vmatprep.subr.bf16.mxu0 0
  %1501 = vmatpush1.bf16.msra.mxu0 %v1105
  %1502 = vmatprep.subr.bf16.mxu0 0
  %1503 = vmatpush1.bf16.msra.mxu0 %v1106
  %1504 = vmatprep.subr.bf16.mxu0 0
  %1505 = vmatpush1.bf16.msra.mxu0 %v1107
  %1506 = vmatprep.subr.bf16.mxu0 0
  %1507 = vmatpush1.bf16.msra.mxu0 %v1108
  %1508 = vmatprep.subr.bf16.mxu0 0
  %1509 = vmatpush1.bf16.msra.mxu0 %v1109
  %1510 = vmatprep.mubr.bf16.mxu0 %v402
  %1511 = vmatmul.mubr.bf16.gmra.mrb[0].mxu0 %v388
  %v1512 = vpop.f32.mrb[0].mxu0
  %v1513 = vadd.f32 %v1473, %v1512
  %v1514 = vpop.f32.mrb[0].mxu0
  %v1515 = vpop.f32.mrb[0].mxu0
  %v1516 = vpop.f32.mrb[0].mxu0
  %1517 = vdwg.mxu0
  %1518 = vmatprep.subr.bf16.mxu0 0
  %1519 = vmatpush1.bf16.msra.mxu0 %v1110
  %1520 = vmatprep.subr.bf16.mxu0 0
  %1521 = vmatpush1.bf16.msra.mxu0 %v1111
  %1522 = vmatprep.subr.bf16.mxu0 0
  %1523 = vmatpush1.bf16.msra.mxu0 %v1112
  %1524 = vmatprep.subr.bf16.mxu0 0
  %1525 = vmatpush1.bf16.msra.mxu0 %v1113
  %1526 = vmatprep.subr.bf16.mxu0 0
  %1527 = vmatpush1.bf16.msra.mxu0 %v1114
  %1528 = vmatprep.subr.bf16.mxu0 0
  %1529 = vmatpush1.bf16.msra.mxu0 %v1115
  %1530 = vmatprep.subr.bf16.mxu0 0
  %1531 = vmatpush1.bf16.msra.mxu0 %v1116
  %1532 = vmatprep.subr.bf16.mxu0 0
  %1533 = vmatpush1.bf16.msra.mxu0 %v1117
  %1534 = vmatprep.subr.bf16.mxu0 0
  %1535 = vmatpush1.bf16.msra.mxu0 %v1118
  %1536 = vmatprep.subr.bf16.mxu0 0
  %1537 = vmatpush1.bf16.msra.mxu0 %v1119
  %1538 = vmatprep.subr.bf16.mxu0 0
  %1539 = vmatpush1.bf16.msra.mxu0 %v1120
  %1540 = vmatprep.subr.bf16.mxu0 0
  %1541 = vmatpush1.bf16.msra.mxu0 %v1121
  %1542 = vmatprep.subr.bf16.mxu0 0
  %1543 = vmatpush1.bf16.msra.mxu0 %v1122
  %1544 = vmatprep.subr.bf16.mxu0 0
  %1545 = vmatpush1.bf16.msra.mxu0 %v1123
  %1546 = vmatprep.subr.bf16.mxu0 0
  %1547 = vmatpush1.bf16.msra.mxu0 %v1124
  %1548 = vmatprep.subr.bf16.mxu0 0
  %1549 = vmatpush1.bf16.msra.mxu0 %v1125
  %1550 = vmatprep.mubr.bf16.mxu0 %v412
  %1551 = vmatmul.mubr.bf16.gmra.mrb[0].mxu0 %v410
  %v1552 = vpop.f32.mrb[0].mxu0
  %v1553 = vadd.f32 %v1513, %v1552
  %v1554 = vpop.f32.mrb[0].mxu0
  %v1555 = vpop.f32.mrb[0].mxu0
  %v1556 = vpop.f32.mrb[0].mxu0
  %1557 = vdwg.mxu0
  %1558 = vmatprep.subr.bf16.mxu0 0
  %1559 = vmatpush1.bf16.msra.mxu0 %v1126
  %1560 = vmatprep.subr.bf16.mxu0 0
  %1561 = vmatpush1.bf16.msra.mxu0 %v1127
  %1562 = vmatprep.subr.bf16.mxu0 0
  %1563 = vmatpush1.bf16.msra.mxu0 %v1128
  %1564 = vmatprep.subr.bf16.mxu0 0
  %1565 = vmatpush1.bf16.msra.mxu0 %v1129
  %1566 = vmatprep.subr.bf16.mxu0 0
  %1567 = vmatpush1.bf16.msra.mxu0 %v1130
  %1568 = vmatprep.subr.bf16.mxu0 0
  %1569 = vmatpush1.bf16.msra.mxu0 %v1131
  %1570 = vmatprep.subr.bf16.mxu0 0
  %1571 = vmatpush1.bf16.msra.mxu0 %v1132
  %1572 = vmatprep.subr.bf16.mxu0 0
  %1573 = vmatpush1.bf16.msra.mxu0 %v1133
  %1574 = vmatprep.subr.bf16.mxu0 0
  %1575 = vmatpush1.bf16.msra.mxu0 %v1134
  %1576 = vmatprep.subr.bf16.mxu0 0
  %1577 = vmatpush1.bf16.msra.mxu0 %v1135
  %1578 = vmatprep.subr.bf16.mxu0 0
  %1579 = vmatpush1.bf16.msra.mxu0 %v1136
  %1580 = vmatprep.subr.bf16.mxu0 0
  %1581 = vmatpush1.bf16.msra.mxu0 %v1137
  %1582 = vmatprep.subr.bf16.mxu0 0
  %1583 = vmatpush1.bf16.msra.mxu0 %v1138
  %1584 = vmatprep.subr.bf16.mxu0 0
  %1585 = vmatpush1.bf16.msra.mxu0 %v1139
  %1586 = vmatprep.subr.bf16.mxu0 0
  %1587 = vmatpush1.bf16.msra.mxu0 %v1140
  %1588 = vmatprep.subr.bf16.mxu0 0
  %1589 = vmatpush1.bf16.msra.mxu0 %v1141
  %1590 = vmatprep.mubr.bf16.mxu0 %v409
  %1591 = vmatmul.mubr.bf16.gmra.mrb[0].mxu0 %v395
  %v1592 = vpop.f32.mrb[0].mxu0
  %v1593 = vadd.f32 %v1553, %v1592
  %v1594 = vpop.f32.mrb[0].mxu0
  %v1595 = vpop.f32.mrb[0].mxu0
  %v1596 = vpop.f32.mrb[0].mxu0
  %1597 = vdwg.mxu0
  %1598 = vmatprep.subr.bf16.mxu0 0
  %1599 = vmatpush1.bf16.msra.mxu0 %v1142
  %1600 = vmatprep.subr.bf16.mxu0 0
  %1601 = vmatpush1.bf16.msra.mxu0 %v1143
  %1602 = vmatprep.subr.bf16.mxu0 0
  %1603 = vmatpush1.bf16.msra.mxu0 %v1144
  %1604 = vmatprep.subr.bf16.mxu0 0
  %1605 = vmatpush1.bf16.msra.mxu0 %v1145
  %1606 = vmatprep.subr.bf16.mxu0 0
  %1607 = vmatpush1.bf16.msra.mxu0 %v1146
  %1608 = vmatprep.subr.bf16.mxu0 0
  %1609 = vmatpush1.bf16.msra.mxu0 %v1147
  %1610 = vmatprep.subr.bf16.mxu0 0
  %1611 = vmatpush1.bf16.msra.mxu0 %v1148
  %1612 = vmatprep.subr.bf16.mxu0 0
  %1613 = vmatpush1.bf16.msra.mxu0 %v1149
  %1614 = vmatprep.subr.bf16.mxu0 0
  %1615 = vmatpush1.bf16.msra.mxu0 %v1150
  %1616 = vmatprep.subr.bf16.mxu0 0
  %1617 = vmatpush1.bf16.msra.mxu0 %v1151
  %1618 = vmatprep.subr.bf16.mxu0 0
  %1619 = vmatpush1.bf16.msra.mxu0 %v1152
  %1620 = vmatprep.subr.bf16.mxu0 0
  %1621 = vmatpush1.bf16.msra.mxu0 %v1153
  %1622 = vmatprep.subr.bf16.mxu0 0
  %1623 = vmatpush1.bf16.msra.mxu0 %v1154
  %1624 = vmatprep.subr.bf16.mxu0 0
  %1625 = vmatpush1.bf16.msra.mxu0 %v1155
  %1626 = vmatprep.subr.bf16.mxu0 0
  %1627 = vmatpush1.bf16.msra.mxu0 %v1156
  %1628 = vmatprep.subr.bf16.mxu0 0
  %1629 = vmatpush1.bf16.msra.mxu0 %v1157
  %1630 = vmatprep.mubr.bf16.mxu0 %v413
  %1631 = vmatmul.mubr.bf16.gmra.mrb[0].mxu0 %v411
  %v1632 = vpop.f32.mrb[0].mxu0
  %v1633 = vadd.f32 %v1593, %v1632
  %v1634 = vpop.f32.mrb[0].mxu0
  %v1635 = vpop.f32.mrb[0].mxu0
  %v1636 = vpop.f32.mrb[0].mxu0
  %1637 = vdwg.mxu0
  %1638 = vmatprep.subr.bf16.mxu0 0
  %1639 = vmatpush1.bf16.msra.mxu0 %v1158
  %1640 = vmatprep.subr.bf16.mxu0 0
  %1641 = vmatpush1.bf16.msra.mxu0 %v1159
  %1642 = vmatprep.subr.bf16.mxu0 0
  %1643 = vmatpush1.bf16.msra.mxu0 %v1160
  %1644 = vmatprep.subr.bf16.mxu0 0
  %1645 = vmatpush1.bf16.msra.mxu0 %v1161
  %1646 = vmatprep.subr.bf16.mxu0 0
  %1647 = vmatpush1.bf16.msra.mxu0 %v1162
  %1648 = vmatprep.subr.bf16.mxu0 0
  %1649 = vmatpush1.bf16.msra.mxu0 %v1163
  %1650 = vmatprep.subr.bf16.mxu0 0
  %1651 = vmatpush1.bf16.msra.mxu0 %v1164
  %1652 = vmatprep.subr.bf16.mxu0 0
  %1653 = vmatpush1.bf16.msra.mxu0 %v1165
  %1654 = vmatprep.subr.bf16.mxu0 0
  %1655 = vmatpush1.bf16.msra.mxu0 %v1166
  %1656 = vmatprep.subr.bf16.mxu0 0
  %1657 = vmatpush1.bf16.msra.mxu0 %v1167
  %1658 = vmatprep.subr.bf16.mxu0 0
  %1659 = vmatpush1.bf16.msra.mxu0 %v1168
  %1660 = vmatprep.subr.bf16.mxu0 0
  %1661 = vmatpush1.bf16.msra.mxu0 %v1169
  %1662 = vmatprep.subr.bf16.mxu0 0
  %1663 = vmatpush1.bf16.msra.mxu0 %v1170
  %1664 = vmatprep.subr.bf16.mxu0 0
  %1665 = vmatpush1.bf16.msra.mxu0 %v1171
  %1666 = vmatprep.subr.bf16.mxu0 0
  %1667 = vmatpush1.bf16.msra.mxu0 %v1172
  %1668 = vmatprep.subr.bf16.mxu0 0
  %1669 = vmatpush1.bf16.msra.mxu0 %v1173
  %1670 = vmatprep.mubr.bf16.mxu0 %v435
  %1671 = vmatmul.mubr.bf16.gmra.mrb[0].mxu0 %v428
  %v1672 = vpop.f32.mrb[0].mxu0
  %v1673 = vadd.f32 %v1633, %v1672
  %v1674 = vpop.f32.mrb[0].mxu0
  %v1675 = vpop.f32.mrb[0].mxu0
  %v1676 = vpop.f32.mrb[0].mxu0
  %1677 = vdwg.mxu0
  %1678 = vst [vmem:[%s3] sm:$0x3] %v1673
  // Predicated region
  $region14: #{discriminator_forward.7} parent=0 // pred_check
    _
  $region15: #{discriminator_forward.7} parent=0 // pred_check_branch
    %1680 = sbr.rel (0) target = $region17
  $region16: #{discriminator_forward.7} parent=0 // pred_region
    _
  $region17: #{discriminator_forward.7} parent=0 // pred_fallthru
    _
  // Predicated region
  $region18: #{discriminator_forward.7} parent=0 // pred_check
    _
  $region19: #{discriminator_forward.7} parent=0 // pred_check_branch
    %1682 = sbr.rel (0) target = $region21
  $region20: #{discriminator_forward.7} parent=0 // pred_region
    _
  $region21: #{discriminator_forward.7} parent=0 // pred_fallthru
    _

</llo_original>
